<compile_context>
chip_gen: v7x
topology: tpu7x:2x2x1
jax: 0.10.0
libtpu: 0.0.40
codegen_flags: <defaults>
</compile_context>

<pallas_src>
import jax
import jax.numpy as jnp
from jax.experimental import pallas as pl
from jax.experimental.pallas import tpu as pltpu

N_CLASS = 5
FEAT_C = 2560      # EfficientNet-b7 feature channels
CAT_F = 2145       # category feature size
HID = 512
K_CHUNK = 512      # contraction chunk streamed per grid step
N_K = FEAT_C // K_CHUNK   # 5
B_TILE = 8         # f32 sublane tile for batch


def _head_kernel(xf_ref, xc_ref,
                 wx_ref, wc_ref, bx_ref, bc_ref,
                 w1x_ref, w1c_ref, b1_ref,
                 w2_ref, b2_ref,
                 out_ref, pred_ref,
                 accx_ref, accc_ref):
    k = pl.program_id(1)

    @pl.when(k == 0)
    def _():
        accx_ref[...] = jnp.zeros_like(accx_ref)
        accc_ref[...] = jnp.zeros_like(accc_ref)

    # AdaptiveAvgPool2d(1) == mean over the flattened spatial axis, per channel chunk.
    pooled = jnp.mean(xf_ref[...], axis=1)                     # (B_TILE, K_CHUNK) f32

    # Partial contractions of linear_x / linear_category (bf16 MXU, f32 accumulate).
    accx_ref[...] += jnp.dot(pooled.astype(jnp.bfloat16), wx_ref[...],
                             preferred_element_type=jnp.float32)
    accc_ref[...] += jnp.dot(xc_ref[...].astype(jnp.bfloat16), wc_ref[...],
                             preferred_element_type=jnp.float32)

    @pl.when(k == pl.num_programs(1) - 1)
    def _():
        hx = jnp.maximum(accx_ref[...] + bx_ref[...], 0.0)     # (B_TILE, 512)
        hc = jnp.maximum(accc_ref[...] + bc_ref[...], 0.0)     # (B_TILE, 512)

        # cat((hx, hc), dim=1) @ W1^T  ==  hx @ W1x + hc @ W1c
        h1 = (jnp.dot(hx.astype(jnp.bfloat16), w1x_ref[...],
                      preferred_element_type=jnp.float32)
              + jnp.dot(hc.astype(jnp.bfloat16), w1c_ref[...],
                        preferred_element_type=jnp.float32)
              + b1_ref[...])
        h1 = jnp.maximum(h1, 0.0)                              # (B_TILE, 512)

        logits = jnp.dot(h1.astype(jnp.bfloat16), w2_ref[...],
                         preferred_element_type=jnp.float32) + b2_ref[...]  # (B_TILE, 5)

        # softmax (f32), EUP approx reciprocal for the denominator
        m = jnp.max(logits, axis=-1, keepdims=True)
        e = jnp.exp(logits - m)
        denom = jnp.sum(e, axis=-1, keepdims=True)
        out_ref[...] = e * pl.reciprocal(denom, approx=True)

        # argmax over logits (equivalent: softmax is monotonic); first max wins.
        idx = jax.lax.broadcasted_iota(jnp.int32, logits.shape, 1)
        pred_ref[...] = jnp.min(
            jnp.where(logits == m, idx, jnp.int32(logits.shape[-1])),
            axis=-1, keepdims=True)


def efficientnet_fc_head(x_feat, xcategory, params):
    """x_feat: (B, 2560, H, W) NCHW feature map; xcategory: (B, 2145)."""
    B, C, H, W = x_feat.shape
    assert C == FEAT_C
    HW = H * W

    # channels-last so the 2560-channel axis sits on lanes
    xf = jnp.transpose(x_feat.reshape(B, C, HW), (0, 2, 1)).astype(jnp.float32)
    xc = xcategory.reshape(B, CAT_F).astype(jnp.float32)
    xc = jnp.pad(xc, ((0, 0), (0, FEAT_C - CAT_F)))            # pad K to 2560

    # pad batch to a multiple of the f32 sublane tile
    b_pad = (-B) % B_TILE
    if b_pad:
        xf = jnp.pad(xf, ((0, b_pad), (0, 0), (0, 0)))
        xc = jnp.pad(xc, ((0, b_pad), (0, 0)))
    Bp = B + b_pad
    n_b = Bp // B_TILE

    ins = (xf, xc,
           params["wx"], params["wc"], params["bx"], params["bc"],
           params["w1x"], params["w1c"], params["b1"],
           params["w2"], params["b2"])

    grid_spec = pltpu.PrefetchScalarGridSpec(
        num_scalar_prefetch=0,
        grid=(n_b, N_K),
        in_specs=[
            pl.BlockSpec((B_TILE, HW, K_CHUNK), lambda b, k: (b, 0, k)),   # xf
            pl.BlockSpec((B_TILE, K_CHUNK),     lambda b, k: (b, k)),      # xc
            pl.BlockSpec((K_CHUNK, HID),        lambda b, k: (k, 0)),      # wx
            pl.BlockSpec((K_CHUNK, HID),        lambda b, k: (k, 0)),      # wc
            pl.BlockSpec((1, HID),              lambda b, k: (0, 0)),      # bx
            pl.BlockSpec((1, HID),              lambda b, k: (0, 0)),      # bc
            pl.BlockSpec((HID, HID),            lambda b, k: (0, 0)),      # w1x
            pl.BlockSpec((HID, HID),            lambda b, k: (0, 0)),      # w1c
            pl.BlockSpec((1, HID),              lambda b, k: (0, 0)),      # b1
            pl.BlockSpec((HID, N_CLASS),        lambda b, k: (0, 0)),      # w2
            pl.BlockSpec((1, N_CLASS),          lambda b, k: (0, 0)),      # b2
        ],
        out_specs=[
            pl.BlockSpec((B_TILE, N_CLASS), lambda b, k: (b, 0)),
            pl.BlockSpec((B_TILE, 1),       lambda b, k: (b, 0)),
        ],
        scratch_shapes=[pltpu.VMEM((B_TILE, HID), jnp.float32),
                        pltpu.VMEM((B_TILE, HID), jnp.float32)],
    )

    out, pred = pl.pallas_call(
        _head_kernel,
        out_shape=(jax.ShapeDtypeStruct((Bp, N_CLASS), jnp.float32),
                   jax.ShapeDtypeStruct((Bp, 1), jnp.int32)),
        grid_spec=grid_spec,
        compiler_params=pltpu.CompilerParams(
            dimension_semantics=("parallel", "arbitrary"),
            vmem_limit_bytes=48 * 1024 * 1024),
    )(*ins)
    return out[:B], pred[:B, 0]


def _init_linear(kw, kb, fan_in, fan_out):
    # PyTorch nn.Linear default: U(-1/sqrt(fan_in), 1/sqrt(fan_in)).
    bound = 1.0 / (fan_in ** 0.5)
    w = jax.random.uniform(kw, (fan_in, fan_out), jnp.float32, -bound, bound)
    b = jax.random.uniform(kb, (1, fan_out), jnp.float32, -bound, bound)
    return w, b


if __name__ == "__main__":
    key = jax.random.PRNGKey(0)
    ks = jax.random.split(key, 10)

    B, H, W = 2, 4, 4  # small spatial extent for the synthetic feature map

    wx, bx = _init_linear(ks[0], ks[1], FEAT_C, HID)   # linear_x        (2560 -> 512)
    wc, bc = _init_linear(ks[2], ks[3], CAT_F, HID)    # linear_category (2145 -> 512)
    w1, b1 = _init_linear(ks[4], ks[5], 2 * HID, HID)  # linear1         (1024 -> 512)
    w2, b2 = _init_linear(ks[6], ks[7], HID, N_CLASS)  # linear2         (512  -> 5)

    # Weights stored bf16 (HBM traffic is weight-dominated); biases stay f32.
    # linear_category weight is zero-padded along K to 2560 (matches zero-padded xc).
    wc_padded = jnp.pad(wc, ((0, FEAT_C - CAT_F), (0, 0)))
    params = dict(
        wx=wx.astype(jnp.bfloat16), bx=bx,
        wc=wc_padded.astype(jnp.bfloat16), bc=bc,
        w1x=w1[:HID, :].astype(jnp.bfloat16),
        w1c=w1[HID:, :].astype(jnp.bfloat16), b1=b1,
        w2=w2.astype(jnp.bfloat16), b2=b2,
    )

    x_feat = jax.random.normal(ks[8], (B, FEAT_C, H, W), jnp.float32)
    xcategory = jax.random.normal(ks[9], (B, CAT_F), jnp.float32)

    out, pred = efficientnet_fc_head(x_feat, xcategory, params)
    jax.block_until_ready((out, pred))
    assert out.shape == (B, N_CLASS) and pred.shape == (B,)
    print("KERNEL_OK")
</pallas_src>

<mosaic_0001>
module attributes {stable_mosaic.version = 11 : i64} {
  func.func @_head_kernel(%arg0: i32, %arg1: i32, %arg2: memref<8x16x512xf32, #tpu.memory_space<vmem>>, %arg3: memref<8x512xf32, #tpu.memory_space<vmem>>, %arg4: memref<512x512xbf16, #tpu.memory_space<vmem>>, %arg5: memref<512x512xbf16, #tpu.memory_space<vmem>>, %arg6: memref<1x512xf32, #tpu.memory_space<vmem>>, %arg7: memref<1x512xf32, #tpu.memory_space<vmem>>, %arg8: memref<512x512xbf16, #tpu.memory_space<vmem>>, %arg9: memref<512x512xbf16, #tpu.memory_space<vmem>>, %arg10: memref<1x512xf32, #tpu.memory_space<vmem>>, %arg11: memref<512x5xbf16, #tpu.memory_space<vmem>>, %arg12: memref<1x5xf32, #tpu.memory_space<vmem>>, %arg13: memref<8x5xf32, #tpu.memory_space<vmem>>, %arg14: memref<8x1xi32, #tpu.memory_space<vmem>>, %arg15: memref<8x512xf32, #tpu.memory_space<vmem>>, %arg16: memref<8x512xf32, #tpu.memory_space<vmem>>) attributes {dimension_semantics = [#tpu.dimension_semantics<parallel>, #tpu.dimension_semantics<arbitrary>], iteration_bounds = array<i64: 1, 5>, scalar_prefetch = 0 : i64, scratch_operands = 2 : i64, tpu.core_type = #tpu.core_type<tc>, window_params = [{transform_indices = @transform_0, window_bounds = array<i64: 8, 16, 512>}, {transform_indices = @transform_1, window_bounds = array<i64: 8, 512>}, {transform_indices = @transform_2, window_bounds = array<i64: 512, 512>}, {transform_indices = @transform_3, window_bounds = array<i64: 512, 512>}, {pipeline_mode = #tpu.pipeline_mode<synchronous>, transform_indices = @transform_4, window_bounds = array<i64: 1, 512>}, {pipeline_mode = #tpu.pipeline_mode<synchronous>, transform_indices = @transform_5, window_bounds = array<i64: 1, 512>}, {pipeline_mode = #tpu.pipeline_mode<synchronous>, transform_indices = @transform_6, window_bounds = array<i64: 512, 512>}, {pipeline_mode = #tpu.pipeline_mode<synchronous>, transform_indices = @transform_7, window_bounds = array<i64: 512, 512>}, {pipeline_mode = #tpu.pipeline_mode<synchronous>, transform_indices = @transform_8, window_bounds = array<i64: 1, 512>}, {pipeline_mode = #tpu.pipeline_mode<synchronous>, transform_indices = @transform_9, window_bounds = array<i64: 512, 5>}, {pipeline_mode = #tpu.pipeline_mode<synchronous>, transform_indices = @transform_10, window_bounds = array<i64: 1, 5>}, {transform_indices = @transform_11, window_bounds = array<i64: 8, 5>}, {transform_indices = @transform_12, window_bounds = array<i64: 8, 1>}]} {
    %c0_i32 = arith.constant 0 : i32
    %0 = arith.cmpi eq, %arg1, %c0_i32 : i32
    %1 = arith.extui %0 : i1 to i32
    %c0_i32_0 = arith.constant 0 : i32
    %2 = arith.cmpi ne, %1, %c0_i32_0 : i32
    scf.if %2 {
      %cst_21 = arith.constant 0.000000e+00 : f32
      %23 = vector.broadcast %cst_21 : f32 to vector<8x512xf32>
      %c0_22 = arith.constant 0 : index
      %c0_23 = arith.constant 0 : index
      %24 = vector.load %arg15[%c0_22, %c0_23] : memref<8x512xf32, #tpu.memory_space<vmem>>, vector<8x512xf32>
      tpu.vector_store %arg15[%c0_22, %c0_23], %23 {strides = array<i32>} : memref<8x512xf32, #tpu.memory_space<vmem>>, vector<8x512xf32>,
      %cst_24 = arith.constant 0.000000e+00 : f32
      %25 = vector.broadcast %cst_24 : f32 to vector<8x512xf32>
      %c0_25 = arith.constant 0 : index
      %c0_26 = arith.constant 0 : index
      %26 = vector.load %arg16[%c0_25, %c0_26] : memref<8x512xf32, #tpu.memory_space<vmem>>, vector<8x512xf32>
      tpu.vector_store %arg16[%c0_25, %c0_26], %25 {strides = array<i32>} : memref<8x512xf32, #tpu.memory_space<vmem>>, vector<8x512xf32>,
    } else {
    }
    %c0 = arith.constant 0 : index
    %c0_1 = arith.constant 0 : index
    %c0_2 = arith.constant 0 : index
    %3 = vector.load %arg2[%c0, %c0_1, %c0_2] : memref<8x16x512xf32, #tpu.memory_space<vmem>>, vector<8x16x512xf32>
    %cst = arith.constant dense<0.000000e+00> : vector<8x512xf32>
    %4 = vector.multi_reduction <add>, %3, %cst [1] : vector<8x16x512xf32> to vector<8x512xf32>
    %cst_3 = arith.constant 1.600000e+01 : f32
    %5 = vector.broadcast %cst_3 : f32 to vector<8x512xf32>
    %6 = arith.divf %4, %5 : vector<8x512xf32>
    %c0_4 = arith.constant 0 : index
    %c0_5 = arith.constant 0 : index
    %7 = vector.load %arg15[%c0_4, %c0_5] : memref<8x512xf32, #tpu.memory_space<vmem>>, vector<8x512xf32>
    %8 = arith.truncf %6 : vector<8x512xf32> to vector<8x512xbf16>
    %c0_6 = arith.constant 0 : index
    %c0_7 = arith.constant 0 : index
    %9 = vector.load %arg4[%c0_6, %c0_7] : memref<512x512xbf16, #tpu.memory_space<vmem>>, vector<512x512xbf16>
    %cst_8 = arith.constant dense<0.000000e+00> : vector<8x512xf32>
    %10 = tpu.matmul %8, %9, %cst_8 {dimension_numbers = #tpu.dot_dimension_numbers<[1], [0], [0], [1], [0, 0, 1, 1], [], []>} : vector<8x512xbf16>, vector<512x512xbf16>, vector<8x512xf32> -> vector<8x512xf32>
    %11 = arith.addf %7, %10 : vector<8x512xf32>
    %c0_9 = arith.constant 0 : index
    %c0_10 = arith.constant 0 : index
    %12 = vector.load %arg15[%c0_9, %c0_10] : memref<8x512xf32, #tpu.memory_space<vmem>>, vector<8x512xf32>
    tpu.vector_store %arg15[%c0_9, %c0_10], %11 {strides = array<i32>} : memref<8x512xf32, #tpu.memory_space<vmem>>, vector<8x512xf32>,
    %c0_11 = arith.constant 0 : index
    %c0_12 = arith.constant 0 : index
    %13 = vector.load %arg16[%c0_11, %c0_12] : memref<8x512xf32, #tpu.memory_space<vmem>>, vector<8x512xf32>
    %c0_13 = arith.constant 0 : index
    %c0_14 = arith.constant 0 : index
    %14 = vector.load %arg3[%c0_13, %c0_14] : memref<8x512xf32, #tpu.memory_space<vmem>>, vector<8x512xf32>
    %15 = arith.truncf %14 : vector<8x512xf32> to vector<8x512xbf16>
    %c0_15 = arith.constant 0 : index
    %c0_16 = arith.constant 0 : index
    %16 = vector.load %arg5[%c0_15, %c0_16] : memref<512x512xbf16, #tpu.memory_space<vmem>>, vector<512x512xbf16>
    %cst_17 = arith.constant dense<0.000000e+00> : vector<8x512xf32>
    %17 = tpu.matmul %15, %16, %cst_17 {dimension_numbers = #tpu.dot_dimension_numbers<[1], [0], [0], [1], [0, 0, 1, 1], [], []>} : vector<8x512xbf16>, vector<512x512xbf16>, vector<8x512xf32> -> vector<8x512xf32>
    %18 = arith.addf %13, %17 : vector<8x512xf32>
    %c0_18 = arith.constant 0 : index
    %c0_19 = arith.constant 0 : index
    %19 = vector.load %arg16[%c0_18, %c0_19] : memref<8x512xf32, #tpu.memory_space<vmem>>, vector<8x512xf32>
    tpu.vector_store %arg16[%c0_18, %c0_19], %18 {strides = array<i32>} : memref<8x512xf32, #tpu.memory_space<vmem>>, vector<8x512xf32>,
    %c4_i32 = arith.constant 4 : i32
    %20 = arith.cmpi eq, %arg1, %c4_i32 : i32
    %21 = arith.extui %20 : i1 to i32
    %c0_i32_20 = arith.constant 0 : i32
    %22 = arith.cmpi ne, %21, %c0_i32_20 : i32
    scf.if %22 {
      %c0_21 = arith.constant 0 : index
      %c0_22 = arith.constant 0 : index
      %23 = vector.load %arg15[%c0_21, %c0_22] : memref<8x512xf32, #tpu.memory_space<vmem>>, vector<8x512xf32>
      %c0_23 = arith.constant 0 : index
      %c0_24 = arith.constant 0 : index
      %24 = vector.load %arg6[%c0_23, %c0_24] : memref<1x512xf32, #tpu.memory_space<vmem>>, vector<1x512xf32>
      %25 = vector.broadcast %24 : vector<1x512xf32> to vector<8x512xf32>
      %26 = arith.addf %23, %25 : vector<8x512xf32>
      %cst_25 = arith.constant 0.000000e+00 : f32
      %27 = vector.broadcast %cst_25 : f32 to vector<8x512xf32>
      %28 = arith.maximumf %26, %27 : vector<8x512xf32>
      %c0_26 = arith.constant 0 : index
      %c0_27 = arith.constant 0 : index
      %29 = vector.load %arg16[%c0_26, %c0_27] : memref<8x512xf32, #tpu.memory_space<vmem>>, vector<8x512xf32>
      %c0_28 = arith.constant 0 : index
      %c0_29 = arith.constant 0 : index
      %30 = vector.load %arg7[%c0_28, %c0_29] : memref<1x512xf32, #tpu.memory_space<vmem>>, vector<1x512xf32>
      %31 = vector.broadcast %30 : vector<1x512xf32> to vector<8x512xf32>
      %32 = arith.addf %29, %31 : vector<8x512xf32>
      %cst_30 = arith.constant 0.000000e+00 : f32
      %33 = vector.broadcast %cst_30 : f32 to vector<8x512xf32>
      %34 = arith.maximumf %32, %33 : vector<8x512xf32>
      %35 = arith.truncf %28 : vector<8x512xf32> to vector<8x512xbf16>
      %c0_31 = arith.constant 0 : index
      %c0_32 = arith.constant 0 : index
      %36 = vector.load %arg8[%c0_31, %c0_32] : memref<512x512xbf16, #tpu.memory_space<vmem>>, vector<512x512xbf16>
      %cst_33 = arith.constant dense<0.000000e+00> : vector<8x512xf32>
      %37 = tpu.matmul %35, %36, %cst_33 {dimension_numbers = #tpu.dot_dimension_numbers<[1], [0], [0], [1], [0, 0, 1, 1], [], []>} : vector<8x512xbf16>, vector<512x512xbf16>, vector<8x512xf32> -> vector<8x512xf32>
      %38 = arith.truncf %34 : vector<8x512xf32> to vector<8x512xbf16>
      %c0_34 = arith.constant 0 : index
      %c0_35 = arith.constant 0 : index
      %39 = vector.load %arg9[%c0_34, %c0_35] : memref<512x512xbf16, #tpu.memory_space<vmem>>, vector<512x512xbf16>
      %cst_36 = arith.constant dense<0.000000e+00> : vector<8x512xf32>
      %40 = tpu.matmul %38, %39, %cst_36 {dimension_numbers = #tpu.dot_dimension_numbers<[1], [0], [0], [1], [0, 0, 1, 1], [], []>} : vector<8x512xbf16>, vector<512x512xbf16>, vector<8x512xf32> -> vector<8x512xf32>
      %41 = arith.addf %37, %40 : vector<8x512xf32>
      %c0_37 = arith.constant 0 : index
      %c0_38 = arith.constant 0 : index
      %42 = vector.load %arg10[%c0_37, %c0_38] : memref<1x512xf32, #tpu.memory_space<vmem>>, vector<1x512xf32>
      %43 = vector.broadcast %42 : vector<1x512xf32> to vector<8x512xf32>
      %44 = arith.addf %41, %43 : vector<8x512xf32>
      %cst_39 = arith.constant 0.000000e+00 : f32
      %45 = vector.broadcast %cst_39 : f32 to vector<8x512xf32>
      %46 = arith.maximumf %44, %45 : vector<8x512xf32>
      %47 = arith.truncf %46 : vector<8x512xf32> to vector<8x512xbf16>
      %c0_40 = arith.constant 0 : index
      %c0_41 = arith.constant 0 : index
      %48 = vector.load %arg11[%c0_40, %c0_41] : memref<512x5xbf16, #tpu.memory_space<vmem>>, vector<512x5xbf16>
      %cst_42 = arith.constant dense<0.000000e+00> : vector<8x5xf32>
      %49 = tpu.matmul %47, %48, %cst_42 {dimension_numbers = #tpu.dot_dimension_numbers<[1], [0], [0], [1], [0, 0, 1, 1], [], []>} : vector<8x512xbf16>, vector<512x5xbf16>, vector<8x5xf32> -> vector<8x5xf32>
      %c0_43 = arith.constant 0 : index
      %c0_44 = arith.constant 0 : index
      %50 = vector.load %arg12[%c0_43, %c0_44] : memref<1x5xf32, #tpu.memory_space<vmem>>, vector<1x5xf32>
      %51 = vector.broadcast %50 : vector<1x5xf32> to vector<8x5xf32>
      %52 = arith.addf %49, %51 : vector<8x5xf32>
      %cst_45 = arith.constant dense<0xFF800000> : vector<8xf32>
      %53 = vector.multi_reduction <maximumf>, %52, %cst_45 [1] : vector<8x5xf32> to vector<8xf32>
      %54 = vector.shape_cast %53 : vector<8xf32> to vector<8x1xf32>
      %55 = vector.broadcast %54 : vector<8x1xf32> to vector<8x5xf32>
      %56 = arith.subf %52, %55 : vector<8x5xf32>
      %57 = math.exp %56 : vector<8x5xf32>
      %cst_46 = arith.constant dense<0.000000e+00> : vector<8xf32>
      %58 = vector.multi_reduction <add>, %57, %cst_46 [1] : vector<8x5xf32> to vector<8xf32>
      %59 = vector.shape_cast %58 : vector<8xf32> to vector<8x1xf32>
      %60 = tpu.reciprocal %59 {approx = true} : vector<8x1xf32> -> vector<8x1xf32>
      %61 = vector.broadcast %60 : vector<8x1xf32> to vector<8x5xf32>
      %62 = arith.mulf %57, %61 : vector<8x5xf32>
      %c0_47 = arith.constant 0 : index
      %c0_48 = arith.constant 0 : index
      %63 = vector.load %arg13[%c0_47, %c0_48] : memref<8x5xf32, #tpu.memory_space<vmem>>, vector<8x5xf32>
      tpu.vector_store %arg13[%c0_47, %c0_48], %62 {strides = array<i32>} : memref<8x5xf32, #tpu.memory_space<vmem>>, vector<8x5xf32>,
      %64 = tpu.iota {dimensions = array<i32: 1>} : vector<8x5xi32>
      %65 = vector.broadcast %54 : vector<8x1xf32> to vector<8x5xf32>
      %66 = arith.cmpf oeq, %52, %65 : vector<8x5xf32>
      %c5_i32 = arith.constant 5 : i32
      %67 = vector.broadcast %c5_i32 : i32 to vector<8x5xi32>
      %68 = arith.select %66, %64, %67 : vector<8x5xi1>, vector<8x5xi32>
      %cst_49 = arith.constant dense<2147483647> : vector<8xi32>
      %69 = vector.multi_reduction <minsi>, %68, %cst_49 [1] : vector<8x5xi32> to vector<8xi32>
      %70 = vector.shape_cast %69 : vector<8xi32> to vector<8x1xi32>
      %c0_50 = arith.constant 0 : index
      %c0_51 = arith.constant 0 : index
      %71 = vector.load %arg14[%c0_50, %c0_51] : memref<8x1xi32, #tpu.memory_space<vmem>>, vector<8x1xi32>
      tpu.vector_store %arg14[%c0_50, %c0_51], %70 {strides = array<i32>} : memref<8x1xi32, #tpu.memory_space<vmem>>, vector<8x1xi32>,
    } else {
    }
    return
  }
  func.func @transform_0(%arg0: i32, %arg1: i32) -> (i32, i32, i32) {
    %c0_i32 = arith.constant 0 : i32
    %c0_i32_0 = arith.constant 0 : i32
    return %arg0, %c0_i32, %arg1 : i32, i32, i32
  }
  func.func @transform_1(%arg0: i32, %arg1: i32) -> (i32, i32) {
    %c0_i32 = arith.constant 0 : i32
    return %arg0, %arg1 : i32, i32
  }
  func.func @transform_2(%arg0: i32, %arg1: i32) -> (i32, i32) {
    %c0_i32 = arith.constant 0 : i32
    %c0_i32_0 = arith.constant 0 : i32
    return %arg1, %c0_i32 : i32, i32
  }
  func.func @transform_3(%arg0: i32, %arg1: i32) -> (i32, i32) {
    %c0_i32 = arith.constant 0 : i32
    %c0_i32_0 = arith.constant 0 : i32
    return %arg1, %c0_i32 : i32, i32
  }
  func.func @transform_4(%arg0: i32, %arg1: i32) -> (i32, i32) {
    %c0_i32 = arith.constant 0 : i32
    %c0_i32_0 = arith.constant 0 : i32
    %c0_i32_1 = arith.constant 0 : i32
    return %c0_i32, %c0_i32_0 : i32, i32
  }
  func.func @transform_5(%arg0: i32, %arg1: i32) -> (i32, i32) {
    %c0_i32 = arith.constant 0 : i32
    %c0_i32_0 = arith.constant 0 : i32
    %c0_i32_1 = arith.constant 0 : i32
    return %c0_i32, %c0_i32_0 : i32, i32
  }
  func.func @transform_6(%arg0: i32, %arg1: i32) -> (i32, i32) {
    %c0_i32 = arith.constant 0 : i32
    %c0_i32_0 = arith.constant 0 : i32
    %c0_i32_1 = arith.constant 0 : i32
    return %c0_i32, %c0_i32_0 : i32, i32
  }
  func.func @transform_7(%arg0: i32, %arg1: i32) -> (i32, i32) {
    %c0_i32 = arith.constant 0 : i32
    %c0_i32_0 = arith.constant 0 : i32
    %c0_i32_1 = arith.constant 0 : i32
    return %c0_i32, %c0_i32_0 : i32, i32
  }
  func.func @transform_8(%arg0: i32, %arg1: i32) -> (i32, i32) {
    %c0_i32 = arith.constant 0 : i32
    %c0_i32_0 = arith.constant 0 : i32
    %c0_i32_1 = arith.constant 0 : i32
    return %c0_i32, %c0_i32_0 : i32, i32
  }
  func.func @transform_9(%arg0: i32, %arg1: i32) -> (i32, i32) {
    %c0_i32 = arith.constant 0 : i32
    %c0_i32_0 = arith.constant 0 : i32
    %c0_i32_1 = arith.constant 0 : i32
    return %c0_i32, %c0_i32_0 : i32, i32
  }
  func.func @transform_10(%arg0: i32, %arg1: i32) -> (i32, i32) {
    %c0_i32 = arith.constant 0 : i32
    %c0_i32_0 = arith.constant 0 : i32
    %c0_i32_1 = arith.constant 0 : i32
    return %c0_i32, %c0_i32_0 : i32, i32
  }
  func.func @transform_11(%arg0: i32, %arg1: i32) -> (i32, i32) {
    %c0_i32 = arith.constant 0 : i32
    %c0_i32_0 = arith.constant 0 : i32
    return %arg0, %c0_i32 : i32, i32
  }
  func.func @transform_12(%arg0: i32, %arg1: i32) -> (i32, i32) {
    %c0_i32 = arith.constant 0 : i32
    %c0_i32_0 = arith.constant 0 : i32
    return %arg0, %c0_i32 : i32, i32
  }
}

</mosaic_0001>

<llo_original>
// kernel: tpu_custom_call.1
$region0: #{tpu_custom_call.1}
  #allocation0 [shape = 'u32[]', space=smem, size = 0x4, offset = 0x4, fixed_abs, tag = 'smem constant byte address 0x4 - core index']
  #allocation1 [shape = 'u32[144,128]{1,0:T(1,128)}', space=vmem, size = 0x12000, scoped, tag = 'internal scratch']
  #allocation2 [shape = 'f32[8,512]{1,0:T(8,128)}', space=vmem, size = 0x4000, scoped, tag = 'scratch operand']
  #allocation3 [shape = 'f32[8,512]{1,0:T(8,128)}', space=vmem, size = 0x4000, scoped, tag = 'scratch operand']
  %s0 = inlined_call_operand.hbm [shape: f32[8,16,2560], index: 0, kind: input, shape index: {}]
  %s1 = inlined_call_operand.hbm [shape: f32[8,2560], index: 1, kind: input, shape index: {}]
  %s2 = inlined_call_operand.hbm [shape: bf16[2560,512], index: 2, kind: input, shape index: {}]
  %s3 = inlined_call_operand.hbm [shape: bf16[2560,512], index: 3, kind: input, shape index: {}]
  %s4 = inlined_call_operand.hbm [shape: f32[1,512], index: 4, kind: input, shape index: {}]
  %s5 = inlined_call_operand.hbm [shape: f32[1,512], index: 5, kind: input, shape index: {}]
  %s6 = inlined_call_operand.hbm [shape: bf16[512,512], index: 6, kind: input, shape index: {}]
  %s7 = inlined_call_operand.hbm [shape: bf16[512,512], index: 7, kind: input, shape index: {}]
  %s8 = inlined_call_operand.hbm [shape: f32[1,512], index: 8, kind: input, shape index: {}]
  %s9 = inlined_call_operand.vmem [shape: bf16[512,5], index: 9, kind: input, shape index: {}]
  %s10 = inlined_call_operand.hbm [shape: f32[1,5], index: 10, kind: input, shape index: {}]
  %s11 = inlined_call_operand.hbm [shape: f32[8,5], index: 11, kind: output, shape index: {0}]
  %s12 = inlined_call_operand.vmem [shape: s32[8,1], index: 12, kind: output, shape index: {1}]
  %13 = xla_tuple %s11, %s12
  %s14 = sld [smem:[#allocation0]]
  $region133: #{tpu_custom_call.1} parent=0
    _
  %s16 = ssub.s32 1, %s14
  %s17 = scalar_select 0, %s16, %s14
  $region1: #{tpu_custom_call.1} parent=0
    #allocation4 [shape = 'u8[524288]{0}', space=vmem, size = 0x80000, scoped, tag = 'input window, operand 0']
    #allocation5 [shape = 's32[2]{0}', space=sflag, size = 0x8, scoped, tag = 'scoped memory for tpu_custom_call.1']
    #allocation6 [shape = 's32[2]{0}', space=sflag, size = 0x8, scoped, tag = 'scoped memory for tpu_custom_call.1']
    #allocation7 [shape = 'u8[32768]{0}', space=vmem, size = 0x8000, scoped, tag = 'input window, operand 1']
    #allocation8 [shape = 's32[2]{0}', space=sflag, size = 0x8, scoped, tag = 'scoped memory for tpu_custom_call.1']
    #allocation9 [shape = 'u8[1048576]{0}', space=vmem, size = 0x100000, scoped, tag = 'input window, operand 2']
    #allocation10 [shape = 'u8[1048576]{0}', space=vmem, size = 0x100000, scoped, tag = 'input window, operand 3']
    #allocation11 [shape = 's32[2]{0}', space=sflag, size = 0x8, scoped, tag = 'scoped memory for tpu_custom_call.1']
    #allocation12 [shape = 'u8[2048]{0}', space=vmem, size = 0x800, scoped, tag = 'input window, operand 4, single buffered']
    #allocation13 [shape = 'u8[2048]{0}', space=vmem, size = 0x800, scoped, tag = 'input window, operand 5, single buffered']
    #allocation14 [shape = 's32[1]{0}', space=sflag, size = 0x4, scoped, tag = 'scoped memory for tpu_custom_call.1']
    #allocation15 [shape = 'u8[524288]{0}', space=vmem, size = 0x80000, scoped, tag = 'input window, operand 6, single buffered']
    #allocation16 [shape = 'u8[524288]{0}', space=vmem, size = 0x80000, scoped, tag = 'input window, operand 7, single buffered']
    #allocation17 [shape = 's32[1]{0}', space=sflag, size = 0x4, scoped, tag = 'scoped memory for tpu_custom_call.1']
    #allocation18 [shape = 'u8[2048]{0}', space=vmem, size = 0x800, scoped, tag = 'input window, operand 8, single buffered']
    #allocation19 [shape = 'u8[512]{0}', space=vmem, size = 0x400, scoped, tag = 'input window, operand 10, single buffered']
    #allocation20 [shape = 's32[1]{0}', space=sflag, size = 0x4, scoped, tag = 'scoped memory for tpu_custom_call.1']
    #allocation21 [shape = 'u8[4096]{0}', space=vmem, size = 0x1000, scoped, tag = 'output window, operand 0, single buffered']
    %18 = vsyncpa [#allocation5], 0
    %s19 = scalar_lea.sflag [#allocation5], 1
    %20 = vsyncpa %s19, 0
    %21 = vsyncpa [#allocation8], 0
    %s22 = scalar_lea.sflag [#allocation8], 1
    %23 = vsyncpa %s22, 0
    %24 = vsyncpa [#allocation11], 0
    %s25 = scalar_lea.sflag [#allocation11], 1
    %26 = vsyncpa %s25, 0
    %27 = vsyncpa [#allocation14], 0
    %28 = vsyncpa [#allocation17], 0
    %29 = vsyncpa [#allocation20], 0
    %30 = vsyncpa [#allocation6], 0
    loop: start=0, step=1, limit=7
    $region2: #{tpu_custom_call.1} parent=1 // loop_pre_header
      _
    $region3: #{tpu_custom_call.1} parent=1 // loop_header
      %s32 = sphi 0, %s36
      %p33 = scmp.ge.s32.totalorder %s32, 7
      %s39 = sphi 0, %s51
      %s40 = sphi 0, %s47
      %s41 = sphi 0, %s39
      %s42 = sphi 0, %s40
      %s43 = sphi 0, %s41
      %s44 = sphi 0, %s42
      %s56 = sphi 0, %s58
      %s59 = sphi 0, %s56
      %s60 = sphi 0, %s59
      %s76 = sphi 0, %s60
      %s84 = sphi 0, %s86
      %s87 = sphi 0, %s84
      %s88 = sphi 0, %s87
      %s104 = sphi 0, %s88
      %s110 = sphi 0, %s112
      %s113 = sphi 0, %s110
      %s114 = sphi 0, %s113
      %s130 = sphi 0, %s114
      %s136 = sphi 0, %s138
      %s139 = sphi 0, %s136
      %s140 = sphi 0, %s139
      %s156 = sphi 0, %s140
      %s160 = sphi 0, %s160
      %s162 = sphi 0, %s160
      %s163 = sphi 0, %s162
      %s177 = sphi 0, %s163
      %s181 = sphi 0, %s181
      %s183 = sphi 0, %s181
      %s184 = sphi 0, %s183
      %s198 = sphi 0, %s184
      %s202 = sphi 0, %s202
      %s204 = sphi 0, %s202
      %s205 = sphi 0, %s204
      %s219 = sphi 0, %s205
      %s223 = sphi 0, %s223
      %s225 = sphi 0, %s223
      %s226 = sphi 0, %s225
      %s240 = sphi 0, %s226
      %s244 = sphi 0, %s244
      %s246 = sphi 0, %s244
      %s247 = sphi 0, %s246
      %s261 = sphi 0, %s247
      %s265 = sphi 0, %s265
      %s267 = sphi 0, %s265
      %s268 = sphi 0, %s267
      %s282 = sphi 0, %s268
      %s286 = sphi 0, %s286
      %s288 = sphi 0, %s286
      %s289 = sphi 0, %s288
      %s303 = sphi 0, %s289
      %s309 = sphi 0, %s311
      %s312 = sphi 0, %s309
      %s313 = sphi 0, %s312
      %s329 = sphi 0, %s313
      %s335 = sphi 0, %s337
      %s338 = sphi 0, %s335
      %s339 = sphi 0, %s338
      %s355 = sphi 0, %s339
    $region4: #{tpu_custom_call.1} parent=1 // loop_header_branch
      %35 = sbr.rel (%p33) target = $region8
    $region5: #{tpu_custom_call.1} parent=1 // loop_body
      %s37 = ssub.s32 %s32, 1
      %s38 = ssub.s32 %s32, 2
      %s45 = sadd.s32 1, %s40
      %p46 = scmp.ge.s32.totalorder %s45, 5
      %s47 = scalar_select %p46, 0, %s45
      %s48 = sadd.s32 1, %s39
      %s49 = scalar_select %p46, %s48, %s39
      %p50 = scmp.ge.s32.totalorder %s49, 1
      %s51 = scalar_select %p50, 0, %s49
      %s52 = ssub.s32 %s39, %s51
      %s53 = ssub.s32 %s40, %s47
      %s54 = sor.u32 %s52, %s53
      %p55 = scmp.eq.s32.totalorder %s54, 0
      %s57 = sadd.s32 %s56, 1
      %s58 = scalar_select %p55, %s56, %s57
      %p61 = pneg %p55
      %p62 = scmp.eq.s32.totalorder %s32, 4
      %p63 = por %p61, %p62
      %p64 = scmp.ne.s32.totalorder %s56, %s59
      %p65 = scmp.eq.s32.totalorder %s32, 0
      %p66 = por %p64, %p65
      %p67 = scmp.ne.s32.totalorder %s56, %s59
      %p68 = scmp.eq.s32.totalorder %s37, 4
      %p69 = por %p67, %p68
      %p70 = scmp.ne.s32.totalorder %s59, %s60
      %p71 = scmp.eq.s32.totalorder %s37, 0
      %p72 = por %p70, %p71
      %p73 = scmp.ne.s32.totalorder %s59, %s60
      %p74 = scmp.eq.s32.totalorder %s38, 4
      %p75 = por %p73, %p74
      %p77 = scmp.ne.s32.totalorder %s60, %s76
      %p78 = scmp.eq.s32.totalorder %s38, 0
      %p79 = por %p77, %p78
      %s80 = ssub.s32 %s39, %s51
      %s81 = ssub.s32 %s40, %s47
      %s82 = sor.u32 %s80, %s81
      %p83 = scmp.eq.s32.totalorder %s82, 0
      %s85 = sadd.s32 %s84, 1
      %s86 = scalar_select %p83, %s84, %s85
      %p89 = pneg %p83
      %p90 = scmp.eq.s32.totalorder %s32, 4
      %p91 = por %p89, %p90
      %p92 = scmp.ne.s32.totalorder %s84, %s87
      %p93 = scmp.eq.s32.totalorder %s32, 0
      %p94 = por %p92, %p93
      %p95 = scmp.ne.s32.totalorder %s84, %s87
      %p96 = scmp.eq.s32.totalorder %s37, 4
      %p97 = por %p95, %p96
      %p98 = scmp.ne.s32.totalorder %s87, %s88
      %p99 = scmp.eq.s32.totalorder %s37, 0
      %p100 = por %p98, %p99
      %p101 = scmp.ne.s32.totalorder %s87, %s88
      %p102 = scmp.eq.s32.totalorder %s38, 4
      %p103 = por %p101, %p102
      %p105 = scmp.ne.s32.totalorder %s88, %s104
      %p106 = scmp.eq.s32.totalorder %s38, 0
      %p107 = por %p105, %p106
      %s108 = ssub.s32 %s40, %s47
      %p109 = scmp.eq.s32.totalorder %s108, 0
      %s111 = sadd.s32 %s110, 1
      %s112 = scalar_select %p109, %s110, %s111
      %p115 = pneg %p109
      %p116 = scmp.eq.s32.totalorder %s32, 4
      %p117 = por %p115, %p116
      %p118 = scmp.ne.s32.totalorder %s110, %s113
      %p119 = scmp.eq.s32.totalorder %s32, 0
      %p120 = por %p118, %p119
      %p121 = scmp.ne.s32.totalorder %s110, %s113
      %p122 = scmp.eq.s32.totalorder %s37, 4
      %p123 = por %p121, %p122
      %p124 = scmp.ne.s32.totalorder %s113, %s114
      %p125 = scmp.eq.s32.totalorder %s37, 0
      %p126 = por %p124, %p125
      %p127 = scmp.ne.s32.totalorder %s113, %s114
      %p128 = scmp.eq.s32.totalorder %s38, 4
      %p129 = por %p127, %p128
      %p131 = scmp.ne.s32.totalorder %s114, %s130
      %p132 = scmp.eq.s32.totalorder %s38, 0
      %p133 = por %p131, %p132
      %s134 = ssub.s32 %s40, %s47
      %p135 = scmp.eq.s32.totalorder %s134, 0
      %s137 = sadd.s32 %s136, 1
      %s138 = scalar_select %p135, %s136, %s137
      %p141 = pneg %p135
      %p142 = scmp.eq.s32.totalorder %s32, 4
      %p143 = por %p141, %p142
      %p144 = scmp.ne.s32.totalorder %s136, %s139
      %p145 = scmp.eq.s32.totalorder %s32, 0
      %p146 = por %p144, %p145
      %p147 = scmp.ne.s32.totalorder %s136, %s139
      %p148 = scmp.eq.s32.totalorder %s37, 4
      %p149 = por %p147, %p148
      %p150 = scmp.ne.s32.totalorder %s139, %s140
      %p151 = scmp.eq.s32.totalorder %s37, 0
      %p152 = por %p150, %p151
      %p153 = scmp.ne.s32.totalorder %s139, %s140
      %p154 = scmp.eq.s32.totalorder %s38, 4
      %p155 = por %p153, %p154
      %p157 = scmp.ne.s32.totalorder %s140, %s156
      %p158 = scmp.eq.s32.totalorder %s38, 0
      %p159 = por %p157, %p158
      %s161 = sadd.s32 %s160, 1
      %p164 = scmp.eq.s32.totalorder %s32, 4
      %p165 = scmp.ne.s32.totalorder %s160, %s162
      %p166 = scmp.eq.s32.totalorder %s32, 0
      %p167 = por %p165, %p166
      %p168 = scmp.ne.s32.totalorder %s160, %s162
      %p169 = scmp.eq.s32.totalorder %s37, 4
      %p170 = por %p168, %p169
      %p171 = scmp.ne.s32.totalorder %s162, %s163
      %p172 = scmp.eq.s32.totalorder %s37, 0
      %p173 = por %p171, %p172
      %p174 = scmp.ne.s32.totalorder %s162, %s163
      %p175 = scmp.eq.s32.totalorder %s38, 4
      %p176 = por %p174, %p175
      %p178 = scmp.ne.s32.totalorder %s163, %s177
      %p179 = scmp.eq.s32.totalorder %s38, 0
      %p180 = por %p178, %p179
      %s182 = sadd.s32 %s181, 1
      %p185 = scmp.eq.s32.totalorder %s32, 4
      %p186 = scmp.ne.s32.totalorder %s181, %s183
      %p187 = scmp.eq.s32.totalorder %s32, 0
      %p188 = por %p186, %p187
      %p189 = scmp.ne.s32.totalorder %s181, %s183
      %p190 = scmp.eq.s32.totalorder %s37, 4
      %p191 = por %p189, %p190
      %p192 = scmp.ne.s32.totalorder %s183, %s184
      %p193 = scmp.eq.s32.totalorder %s37, 0
      %p194 = por %p192, %p193
      %p195 = scmp.ne.s32.totalorder %s183, %s184
      %p196 = scmp.eq.s32.totalorder %s38, 4
      %p197 = por %p195, %p196
      %p199 = scmp.ne.s32.totalorder %s184, %s198
      %p200 = scmp.eq.s32.totalorder %s38, 0
      %p201 = por %p199, %p200
      %s203 = sadd.s32 %s202, 1
      %p206 = scmp.eq.s32.totalorder %s32, 4
      %p207 = scmp.ne.s32.totalorder %s202, %s204
      %p208 = scmp.eq.s32.totalorder %s32, 0
      %p209 = por %p207, %p208
      %p210 = scmp.ne.s32.totalorder %s202, %s204
      %p211 = scmp.eq.s32.totalorder %s37, 4
      %p212 = por %p210, %p211
      %p213 = scmp.ne.s32.totalorder %s204, %s205
      %p214 = scmp.eq.s32.totalorder %s37, 0
      %p215 = por %p213, %p214
      %p216 = scmp.ne.s32.totalorder %s204, %s205
      %p217 = scmp.eq.s32.totalorder %s38, 4
      %p218 = por %p216, %p217
      %p220 = scmp.ne.s32.totalorder %s205, %s219
      %p221 = scmp.eq.s32.totalorder %s38, 0
      %p222 = por %p220, %p221
      %s224 = sadd.s32 %s223, 1
      %p227 = scmp.eq.s32.totalorder %s32, 4
      %p228 = scmp.ne.s32.totalorder %s223, %s225
      %p229 = scmp.eq.s32.totalorder %s32, 0
      %p230 = por %p228, %p229
      %p231 = scmp.ne.s32.totalorder %s223, %s225
      %p232 = scmp.eq.s32.totalorder %s37, 4
      %p233 = por %p231, %p232
      %p234 = scmp.ne.s32.totalorder %s225, %s226
      %p235 = scmp.eq.s32.totalorder %s37, 0
      %p236 = por %p234, %p235
      %p237 = scmp.ne.s32.totalorder %s225, %s226
      %p238 = scmp.eq.s32.totalorder %s38, 4
      %p239 = por %p237, %p238
      %p241 = scmp.ne.s32.totalorder %s226, %s240
      %p242 = scmp.eq.s32.totalorder %s38, 0
      %p243 = por %p241, %p242
      %s245 = sadd.s32 %s244, 1
      %p248 = scmp.eq.s32.totalorder %s32, 4
      %p249 = scmp.ne.s32.totalorder %s244, %s246
      %p250 = scmp.eq.s32.totalorder %s32, 0
      %p251 = por %p249, %p250
      %p252 = scmp.ne.s32.totalorder %s244, %s246
      %p253 = scmp.eq.s32.totalorder %s37, 4
      %p254 = por %p252, %p253
      %p255 = scmp.ne.s32.totalorder %s246, %s247
      %p256 = scmp.eq.s32.totalorder %s37, 0
      %p257 = por %p255, %p256
      %p258 = scmp.ne.s32.totalorder %s246, %s247
      %p259 = scmp.eq.s32.totalorder %s38, 4
      %p260 = por %p258, %p259
      %p262 = scmp.ne.s32.totalorder %s247, %s261
      %p263 = scmp.eq.s32.totalorder %s38, 0
      %p264 = por %p262, %p263
      %s266 = sadd.s32 %s265, 1
      %p269 = scmp.eq.s32.totalorder %s32, 4
      %p270 = scmp.ne.s32.totalorder %s265, %s267
      %p271 = scmp.eq.s32.totalorder %s32, 0
      %p272 = por %p270, %p271
      %p273 = scmp.ne.s32.totalorder %s265, %s267
      %p274 = scmp.eq.s32.totalorder %s37, 4
      %p275 = por %p273, %p274
      %p276 = scmp.ne.s32.totalorder %s267, %s268
      %p277 = scmp.eq.s32.totalorder %s37, 0
      %p278 = por %p276, %p277
      %p279 = scmp.ne.s32.totalorder %s267, %s268
      %p280 = scmp.eq.s32.totalorder %s38, 4
      %p281 = por %p279, %p280
      %p283 = scmp.ne.s32.totalorder %s268, %s282
      %p284 = scmp.eq.s32.totalorder %s38, 0
      %p285 = por %p283, %p284
      %s287 = sadd.s32 %s286, 1
      %p290 = scmp.eq.s32.totalorder %s32, 4
      %p291 = scmp.ne.s32.totalorder %s286, %s288
      %p292 = scmp.eq.s32.totalorder %s32, 0
      %p293 = por %p291, %p292
      %p294 = scmp.ne.s32.totalorder %s286, %s288
      %p295 = scmp.eq.s32.totalorder %s37, 4
      %p296 = por %p294, %p295
      %p297 = scmp.ne.s32.totalorder %s288, %s289
      %p298 = scmp.eq.s32.totalorder %s37, 0
      %p299 = por %p297, %p298
      %p300 = scmp.ne.s32.totalorder %s288, %s289
      %p301 = scmp.eq.s32.totalorder %s38, 4
      %p302 = por %p300, %p301
      %p304 = scmp.ne.s32.totalorder %s289, %s303
      %p305 = scmp.eq.s32.totalorder %s38, 0
      %p306 = por %p304, %p305
      %s307 = ssub.s32 %s39, %s51
      %p308 = scmp.eq.s32.totalorder %s307, 0
      %s310 = sadd.s32 %s309, 1
      %s311 = scalar_select %p308, %s309, %s310
      %p314 = pneg %p308
      %p315 = scmp.eq.s32.totalorder %s32, 4
      %p316 = por %p314, %p315
      %p317 = scmp.ne.s32.totalorder %s309, %s312
      %p318 = scmp.eq.s32.totalorder %s32, 0
      %p319 = por %p317, %p318
      %p320 = scmp.ne.s32.totalorder %s309, %s312
      %p321 = scmp.eq.s32.totalorder %s37, 4
      %p322 = por %p320, %p321
      %p323 = scmp.ne.s32.totalorder %s312, %s313
      %p324 = scmp.eq.s32.totalorder %s37, 0
      %p325 = por %p323, %p324
      %p326 = scmp.ne.s32.totalorder %s312, %s313
      %p327 = scmp.eq.s32.totalorder %s38, 4
      %p328 = por %p326, %p327
      %p330 = scmp.ne.s32.totalorder %s313, %s329
      %p331 = scmp.eq.s32.totalorder %s38, 0
      %p332 = por %p330, %p331
      %s333 = ssub.s32 %s39, %s51
      %p334 = scmp.eq.s32.totalorder %s333, 0
      %s336 = sadd.s32 %s335, 1
      %s337 = scalar_select %p334, %s335, %s336
      %p340 = pneg %p334
      %p341 = scmp.eq.s32.totalorder %s32, 4
      %p342 = por %p340, %p341
      %p343 = scmp.ne.s32.totalorder %s335, %s338
      %p344 = scmp.eq.s32.totalorder %s32, 0
      %p345 = por %p343, %p344
      %p346 = scmp.ne.s32.totalorder %s335, %s338
      %p347 = scmp.eq.s32.totalorder %s37, 4
      %p348 = por %p346, %p347
      %p349 = scmp.ne.s32.totalorder %s338, %s339
      %p350 = scmp.eq.s32.totalorder %s37, 0
      %p351 = por %p349, %p350
      %p352 = scmp.ne.s32.totalorder %s338, %s339
      %p353 = scmp.eq.s32.totalorder %s38, 4
      %p354 = por %p352, %p353
      %p356 = scmp.ne.s32.totalorder %s339, %s355
      %p357 = scmp.eq.s32.totalorder %s38, 0
      %p358 = por %p356, %p357
      %p359 = scmp.le.s32.totalorder 1, %s32
      %p360 = scmp.lt.s32.totalorder %s32, 6
      %p361 = pnand %p359, %p360
      %p362 = pneg %p361
      // Predicated region
      $region9: #{tpu_custom_call.1} parent=5 // pred_check
        _
      $region10: #{tpu_custom_call.1} parent=5 // pred_check_branch
        %364 = sbr.rel (%p361) target = $region12
      $region11: #{tpu_custom_call.1} parent=5 // pred_region
        %s365 = ssub.s32 %s32, 1
        // Predicated region
        $region13: #{tpu_custom_call.1} parent=11 // pred_check
          %p366 = pneg %p173
        $region14: #{tpu_custom_call.1} parent=11 // pred_check_branch
          %368 = sbr.rel (%p366) target = $region16
        $region15: #{tpu_custom_call.1} parent=11 // pred_region
          %s370 = ssub.s32 64, 64
          %371 = vsyncadd [#allocation11], %s370
          %s373 = sshll.u32 [#allocation12], 4
          %s374 = int_to_ptr.vmem [resolvable:$true] %s373
          %376 = dma.hbm_to_vmem [thread:$0]  %s4, 64, %s374, [#allocation11]
        $region16: #{tpu_custom_call.1} parent=11 // pred_fallthru
          _
        // Predicated region
        $region17: #{tpu_custom_call.1} parent=11 // pred_check
          %p377 = pneg %p194
        $region18: #{tpu_custom_call.1} parent=11 // pred_check_branch
          %379 = sbr.rel (%p377) target = $region20
        $region19: #{tpu_custom_call.1} parent=11 // pred_region
          %s381 = ssub.s32 64, 64
          %382 = vsyncadd [#allocation14], %s381
          %s384 = sshll.u32 [#allocation13], 4
          %s385 = int_to_ptr.vmem [resolvable:$true] %s384
          %387 = dma.hbm_to_vmem [thread:$0]  %s5, 64, %s385, [#allocation14]
        $region20: #{tpu_custom_call.1} parent=11 // pred_fallthru
          _
        // Predicated region
        $region21: #{tpu_custom_call.1} parent=11 // pred_check
          %p388 = pneg %p215
        $region22: #{tpu_custom_call.1} parent=11 // pred_check_branch
          %390 = sbr.rel (%p388) target = $region24
        $region23: #{tpu_custom_call.1} parent=11 // pred_region
          %s392 = ssub.s32 16384, 16384
          %393 = vsyncadd [#allocation14], %s392
          %s394 = sshll.u32 [#allocation15], 4
          %s395 = int_to_ptr.vmem [resolvable:$true] %s394
          %400 = dma.hbm_to_vmem [thread:$0]  %s6, 16384, %s395, [#allocation14], 256, 256, 16
        $region24: #{tpu_custom_call.1} parent=11 // pred_fallthru
          _
        // Predicated region
        $region25: #{tpu_custom_call.1} parent=11 // pred_check
          %p401 = pneg %p236
        $region26: #{tpu_custom_call.1} parent=11 // pred_check_branch
          %403 = sbr.rel (%p401) target = $region28
        $region27: #{tpu_custom_call.1} parent=11 // pred_region
          %s405 = ssub.s32 16384, 16384
          %406 = vsyncadd [#allocation17], %s405
          %s407 = sshll.u32 [#allocation16], 4
          %s408 = int_to_ptr.vmem [resolvable:$true] %s407
          %413 = dma.hbm_to_vmem [thread:$0]  %s7, 16384, %s408, [#allocation17], 256, 256, 16
        $region28: #{tpu_custom_call.1} parent=11 // pred_fallthru
          _
        // Predicated region
        $region29: #{tpu_custom_call.1} parent=11 // pred_check
          %p414 = pneg %p257
        $region30: #{tpu_custom_call.1} parent=11 // pred_check_branch
          %416 = sbr.rel (%p414) target = $region32
        $region31: #{tpu_custom_call.1} parent=11 // pred_region
          %s418 = ssub.s32 64, 64
          %419 = vsyncadd [#allocation17], %s418
          %s421 = sshll.u32 [#allocation18], 4
          %s422 = int_to_ptr.vmem [resolvable:$true] %s421
          %424 = dma.hbm_to_vmem [thread:$0]  %s8, 64, %s422, [#allocation17]
        $region32: #{tpu_custom_call.1} parent=11 // pred_fallthru
          _
        // Predicated region
        $region33: #{tpu_custom_call.1} parent=11 // pred_check
          %p425 = pneg %p278
        $region34: #{tpu_custom_call.1} parent=11 // pred_check_branch
          %427 = sbr.rel (%p425) target = $region36
        $region35: #{tpu_custom_call.1} parent=11 // pred_region
          _
        $region36: #{tpu_custom_call.1} parent=11 // pred_fallthru
          _
        // Predicated region
        $region37: #{tpu_custom_call.1} parent=11 // pred_check
          %p428 = pneg %p299
        $region38: #{tpu_custom_call.1} parent=11 // pred_check_branch
          %430 = sbr.rel (%p428) target = $region40
        $region39: #{tpu_custom_call.1} parent=11 // pred_region
          %s432 = ssub.s32 16, 16
          %433 = vsyncadd [#allocation20], %s432
          %s435 = sshll.u32 [#allocation19], 4
          %s436 = int_to_ptr.vmem [resolvable:$true] %s435
          %438 = dma.hbm_to_vmem [thread:$0]  %s10, 16, %s436, [#allocation20]
        $region40: #{tpu_custom_call.1} parent=11 // pred_fallthru
          _
      $region12: #{tpu_custom_call.1} parent=5 // pred_fallthru
        _
      %p439 = scmp.lt.s32.totalorder %s32, 5
      // Predicated region
      $region41: #{tpu_custom_call.1} parent=5 // pred_check
        %p440 = pneg %p439
      $region42: #{tpu_custom_call.1} parent=5 // pred_check_branch
        %442 = sbr.rel (%p440) target = $region44
      $region43: #{tpu_custom_call.1} parent=5 // pred_region
        // Predicated region
        $region45: #{tpu_custom_call.1} parent=43 // pred_check
          %p443 = pneg %p66
        $region46: #{tpu_custom_call.1} parent=43 // pred_check_branch
          %445 = sbr.rel (%p443) target = $region48
        $region47: #{tpu_custom_call.1} parent=43 // pred_region
          %s446 = sand.u32 %s56, 1
          %s447 = scalar_lea.sflag [#allocation5], %s446
          %s448 = sand.u32 %s56, 1
          %s449 = smul.addr %s448, 512
          %s450 = scalar_lea.vmem [#allocation4], %s449
          %s451 = smul.u32 8, %s39
          %s452 = smul.u32 4, %s40
          %s454 = ssub.s32 8192, 8192
          %455 = vsyncadd %s447, %s454
          %s456 = smul.addr %s451, 40
          %s457 = sadd.s32 %s452, %s456
          %s458 = smul.addr %s457, 128
          %s459 = scalar_lea.hbm %s0, %s458
          %s460 = sshll.u32 %s450, 4
          %s461 = int_to_ptr.vmem [resolvable:$true] %s460
          %466 = dma.hbm_to_vmem [thread:$0]  %s459, 8192, %s461, %s447, 2560, 512, 32
        $region48: #{tpu_custom_call.1} parent=43 // pred_fallthru
          _
        // Predicated region
        $region49: #{tpu_custom_call.1} parent=43 // pred_check
          %p467 = pneg %p94
        $region50: #{tpu_custom_call.1} parent=43 // pred_check_branch
          %469 = sbr.rel (%p467) target = $region52
        $region51: #{tpu_custom_call.1} parent=43 // pred_region
          %s470 = sand.u32 %s32, 1
          %s471 = scalar_lea.sflag [#allocation8], %s470
          %s472 = sand.u32 %s84, 1
          %s473 = smul.addr %s472, 32
          %s474 = scalar_lea.vmem [#allocation7], %s473
          %s475 = smul.u32 4, %s40
          %s477 = ssub.s32 512, 512
          %478 = vsyncadd %s471, %s477
          %s479 = smul.addr %s39, 20
          %s480 = sadd.s32 %s475, %s479
          %s481 = smul.addr %s480, 128
          %s482 = scalar_lea.hbm %s1, %s481
          %s484 = sshll.u32 %s474, 4
          %s485 = int_to_ptr.vmem [resolvable:$true] %s484
          %487 = dma.hbm_to_vmem [thread:$0]  %s482, 512, %s485, %s471
        $region52: #{tpu_custom_call.1} parent=43 // pred_fallthru
          _
        // Predicated region
        $region53: #{tpu_custom_call.1} parent=43 // pred_check
          %p488 = pneg %p120
        $region54: #{tpu_custom_call.1} parent=43 // pred_check_branch
          %490 = sbr.rel (%p488) target = $region56
        $region55: #{tpu_custom_call.1} parent=43 // pred_region
          %s491 = sand.u32 %s32, 1
          %s492 = scalar_lea.sflag [#allocation8], %s491
          %s493 = sand.u32 %s110, 1
          %s494 = smul.addr %s493, 1024
          %s495 = scalar_lea.vmem [#allocation9], %s494
          %s496 = smul.u32 64, %s40
          %s498 = ssub.s32 16384, 16384
          %499 = vsyncadd %s492, %s498
          %s500 = smul.addr %s496, 4
          %s501 = smul.addr %s500, 64
          %s502 = scalar_lea.hbm %s2, %s501
          %s503 = sshll.u32 %s495, 4
          %s504 = int_to_ptr.vmem [resolvable:$true] %s503
          %509 = dma.hbm_to_vmem [thread:$0]  %s502, 16384, %s504, %s492, 256, 256, 16
        $region56: #{tpu_custom_call.1} parent=43 // pred_fallthru
          _
        // Predicated region
        $region57: #{tpu_custom_call.1} parent=43 // pred_check
          %p510 = pneg %p146
        $region58: #{tpu_custom_call.1} parent=43 // pred_check_branch
          %512 = sbr.rel (%p510) target = $region60
        $region59: #{tpu_custom_call.1} parent=43 // pred_region
          %s513 = sand.u32 %s32, 1
          %s514 = scalar_lea.sflag [#allocation11], %s513
          %s515 = sand.u32 %s136, 1
          %s516 = smul.addr %s515, 1024
          %s517 = scalar_lea.vmem [#allocation10], %s516
          %s518 = smul.u32 64, %s40
          %s520 = ssub.s32 16384, 16384
          %521 = vsyncadd %s514, %s520
          %s522 = smul.addr %s518, 4
          %s523 = smul.addr %s522, 64
          %s524 = scalar_lea.hbm %s3, %s523
          %s525 = sshll.u32 %s517, 4
          %s526 = int_to_ptr.vmem [resolvable:$true] %s525
          %531 = dma.hbm_to_vmem [thread:$0]  %s524, 16384, %s526, %s514, 256, 256, 16
        $region60: #{tpu_custom_call.1} parent=43 // pred_fallthru
          _
      $region44: #{tpu_custom_call.1} parent=5 // pred_fallthru
        _
      %p532 = scmp.le.s32.totalorder 1, %s32
      %p533 = scmp.lt.s32.totalorder %s32, 6
      %p534 = pnand %p532, %p533
      %p535 = pneg %p534
      // Predicated region
      $region61: #{tpu_custom_call.1} parent=5 // pred_check
        _
      $region62: #{tpu_custom_call.1} parent=5 // pred_check_branch
        %537 = sbr.rel (%p534) target = $region64
      $region63: #{tpu_custom_call.1} parent=5 // pred_region
        %s538 = ssub.s32 %s32, 1
        %s539 = sand.u32 %s59, 1
        %s540 = scalar_lea.sflag [#allocation5], %s539
        %s541 = sand.u32 %s59, 1
        %s542 = smul.addr %s541, 512
        %s543 = scalar_lea.vmem [#allocation4], %s542
        // Predicated region
        $region65: #{tpu_custom_call.1} parent=63 // pred_check
          %p544 = pneg %p72
        $region66: #{tpu_custom_call.1} parent=63 // pred_check_branch
          %546 = sbr.rel (%p544) target = $region68
        $region67: #{tpu_custom_call.1} parent=63 // pred_region
          %547 = dma.done %s540, 8192
        $region68: #{tpu_custom_call.1} parent=63 // pred_fallthru
          _
        %s548 = sand.u32 %s37, 1
        %s549 = scalar_lea.sflag [#allocation8], %s548
        %s550 = sand.u32 %s87, 1
        %s551 = smul.addr %s550, 32
        %s552 = scalar_lea.vmem [#allocation7], %s551
        // Predicated region
        $region69: #{tpu_custom_call.1} parent=63 // pred_check
          %p553 = pneg %p100
        $region70: #{tpu_custom_call.1} parent=63 // pred_check_branch
          %555 = sbr.rel (%p553) target = $region72
        $region71: #{tpu_custom_call.1} parent=63 // pred_region
          %556 = dma.done %s549, 512
        $region72: #{tpu_custom_call.1} parent=63 // pred_fallthru
          _
        %s557 = sand.u32 %s37, 1
        %s558 = scalar_lea.sflag [#allocation8], %s557
        %s559 = sand.u32 %s113, 1
        %s560 = smul.addr %s559, 1024
        %s561 = scalar_lea.vmem [#allocation9], %s560
        // Predicated region
        $region73: #{tpu_custom_call.1} parent=63 // pred_check
          %p562 = pneg %p126
        $region74: #{tpu_custom_call.1} parent=63 // pred_check_branch
          %564 = sbr.rel (%p562) target = $region76
        $region75: #{tpu_custom_call.1} parent=63 // pred_region
          %565 = dma.done %s558, 16384
        $region76: #{tpu_custom_call.1} parent=63 // pred_fallthru
          _
        %s566 = sand.u32 %s37, 1
        %s567 = scalar_lea.sflag [#allocation11], %s566
        %s568 = sand.u32 %s139, 1
        %s569 = smul.addr %s568, 1024
        %s570 = scalar_lea.vmem [#allocation10], %s569
        // Predicated region
        $region77: #{tpu_custom_call.1} parent=63 // pred_check
          %p571 = pneg %p152
        $region78: #{tpu_custom_call.1} parent=63 // pred_check_branch
          %573 = sbr.rel (%p571) target = $region80
        $region79: #{tpu_custom_call.1} parent=63 // pred_region
          %574 = dma.done %s567, 16384
        $region80: #{tpu_custom_call.1} parent=63 // pred_fallthru
          _
        // Predicated region
        $region81: #{tpu_custom_call.1} parent=63 // pred_check
          %p575 = pneg %p173
        $region82: #{tpu_custom_call.1} parent=63 // pred_check_branch
          %577 = sbr.rel (%p575) target = $region84
        $region83: #{tpu_custom_call.1} parent=63 // pred_region
          %578 = dma.done [#allocation11], 64
        $region84: #{tpu_custom_call.1} parent=63 // pred_fallthru
          _
        // Predicated region
        $region85: #{tpu_custom_call.1} parent=63 // pred_check
          %p579 = pneg %p194
        $region86: #{tpu_custom_call.1} parent=63 // pred_check_branch
          %581 = sbr.rel (%p579) target = $region88
        $region87: #{tpu_custom_call.1} parent=63 // pred_region
          %582 = dma.done [#allocation14], 64
        $region88: #{tpu_custom_call.1} parent=63 // pred_fallthru
          _
        // Predicated region
        $region89: #{tpu_custom_call.1} parent=63 // pred_check
          %p583 = pneg %p215
        $region90: #{tpu_custom_call.1} parent=63 // pred_check_branch
          %585 = sbr.rel (%p583) target = $region92
        $region91: #{tpu_custom_call.1} parent=63 // pred_region
          %586 = dma.done [#allocation14], 16384
        $region92: #{tpu_custom_call.1} parent=63 // pred_fallthru
          _
        // Predicated region
        $region93: #{tpu_custom_call.1} parent=63 // pred_check
          %p587 = pneg %p236
        $region94: #{tpu_custom_call.1} parent=63 // pred_check_branch
          %589 = sbr.rel (%p587) target = $region96
        $region95: #{tpu_custom_call.1} parent=63 // pred_region
          %590 = dma.done [#allocation17], 16384
        $region96: #{tpu_custom_call.1} parent=63 // pred_fallthru
          _
        // Predicated region
        $region97: #{tpu_custom_call.1} parent=63 // pred_check
          %p591 = pneg %p257
        $region98: #{tpu_custom_call.1} parent=63 // pred_check_branch
          %593 = sbr.rel (%p591) target = $region100
        $region99: #{tpu_custom_call.1} parent=63 // pred_region
          %594 = dma.done [#allocation17], 64
        $region100: #{tpu_custom_call.1} parent=63 // pred_fallthru
          _
        // Predicated region
        $region101: #{tpu_custom_call.1} parent=63 // pred_check
          %p595 = pneg %p299
        $region102: #{tpu_custom_call.1} parent=63 // pred_check_branch
          %597 = sbr.rel (%p595) target = $region104
        $region103: #{tpu_custom_call.1} parent=63 // pred_region
          %598 = dma.done [#allocation20], 16
        $region104: #{tpu_custom_call.1} parent=63 // pred_fallthru
          _
        %s599 = sand.u32 %s59, 1
        %s600 = scalar_lea.sflag [#allocation5], %s599
        %s601 = sand.u32 %s59, 1
        %s602 = smul.addr %s601, 512
        %s603 = scalar_lea.vmem [#allocation4], %s602
        %p604 = pneg %p72
        %p605 = pneg %p69
        %s606 = sand.u32 %s37, 1
        %s607 = scalar_lea.sflag [#allocation8], %s606
        %s608 = sand.u32 %s87, 1
        %s609 = smul.addr %s608, 32
        %s610 = scalar_lea.vmem [#allocation7], %s609
        %p611 = pneg %p100
        %p612 = pneg %p97
        %s613 = sand.u32 %s37, 1
        %s614 = scalar_lea.sflag [#allocation8], %s613
        %s615 = sand.u32 %s113, 1
        %s616 = smul.addr %s615, 1024
        %s617 = scalar_lea.vmem [#allocation9], %s616
        %p618 = pneg %p126
        %p619 = pneg %p123
        %s620 = sand.u32 %s37, 1
        %s621 = scalar_lea.sflag [#allocation11], %s620
        %s622 = sand.u32 %s139, 1
        %s623 = smul.addr %s622, 1024
        %s624 = scalar_lea.vmem [#allocation10], %s623
        %p625 = pneg %p152
        %p626 = pneg %p149
        %p627 = pneg %p173
        %p628 = pneg %p170
        %p629 = pneg %p194
        %p630 = pneg %p191
        %p631 = pneg %p215
        %p632 = pneg %p212
        %p633 = pneg %p236
        %p634 = pneg %p233
        %p635 = pneg %p257
        %p636 = pneg %p254
        %p637 = pneg %p278
        %p638 = pneg %p275
        %p639 = pneg %p299
        %p640 = pneg %p296
        %p641 = pneg %p325
        %p642 = pneg %p322
        %p643 = pneg %p351
        %p644 = pneg %p348
        %p645 = scmp.lt.s32.totalorder %s41, 0
        %s646 = scalar_select %p645, %s41, 0
        %s647 = smul.addr %s646, 8
        %s648 = scalar_lea.vmem %s12, %s647
        %s649 = smul.u32 8, %s41
        %s650 = smul.u32 4, %s42
        %s651 = smul.u32 4, %s42
        %s652 = smul.u32 64, %s42
        %s653 = smul.u32 64, %s42
        %p654 = scmp.lt.s32.totalorder %s41, 0
        %s655 = scalar_select %p654, %s41, 0
        %s656 = smul.addr %s655, 8
        %s657 = scalar_lea.vmem %s12, %s656
        %p659 = scmp.eq.s32.totalorder %s42, 0
        // Predicated region
        $region105: #{tpu_custom_call.1} parent=63 // pred_check
          %p660 = pneg %p659
        $region106: #{tpu_custom_call.1} parent=63 // pred_check_branch
          %662 = sbr.rel (%p660) target = $region108
        $region107: #{tpu_custom_call.1} parent=63 // pred_region
          %663 = vst [vmem:[#allocation2] sm:$0xff] 0.0
          %664 = vst [vmem:[#allocation2 + $0x8] sm:$0xff] 0.0
          %665 = vst [vmem:[#allocation2 + $0x10] sm:$0xff] 0.0
          %666 = vst [vmem:[#allocation2 + $0x18] sm:$0xff] 0.0
          %667 = vst [vmem:[#allocation3] sm:$0xff] 0.0
          %668 = vst [vmem:[#allocation3 + $0x8] sm:$0xff] 0.0
          %669 = vst [vmem:[#allocation3 + $0x10] sm:$0xff] 0.0
          %670 = vst [vmem:[#allocation3 + $0x18] sm:$0xff] 0.0
        $region108: #{tpu_custom_call.1} parent=63 // pred_fallthru
          _
        %v671 = vld [vmem:[%s543] sm:$0xff]
        %v672 = vld [vmem:[%s543 + $0x8] sm:$0xff]
        %v673 = vld [vmem:[%s543 + $0x10] sm:$0xff]
        %v674 = vld [vmem:[%s543 + $0x18] sm:$0xff]
        %v675 = vld [vmem:[%s543 + $0x20] sm:$0xff]
        %v676 = vld [vmem:[%s543 + $0x28] sm:$0xff]
        %v677 = vld [vmem:[%s543 + $0x30] sm:$0xff]
        %v678 = vld [vmem:[%s543 + $0x38] sm:$0xff]
        %v679 = vld [vmem:[%s543 + $0x40] sm:$0xff]
        %v680 = vld [vmem:[%s543 + $0x48] sm:$0xff]
        %v681 = vld [vmem:[%s543 + $0x50] sm:$0xff]
        %v682 = vld [vmem:[%s543 + $0x58] sm:$0xff]
        %v683 = vld [vmem:[%s543 + $0x60] sm:$0xff]
        %v684 = vld [vmem:[%s543 + $0x68] sm:$0xff]
        %v685 = vld [vmem:[%s543 + $0x70] sm:$0xff]
        %v686 = vld [vmem:[%s543 + $0x78] sm:$0xff]
        %v687 = vld [vmem:[%s543 + $0x80] sm:$0xff]
        %v688 = vld [vmem:[%s543 + $0x88] sm:$0xff]
        %v689 = vld [vmem:[%s543 + $0x90] sm:$0xff]
        %v690 = vld [vmem:[%s543 + $0x98] sm:$0xff]
        %v691 = vld [vmem:[%s543 + $0xa0] sm:$0xff]
        %v692 = vld [vmem:[%s543 + $0xa8] sm:$0xff]
        %v693 = vld [vmem:[%s543 + $0xb0] sm:$0xff]
        %v694 = vld [vmem:[%s543 + $0xb8] sm:$0xff]
        %v695 = vld [vmem:[%s543 + $0xc0] sm:$0xff]
        %v696 = vld [vmem:[%s543 + $0xc8] sm:$0xff]
        %v697 = vld [vmem:[%s543 + $0xd0] sm:$0xff]
        %v698 = vld [vmem:[%s543 + $0xd8] sm:$0xff]
        %v699 = vld [vmem:[%s543 + $0xe0] sm:$0xff]
        %v700 = vld [vmem:[%s543 + $0xe8] sm:$0xff]
        %v701 = vld [vmem:[%s543 + $0xf0] sm:$0xff]
        %v702 = vld [vmem:[%s543 + $0xf8] sm:$0xff]
        %v703 = vld [vmem:[%s543 + $0x100] sm:$0xff]
        %v704 = vld [vmem:[%s543 + $0x108] sm:$0xff]
        %v705 = vld [vmem:[%s543 + $0x110] sm:$0xff]
        %v706 = vld [vmem:[%s543 + $0x118] sm:$0xff]
        %v707 = vld [vmem:[%s543 + $0x120] sm:$0xff]
        %v708 = vld [vmem:[%s543 + $0x128] sm:$0xff]
        %v709 = vld [vmem:[%s543 + $0x130] sm:$0xff]
        %v710 = vld [vmem:[%s543 + $0x138] sm:$0xff]
        %v711 = vld [vmem:[%s543 + $0x140] sm:$0xff]
        %v712 = vld [vmem:[%s543 + $0x148] sm:$0xff]
        %v713 = vld [vmem:[%s543 + $0x150] sm:$0xff]
        %v714 = vld [vmem:[%s543 + $0x158] sm:$0xff]
        %v715 = vld [vmem:[%s543 + $0x160] sm:$0xff]
        %v716 = vld [vmem:[%s543 + $0x168] sm:$0xff]
        %v717 = vld [vmem:[%s543 + $0x170] sm:$0xff]
        %v718 = vld [vmem:[%s543 + $0x178] sm:$0xff]
        %v719 = vld [vmem:[%s543 + $0x180] sm:$0xff]
        %v720 = vld [vmem:[%s543 + $0x188] sm:$0xff]
        %v721 = vld [vmem:[%s543 + $0x190] sm:$0xff]
        %v722 = vld [vmem:[%s543 + $0x198] sm:$0xff]
        %v723 = vld [vmem:[%s543 + $0x1a0] sm:$0xff]
        %v724 = vld [vmem:[%s543 + $0x1a8] sm:$0xff]
        %v725 = vld [vmem:[%s543 + $0x1b0] sm:$0xff]
        %v726 = vld [vmem:[%s543 + $0x1b8] sm:$0xff]
        %v727 = vld [vmem:[%s543 + $0x1c0] sm:$0xff]
        %v728 = vld [vmem:[%s543 + $0x1c8] sm:$0xff]
        %v729 = vld [vmem:[%s543 + $0x1d0] sm:$0xff]
        %v730 = vld [vmem:[%s543 + $0x1d8] sm:$0xff]
        %v731 = vld [vmem:[%s543 + $0x1e0] sm:$0xff]
        %v732 = vld [vmem:[%s543 + $0x1e8] sm:$0xff]
        %v733 = vld [vmem:[%s543 + $0x1f0] sm:$0xff]
        %v734 = vld [vmem:[%s543 + $0x1f8] sm:$0xff]
        %v735 = vadd.f32 %v671, %v675
        %v736 = vrot.slane %v735, 4
        %v737 = vadd.f32 %v735, %v736
        %v738 = vrot.slane %v737, 2
        %v739 = vadd.f32 %v737, %v738
        %v740 = vrot.slane %v739, 1
        %v741 = vadd.f32 %v739, %v740
        %v742 = vadd.f32 %v672, %v676
        %v743 = vrot.slane %v742, 4
        %v744 = vadd.f32 %v742, %v743
        %v745 = vrot.slane %v744, 2
        %v746 = vadd.f32 %v744, %v745
        %v747 = vrot.slane %v746, 1
        %v748 = vadd.f32 %v746, %v747
        %v749 = vadd.f32 %v673, %v677
        %v750 = vrot.slane %v749, 4
        %v751 = vadd.f32 %v749, %v750
        %v752 = vrot.slane %v751, 2
        %v753 = vadd.f32 %v751, %v752
        %v754 = vrot.slane %v753, 1
        %v755 = vadd.f32 %v753, %v754
        %v756 = vadd.f32 %v674, %v678
        %v757 = vrot.slane %v756, 4
        %v758 = vadd.f32 %v756, %v757
        %v759 = vrot.slane %v758, 2
        %v760 = vadd.f32 %v758, %v759
        %v761 = vrot.slane %v760, 1
        %v762 = vadd.f32 %v760, %v761
        %v763 = vadd.f32 %v679, %v683
        %v764 = vrot.slane %v763, 4
        %v765 = vadd.f32 %v763, %v764
        %v766 = vrot.slane %v765, 2
        %v767 = vadd.f32 %v765, %v766
        %v768 = vrot.slane %v767, 1
        %v769 = vadd.f32 %v767, %v768
        %v770 = vadd.f32 %v680, %v684
        %v771 = vrot.slane %v770, 4
        %v772 = vadd.f32 %v770, %v771
        %v773 = vrot.slane %v772, 2
        %v774 = vadd.f32 %v772, %v773
        %v775 = vrot.slane %v774, 1
        %v776 = vadd.f32 %v774, %v775
        %v777 = vadd.f32 %v681, %v685
        %v778 = vrot.slane %v777, 4
        %v779 = vadd.f32 %v777, %v778
        %v780 = vrot.slane %v779, 2
        %v781 = vadd.f32 %v779, %v780
        %v782 = vrot.slane %v781, 1
        %v783 = vadd.f32 %v781, %v782
        %v784 = vadd.f32 %v682, %v686
        %v785 = vrot.slane %v784, 4
        %v786 = vadd.f32 %v784, %v785
        %v787 = vrot.slane %v786, 2
        %v788 = vadd.f32 %v786, %v787
        %v789 = vrot.slane %v788, 1
        %v790 = vadd.f32 %v788, %v789
        %v791 = vadd.f32 %v687, %v691
        %v792 = vrot.slane %v791, 4
        %v793 = vadd.f32 %v791, %v792
        %v794 = vrot.slane %v793, 2
        %v795 = vadd.f32 %v793, %v794
        %v796 = vrot.slane %v795, 1
        %v797 = vadd.f32 %v795, %v796
        %v798 = vadd.f32 %v688, %v692
        %v799 = vrot.slane %v798, 4
        %v800 = vadd.f32 %v798, %v799
        %v801 = vrot.slane %v800, 2
        %v802 = vadd.f32 %v800, %v801
        %v803 = vrot.slane %v802, 1
        %v804 = vadd.f32 %v802, %v803
        %v805 = vadd.f32 %v689, %v693
        %v806 = vrot.slane %v805, 4
        %v807 = vadd.f32 %v805, %v806
        %v808 = vrot.slane %v807, 2
        %v809 = vadd.f32 %v807, %v808
        %v810 = vrot.slane %v809, 1
        %v811 = vadd.f32 %v809, %v810
        %v812 = vadd.f32 %v690, %v694
        %v813 = vrot.slane %v812, 4
        %v814 = vadd.f32 %v812, %v813
        %v815 = vrot.slane %v814, 2
        %v816 = vadd.f32 %v814, %v815
        %v817 = vrot.slane %v816, 1
        %v818 = vadd.f32 %v816, %v817
        %v819 = vadd.f32 %v695, %v699
        %v820 = vrot.slane %v819, 4
        %v821 = vadd.f32 %v819, %v820
        %v822 = vrot.slane %v821, 2
        %v823 = vadd.f32 %v821, %v822
        %v824 = vrot.slane %v823, 1
        %v825 = vadd.f32 %v823, %v824
        %v826 = vadd.f32 %v696, %v700
        %v827 = vrot.slane %v826, 4
        %v828 = vadd.f32 %v826, %v827
        %v829 = vrot.slane %v828, 2
        %v830 = vadd.f32 %v828, %v829
        %v831 = vrot.slane %v830, 1
        %v832 = vadd.f32 %v830, %v831
        %v833 = vadd.f32 %v697, %v701
        %v834 = vrot.slane %v833, 4
        %v835 = vadd.f32 %v833, %v834
        %v836 = vrot.slane %v835, 2
        %v837 = vadd.f32 %v835, %v836
        %v838 = vrot.slane %v837, 1
        %v839 = vadd.f32 %v837, %v838
        %v840 = vadd.f32 %v698, %v702
        %v841 = vrot.slane %v840, 4
        %v842 = vadd.f32 %v840, %v841
        %v843 = vrot.slane %v842, 2
        %v844 = vadd.f32 %v842, %v843
        %v845 = vrot.slane %v844, 1
        %v846 = vadd.f32 %v844, %v845
        %v847 = vadd.f32 %v703, %v707
        %v848 = vrot.slane %v847, 4
        %v849 = vadd.f32 %v847, %v848
        %v850 = vrot.slane %v849, 2
        %v851 = vadd.f32 %v849, %v850
        %v852 = vrot.slane %v851, 1
        %v853 = vadd.f32 %v851, %v852
        %v854 = vadd.f32 %v704, %v708
        %v855 = vrot.slane %v854, 4
        %v856 = vadd.f32 %v854, %v855
        %v857 = vrot.slane %v856, 2
        %v858 = vadd.f32 %v856, %v857
        %v859 = vrot.slane %v858, 1
        %v860 = vadd.f32 %v858, %v859
        %v861 = vadd.f32 %v705, %v709
        %v862 = vrot.slane %v861, 4
        %v863 = vadd.f32 %v861, %v862
        %v864 = vrot.slane %v863, 2
        %v865 = vadd.f32 %v863, %v864
        %v866 = vrot.slane %v865, 1
        %v867 = vadd.f32 %v865, %v866
        %v868 = vadd.f32 %v706, %v710
        %v869 = vrot.slane %v868, 4
        %v870 = vadd.f32 %v868, %v869
        %v871 = vrot.slane %v870, 2
        %v872 = vadd.f32 %v870, %v871
        %v873 = vrot.slane %v872, 1
        %v874 = vadd.f32 %v872, %v873
        %v875 = vadd.f32 %v711, %v715
        %v876 = vrot.slane %v875, 4
        %v877 = vadd.f32 %v875, %v876
        %v878 = vrot.slane %v877, 2
        %v879 = vadd.f32 %v877, %v878
        %v880 = vrot.slane %v879, 1
        %v881 = vadd.f32 %v879, %v880
        %v882 = vadd.f32 %v712, %v716
        %v883 = vrot.slane %v882, 4
        %v884 = vadd.f32 %v882, %v883
        %v885 = vrot.slane %v884, 2
        %v886 = vadd.f32 %v884, %v885
        %v887 = vrot.slane %v886, 1
        %v888 = vadd.f32 %v886, %v887
        %v889 = vadd.f32 %v713, %v717
        %v890 = vrot.slane %v889, 4
        %v891 = vadd.f32 %v889, %v890
        %v892 = vrot.slane %v891, 2
        %v893 = vadd.f32 %v891, %v892
        %v894 = vrot.slane %v893, 1
        %v895 = vadd.f32 %v893, %v894
        %v896 = vadd.f32 %v714, %v718
        %v897 = vrot.slane %v896, 4
        %v898 = vadd.f32 %v896, %v897
        %v899 = vrot.slane %v898, 2
        %v900 = vadd.f32 %v898, %v899
        %v901 = vrot.slane %v900, 1
        %v902 = vadd.f32 %v900, %v901
        %v903 = vadd.f32 %v719, %v723
        %v904 = vrot.slane %v903, 4
        %v905 = vadd.f32 %v903, %v904
        %v906 = vrot.slane %v905, 2
        %v907 = vadd.f32 %v905, %v906
        %v908 = vrot.slane %v907, 1
        %v909 = vadd.f32 %v907, %v908
        %v910 = vadd.f32 %v720, %v724
        %v911 = vrot.slane %v910, 4
        %v912 = vadd.f32 %v910, %v911
        %v913 = vrot.slane %v912, 2
        %v914 = vadd.f32 %v912, %v913
        %v915 = vrot.slane %v914, 1
        %v916 = vadd.f32 %v914, %v915
        %v917 = vadd.f32 %v721, %v725
        %v918 = vrot.slane %v917, 4
        %v919 = vadd.f32 %v917, %v918
        %v920 = vrot.slane %v919, 2
        %v921 = vadd.f32 %v919, %v920
        %v922 = vrot.slane %v921, 1
        %v923 = vadd.f32 %v921, %v922
        %v924 = vadd.f32 %v722, %v726
        %v925 = vrot.slane %v924, 4
        %v926 = vadd.f32 %v924, %v925
        %v927 = vrot.slane %v926, 2
        %v928 = vadd.f32 %v926, %v927
        %v929 = vrot.slane %v928, 1
        %v930 = vadd.f32 %v928, %v929
        %v931 = vadd.f32 %v727, %v731
        %v932 = vrot.slane %v931, 4
        %v933 = vadd.f32 %v931, %v932
        %v934 = vrot.slane %v933, 2
        %v935 = vadd.f32 %v933, %v934
        %v936 = vrot.slane %v935, 1
        %v937 = vadd.f32 %v935, %v936
        %v938 = vadd.f32 %v728, %v732
        %v939 = vrot.slane %v938, 4
        %v940 = vadd.f32 %v938, %v939
        %v941 = vrot.slane %v940, 2
        %v942 = vadd.f32 %v940, %v941
        %v943 = vrot.slane %v942, 1
        %v944 = vadd.f32 %v942, %v943
        %v945 = vadd.f32 %v729, %v733
        %v946 = vrot.slane %v945, 4
        %v947 = vadd.f32 %v945, %v946
        %v948 = vrot.slane %v947, 2
        %v949 = vadd.f32 %v947, %v948
        %v950 = vrot.slane %v949, 1
        %v951 = vadd.f32 %v949, %v950
        %v952 = vadd.f32 %v730, %v734
        %v953 = vrot.slane %v952, 4
        %v954 = vadd.f32 %v952, %v953
        %v955 = vrot.slane %v954, 2
        %v956 = vadd.f32 %v954, %v955
        %v957 = vrot.slane %v956, 1
        %v958 = vadd.f32 %v956, %v957
        %v959 = vrcp.pop 16.0
        %v960 = vmul.f32 %v741, %v959
        %v961 = vmul.f32 %v748, %v959
        %v962 = vmul.f32 %v755, %v959
        %v963 = vmul.f32 %v762, %v959
        %v964 = vmul.f32 %v769, %v959
        %v965 = vmul.f32 %v776, %v959
        %v966 = vmul.f32 %v783, %v959
        %v967 = vmul.f32 %v790, %v959
        %v968 = vmul.f32 %v797, %v959
        %v969 = vmul.f32 %v804, %v959
        %v970 = vmul.f32 %v811, %v959
        %v971 = vmul.f32 %v818, %v959
        %v972 = vmul.f32 %v825, %v959
        %v973 = vmul.f32 %v832, %v959
        %v974 = vmul.f32 %v839, %v959
        %v975 = vmul.f32 %v846, %v959
        %v976 = vmul.f32 %v853, %v959
        %v977 = vmul.f32 %v860, %v959
        %v978 = vmul.f32 %v867, %v959
        %v979 = vmul.f32 %v874, %v959
        %v980 = vmul.f32 %v881, %v959
        %v981 = vmul.f32 %v888, %v959
        %v982 = vmul.f32 %v895, %v959
        %v983 = vmul.f32 %v902, %v959
        %v984 = vmul.f32 %v909, %v959
        %v985 = vmul.f32 %v916, %v959
        %v986 = vmul.f32 %v923, %v959
        %v987 = vmul.f32 %v930, %v959
        %v988 = vmul.f32 %v937, %v959
        %v989 = vmul.f32 %v944, %v959
        %v990 = vmul.f32 %v951, %v959
        %v991 = vmul.f32 %v958, %v959
        %v992 = vld [vmem:[#allocation2] sm:$0xff]
        %v993 = vld [vmem:[#allocation2 + $0x8] sm:$0xff]
        %v994 = vld [vmem:[#allocation2 + $0x10] sm:$0xff]
        %v995 = vld [vmem:[#allocation2 + $0x18] sm:$0xff]
        %v996 = vpack.c.bf16 %v960, %v960
        %v997 = vpack.c.bf16 %v961, %v961
        %v998 = vpack.c.bf16 %v962, %v962
        %v999 = vpack.c.bf16 %v963, %v963
        %v1000 = vpack.c.bf16 %v964, %v964
        %v1001 = vpack.c.bf16 %v965, %v965
        %v1002 = vpack.c.bf16 %v966, %v966
        %v1003 = vpack.c.bf16 %v967, %v967
        %v1004 = vpack.c.bf16 %v968, %v968
        %v1005 = vpack.c.bf16 %v969, %v969
        %v1006 = vpack.c.bf16 %v970, %v970
        %v1007 = vpack.c.bf16 %v971, %v971
        %v1008 = vpack.c.bf16 %v972, %v972
        %v1009 = vpack.c.bf16 %v973, %v973
        %v1010 = vpack.c.bf16 %v974, %v974
        %v1011 = vpack.c.bf16 %v975, %v975
        %v1012 = vpack.c.bf16 %v976, %v976
        %v1013 = vpack.c.bf16 %v977, %v977
        %v1014 = vpack.c.bf16 %v978, %v978
        %v1015 = vpack.c.bf16 %v979, %v979
        %v1016 = vpack.c.bf16 %v980, %v980
        %v1017 = vpack.c.bf16 %v981, %v981
        %v1018 = vpack.c.bf16 %v982, %v982
        %v1019 = vpack.c.bf16 %v983, %v983
        %v1020 = vpack.c.bf16 %v984, %v984
        %v1021 = vpack.c.bf16 %v985, %v985
        %v1022 = vpack.c.bf16 %v986, %v986
        %v1023 = vpack.c.bf16 %v987, %v987
        %v1024 = vpack.c.bf16 %v988, %v988
        %v1025 = vpack.c.bf16 %v989, %v989
        %v1026 = vpack.c.bf16 %v990, %v990
        %v1027 = vpack.c.bf16 %v991, %v991
        %v1028 = vld [vmem:[%s561] sm:$0xff]
        %v1029 = vld [vmem:[%s561 + $0x8] sm:$0xff]
        %v1030 = vld [vmem:[%s561 + $0x10] sm:$0xff]
        %v1031 = vld [vmem:[%s561 + $0x18] sm:$0xff]
        %v1032 = vld [vmem:[%s561 + $0x20] sm:$0xff]
        %v1033 = vld [vmem:[%s561 + $0x28] sm:$0xff]
        %v1034 = vld [vmem:[%s561 + $0x30] sm:$0xff]
        %v1035 = vld [vmem:[%s561 + $0x38] sm:$0xff]
        %v1036 = vld [vmem:[%s561 + $0x40] sm:$0xff]
        %v1037 = vld [vmem:[%s561 + $0x48] sm:$0xff]
        %v1038 = vld [vmem:[%s561 + $0x50] sm:$0xff]
        %v1039 = vld [vmem:[%s561 + $0x58] sm:$0xff]
        %v1040 = vld [vmem:[%s561 + $0x60] sm:$0xff]
        %v1041 = vld [vmem:[%s561 + $0x68] sm:$0xff]
        %v1042 = vld [vmem:[%s561 + $0x70] sm:$0xff]
        %v1043 = vld [vmem:[%s561 + $0x78] sm:$0xff]
        %v1044 = vld [vmem:[%s561 + $0x80] sm:$0xff]
        %v1045 = vld [vmem:[%s561 + $0x88] sm:$0xff]
        %v1046 = vld [vmem:[%s561 + $0x90] sm:$0xff]
        %v1047 = vld [vmem:[%s561 + $0x98] sm:$0xff]
        %v1048 = vld [vmem:[%s561 + $0xa0] sm:$0xff]
        %v1049 = vld [vmem:[%s561 + $0xa8] sm:$0xff]
        %v1050 = vld [vmem:[%s561 + $0xb0] sm:$0xff]
        %v1051 = vld [vmem:[%s561 + $0xb8] sm:$0xff]
        %v1052 = vld [vmem:[%s561 + $0xc0] sm:$0xff]
        %v1053 = vld [vmem:[%s561 + $0xc8] sm:$0xff]
        %v1054 = vld [vmem:[%s561 + $0xd0] sm:$0xff]
        %v1055 = vld [vmem:[%s561 + $0xd8] sm:$0xff]
        %v1056 = vld [vmem:[%s561 + $0xe0] sm:$0xff]
        %v1057 = vld [vmem:[%s561 + $0xe8] sm:$0xff]
        %v1058 = vld [vmem:[%s561 + $0xf0] sm:$0xff]
        %v1059 = vld [vmem:[%s561 + $0xf8] sm:$0xff]
        %v1060 = vld [vmem:[%s561 + $0x100] sm:$0xff]
        %v1061 = vld [vmem:[%s561 + $0x108] sm:$0xff]
        %v1062 = vld [vmem:[%s561 + $0x110] sm:$0xff]
        %v1063 = vld [vmem:[%s561 + $0x118] sm:$0xff]
        %v1064 = vld [vmem:[%s561 + $0x120] sm:$0xff]
        %v1065 = vld [vmem:[%s561 + $0x128] sm:$0xff]
        %v1066 = vld [vmem:[%s561 + $0x130] sm:$0xff]
        %v1067 = vld [vmem:[%s561 + $0x138] sm:$0xff]
        %v1068 = vld [vmem:[%s561 + $0x140] sm:$0xff]
        %v1069 = vld [vmem:[%s561 + $0x148] sm:$0xff]
        %v1070 = vld [vmem:[%s561 + $0x150] sm:$0xff]
        %v1071 = vld [vmem:[%s561 + $0x158] sm:$0xff]
        %v1072 = vld [vmem:[%s561 + $0x160] sm:$0xff]
        %v1073 = vld [vmem:[%s561 + $0x168] sm:$0xff]
        %v1074 = vld [vmem:[%s561 + $0x170] sm:$0xff]
        %v1075 = vld [vmem:[%s561 + $0x178] sm:$0xff]
        %v1076 = vld [vmem:[%s561 + $0x180] sm:$0xff]
        %v1077 = vld [vmem:[%s561 + $0x188] sm:$0xff]
        %v1078 = vld [vmem:[%s561 + $0x190] sm:$0xff]
        %v1079 = vld [vmem:[%s561 + $0x198] sm:$0xff]
        %v1080 = vld [vmem:[%s561 + $0x1a0] sm:$0xff]
        %v1081 = vld [vmem:[%s561 + $0x1a8] sm:$0xff]
        %v1082 = vld [vmem:[%s561 + $0x1b0] sm:$0xff]
        %v1083 = vld [vmem:[%s561 + $0x1b8] sm:$0xff]
        %v1084 = vld [vmem:[%s561 + $0x1c0] sm:$0xff]
        %v1085 = vld [vmem:[%s561 + $0x1c8] sm:$0xff]
        %v1086 = vld [vmem:[%s561 + $0x1d0] sm:$0xff]
        %v1087 = vld [vmem:[%s561 + $0x1d8] sm:$0xff]
        %v1088 = vld [vmem:[%s561 + $0x1e0] sm:$0xff]
        %v1089 = vld [vmem:[%s561 + $0x1e8] sm:$0xff]
        %v1090 = vld [vmem:[%s561 + $0x1f0] sm:$0xff]
        %v1091 = vld [vmem:[%s561 + $0x1f8] sm:$0xff]
        %v1092 = vld [vmem:[%s561 + $0x200] sm:$0xff]
        %v1093 = vld [vmem:[%s561 + $0x208] sm:$0xff]
        %v1094 = vld [vmem:[%s561 + $0x210] sm:$0xff]
        %v1095 = vld [vmem:[%s561 + $0x218] sm:$0xff]
        %v1096 = vld [vmem:[%s561 + $0x220] sm:$0xff]
        %v1097 = vld [vmem:[%s561 + $0x228] sm:$0xff]
        %v1098 = vld [vmem:[%s561 + $0x230] sm:$0xff]
        %v1099 = vld [vmem:[%s561 + $0x238] sm:$0xff]
        %v1100 = vld [vmem:[%s561 + $0x240] sm:$0xff]
        %v1101 = vld [vmem:[%s561 + $0x248] sm:$0xff]
        %v1102 = vld [vmem:[%s561 + $0x250] sm:$0xff]
        %v1103 = vld [vmem:[%s561 + $0x258] sm:$0xff]
        %v1104 = vld [vmem:[%s561 + $0x260] sm:$0xff]
        %v1105 = vld [vmem:[%s561 + $0x268] sm:$0xff]
        %v1106 = vld [vmem:[%s561 + $0x270] sm:$0xff]
        %v1107 = vld [vmem:[%s561 + $0x278] sm:$0xff]
        %v1108 = vld [vmem:[%s561 + $0x280] sm:$0xff]
        %v1109 = vld [vmem:[%s561 + $0x288] sm:$0xff]
        %v1110 = vld [vmem:[%s561 + $0x290] sm:$0xff]
        %v1111 = vld [vmem:[%s561 + $0x298] sm:$0xff]
        %v1112 = vld [vmem:[%s561 + $0x2a0] sm:$0xff]
        %v1113 = vld [vmem:[%s561 + $0x2a8] sm:$0xff]
        %v1114 = vld [vmem:[%s561 + $0x2b0] sm:$0xff]
        %v1115 = vld [vmem:[%s561 + $0x2b8] sm:$0xff]
        %v1116 = vld [vmem:[%s561 + $0x2c0] sm:$0xff]
        %v1117 = vld [vmem:[%s561 + $0x2c8] sm:$0xff]
        %v1118 = vld [vmem:[%s561 + $0x2d0] sm:$0xff]
        %v1119 = vld [vmem:[%s561 + $0x2d8] sm:$0xff]
        %v1120 = vld [vmem:[%s561 + $0x2e0] sm:$0xff]
        %v1121 = vld [vmem:[%s561 + $0x2e8] sm:$0xff]
        %v1122 = vld [vmem:[%s561 + $0x2f0] sm:$0xff]
        %v1123 = vld [vmem:[%s561 + $0x2f8] sm:$0xff]
        %v1124 = vld [vmem:[%s561 + $0x300] sm:$0xff]
        %v1125 = vld [vmem:[%s561 + $0x308] sm:$0xff]
        %v1126 = vld [vmem:[%s561 + $0x310] sm:$0xff]
        %v1127 = vld [vmem:[%s561 + $0x318] sm:$0xff]
        %v1128 = vld [vmem:[%s561 + $0x320] sm:$0xff]
        %v1129 = vld [vmem:[%s561 + $0x328] sm:$0xff]
        %v1130 = vld [vmem:[%s561 + $0x330] sm:$0xff]
        %v1131 = vld [vmem:[%s561 + $0x338] sm:$0xff]
        %v1132 = vld [vmem:[%s561 + $0x340] sm:$0xff]
        %v1133 = vld [vmem:[%s561 + $0x348] sm:$0xff]
        %v1134 = vld [vmem:[%s561 + $0x350] sm:$0xff]
        %v1135 = vld [vmem:[%s561 + $0x358] sm:$0xff]
        %v1136 = vld [vmem:[%s561 + $0x360] sm:$0xff]
        %v1137 = vld [vmem:[%s561 + $0x368] sm:$0xff]
        %v1138 = vld [vmem:[%s561 + $0x370] sm:$0xff]
        %v1139 = vld [vmem:[%s561 + $0x378] sm:$0xff]
        %v1140 = vld [vmem:[%s561 + $0x380] sm:$0xff]
        %v1141 = vld [vmem:[%s561 + $0x388] sm:$0xff]
        %v1142 = vld [vmem:[%s561 + $0x390] sm:$0xff]
        %v1143 = vld [vmem:[%s561 + $0x398] sm:$0xff]
        %v1144 = vld [vmem:[%s561 + $0x3a0] sm:$0xff]
        %v1145 = vld [vmem:[%s561 + $0x3a8] sm:$0xff]
        %v1146 = vld [vmem:[%s561 + $0x3b0] sm:$0xff]
        %v1147 = vld [vmem:[%s561 + $0x3b8] sm:$0xff]
        %v1148 = vld [vmem:[%s561 + $0x3c0] sm:$0xff]
        %v1149 = vld [vmem:[%s561 + $0x3c8] sm:$0xff]
        %v1150 = vld [vmem:[%s561 + $0x3d0] sm:$0xff]
        %v1151 = vld [vmem:[%s561 + $0x3d8] sm:$0xff]
        %v1152 = vld [vmem:[%s561 + $0x3e0] sm:$0xff]
        %v1153 = vld [vmem:[%s561 + $0x3e8] sm:$0xff]
        %v1154 = vld [vmem:[%s561 + $0x3f0] sm:$0xff]
        %v1155 = vld [vmem:[%s561 + $0x3f8] sm:$0xff]
        %v1188 = vunpack.c.l.b16 %v996
        %v1189 = vunpack.c.l.b16 %v997
        %v1190 = vunpack.c.l.b16 %v998
        %v1191 = vunpack.c.l.b16 %v999
        %v1192 = vunpack.c.l.b16 %v1000
        %v1193 = vunpack.c.l.b16 %v1001
        %v1194 = vunpack.c.l.b16 %v1002
        %v1195 = vunpack.c.l.b16 %v1003
        %v1196 = vunpack.c.l.b16 %v1004
        %v1197 = vunpack.c.l.b16 %v1005
        %v1198 = vunpack.c.l.b16 %v1006
        %v1199 = vunpack.c.l.b16 %v1007
        %v1200 = vunpack.c.l.b16 %v1008
        %v1201 = vunpack.c.l.b16 %v1009
        %v1202 = vunpack.c.l.b16 %v1010
        %v1203 = vunpack.c.l.b16 %v1011
        %v1204 = vunpack.c.l.b16 %v1012
        %v1205 = vunpack.c.l.b16 %v1013
        %v1206 = vunpack.c.l.b16 %v1014
        %v1207 = vunpack.c.l.b16 %v1015
        %v1208 = vunpack.c.l.b16 %v1016
        %v1209 = vunpack.c.l.b16 %v1017
        %v1210 = vunpack.c.l.b16 %v1018
        %v1211 = vunpack.c.l.b16 %v1019
        %v1212 = vunpack.c.l.b16 %v1020
        %v1213 = vunpack.c.l.b16 %v1021
        %v1214 = vunpack.c.l.b16 %v1022
        %v1215 = vunpack.c.l.b16 %v1023
        %v1216 = vunpack.c.l.b16 %v1024
        %v1217 = vunpack.c.l.b16 %v1025
        %v1218 = vunpack.c.l.b16 %v1026
        %v1219 = vunpack.c.l.b16 %v1027
        %vm1220 = vcmask 1041409
        %v1221 = vsel %vm1220, %v1192, %v1188
        %vm1222 = vcmask 1042434
        %v1223 = vsel %vm1222, %v1196, %v1221
        %vm1224 = vcmask 1043459
        %v1225 = vsel %vm1224, %v1200, %v1223
        %vm1226 = vcmask 1044484
        %v1227 = vsel %vm1226, %v1204, %v1225
        %vm1228 = vcmask 1045509
        %v1229 = vsel %vm1228, %v1208, %v1227
        %vm1230 = vcmask 1046534
        %v1231 = vsel %vm1230, %v1212, %v1229
        %vm1232 = vcmask 1047559
        %v1233 = vsel %vm1232, %v1216, %v1231
        %v1234 = vsel %vm1220, %v1193, %v1189
        %v1235 = vsel %vm1222, %v1197, %v1234
        %v1236 = vsel %vm1224, %v1201, %v1235
        %v1237 = vsel %vm1226, %v1205, %v1236
        %v1238 = vsel %vm1228, %v1209, %v1237
        %v1239 = vsel %vm1230, %v1213, %v1238
        %v1240 = vsel %vm1232, %v1217, %v1239
        %v1241 = vsel %vm1220, %v1194, %v1190
        %v1242 = vsel %vm1222, %v1198, %v1241
        %v1243 = vsel %vm1224, %v1202, %v1242
        %v1244 = vsel %vm1226, %v1206, %v1243
        %v1245 = vsel %vm1228, %v1210, %v1244
        %v1246 = vsel %vm1230, %v1214, %v1245
        %v1247 = vsel %vm1232, %v1218, %v1246
        %v1248 = vsel %vm1220, %v1195, %v1191
        %v1249 = vsel %vm1222, %v1199, %v1248
        %v1250 = vsel %vm1224, %v1203, %v1249
        %v1251 = vsel %vm1226, %v1207, %v1250
        %v1252 = vsel %vm1228, %v1211, %v1251
        %v1253 = vsel %vm1230, %v1215, %v1252
        %v1254 = vsel %vm1232, %v1219, %v1253
        %v1255 = vpack.c.b16 %v1233, %v1233
        %v1256 = vpack.c.b16 %v1240, %v1240
        %v1257 = vpack.c.b16 %v1247, %v1247
        %v1258 = vpack.c.b16 %v1254, %v1254
        %v1391 = vunpack.c.l.b16 %v1028
        %v1392 = vunpack.c.h.b16 %v1028
        %v1393 = vunpack.c.l.b16 %v1029
        %v1394 = vunpack.c.h.b16 %v1029
        %v1395 = vunpack.c.l.b16 %v1030
        %v1396 = vunpack.c.h.b16 %v1030
        %v1397 = vunpack.c.l.b16 %v1031
        %v1398 = vunpack.c.h.b16 %v1031
        %v1399 = vunpack.c.l.b16 %v1032
        %v1400 = vunpack.c.h.b16 %v1032
        %v1401 = vunpack.c.l.b16 %v1033
        %v1402 = vunpack.c.h.b16 %v1033
        %v1403 = vunpack.c.l.b16 %v1034
        %v1404 = vunpack.c.h.b16 %v1034
        %v1405 = vunpack.c.l.b16 %v1035
        %v1406 = vunpack.c.h.b16 %v1035
        %v1407 = vunpack.c.l.b16 %v1036
        %v1408 = vunpack.c.h.b16 %v1036
        %v1409 = vunpack.c.l.b16 %v1037
        %v1410 = vunpack.c.h.b16 %v1037
        %v1411 = vunpack.c.l.b16 %v1038
        %v1412 = vunpack.c.h.b16 %v1038
        %v1413 = vunpack.c.l.b16 %v1039
        %v1414 = vunpack.c.h.b16 %v1039
        %v1415 = vunpack.c.l.b16 %v1040
        %v1416 = vunpack.c.h.b16 %v1040
        %v1417 = vunpack.c.l.b16 %v1041
        %v1418 = vunpack.c.h.b16 %v1041
        %v1419 = vunpack.c.l.b16 %v1042
        %v1420 = vunpack.c.h.b16 %v1042
        %v1421 = vunpack.c.l.b16 %v1043
        %v1422 = vunpack.c.h.b16 %v1043
        %v1423 = vunpack.c.l.b16 %v1044
        %v1424 = vunpack.c.h.b16 %v1044
        %v1425 = vunpack.c.l.b16 %v1045
        %v1426 = vunpack.c.h.b16 %v1045
        %v1427 = vunpack.c.l.b16 %v1046
        %v1428 = vunpack.c.h.b16 %v1046
        %v1429 = vunpack.c.l.b16 %v1047
        %v1430 = vunpack.c.h.b16 %v1047
        %v1431 = vunpack.c.l.b16 %v1048
        %v1432 = vunpack.c.h.b16 %v1048
        %v1433 = vunpack.c.l.b16 %v1049
        %v1434 = vunpack.c.h.b16 %v1049
        %v1435 = vunpack.c.l.b16 %v1050
        %v1436 = vunpack.c.h.b16 %v1050
        %v1437 = vunpack.c.l.b16 %v1051
        %v1438 = vunpack.c.h.b16 %v1051
        %v1439 = vunpack.c.l.b16 %v1052
        %v1440 = vunpack.c.h.b16 %v1052
        %v1441 = vunpack.c.l.b16 %v1053
        %v1442 = vunpack.c.h.b16 %v1053
        %v1443 = vunpack.c.l.b16 %v1054
        %v1444 = vunpack.c.h.b16 %v1054
        %v1445 = vunpack.c.l.b16 %v1055
        %v1446 = vunpack.c.h.b16 %v1055
        %v1447 = vunpack.c.l.b16 %v1056
        %v1448 = vunpack.c.h.b16 %v1056
        %v1449 = vunpack.c.l.b16 %v1057
        %v1450 = vunpack.c.h.b16 %v1057
        %v1451 = vunpack.c.l.b16 %v1058
        %v1452 = vunpack.c.h.b16 %v1058
        %v1453 = vunpack.c.l.b16 %v1059
        %v1454 = vunpack.c.h.b16 %v1059
        %v1455 = vunpack.c.l.b16 %v1060
        %v1456 = vunpack.c.h.b16 %v1060
        %v1457 = vunpack.c.l.b16 %v1061
        %v1458 = vunpack.c.h.b16 %v1061
        %v1459 = vunpack.c.l.b16 %v1062
        %v1460 = vunpack.c.h.b16 %v1062
        %v1461 = vunpack.c.l.b16 %v1063
        %v1462 = vunpack.c.h.b16 %v1063
        %v1463 = vunpack.c.l.b16 %v1064
        %v1464 = vunpack.c.h.b16 %v1064
        %v1465 = vunpack.c.l.b16 %v1065
        %v1466 = vunpack.c.h.b16 %v1065
        %v1467 = vunpack.c.l.b16 %v1066
        %v1468 = vunpack.c.h.b16 %v1066
        %v1469 = vunpack.c.l.b16 %v1067
        %v1470 = vunpack.c.h.b16 %v1067
        %v1471 = vunpack.c.l.b16 %v1068
        %v1472 = vunpack.c.h.b16 %v1068
        %v1473 = vunpack.c.l.b16 %v1069
        %v1474 = vunpack.c.h.b16 %v1069
        %v1475 = vunpack.c.l.b16 %v1070
        %v1476 = vunpack.c.h.b16 %v1070
        %v1477 = vunpack.c.l.b16 %v1071
        %v1478 = vunpack.c.h.b16 %v1071
        %v1479 = vunpack.c.l.b16 %v1072
        %v1480 = vunpack.c.h.b16 %v1072
        %v1481 = vunpack.c.l.b16 %v1073
        %v1482 = vunpack.c.h.b16 %v1073
        %v1483 = vunpack.c.l.b16 %v1074
        %v1484 = vunpack.c.h.b16 %v1074
        %v1485 = vunpack.c.l.b16 %v1075
        %v1486 = vunpack.c.h.b16 %v1075
        %v1487 = vunpack.c.l.b16 %v1076
        %v1488 = vunpack.c.h.b16 %v1076
        %v1489 = vunpack.c.l.b16 %v1077
        %v1490 = vunpack.c.h.b16 %v1077
        %v1491 = vunpack.c.l.b16 %v1078
        %v1492 = vunpack.c.h.b16 %v1078
        %v1493 = vunpack.c.l.b16 %v1079
        %v1494 = vunpack.c.h.b16 %v1079
        %v1495 = vunpack.c.l.b16 %v1080
        %v1496 = vunpack.c.h.b16 %v1080
        %v1497 = vunpack.c.l.b16 %v1081
        %v1498 = vunpack.c.h.b16 %v1081
        %v1499 = vunpack.c.l.b16 %v1082
        %v1500 = vunpack.c.h.b16 %v1082
        %v1501 = vunpack.c.l.b16 %v1083
        %v1502 = vunpack.c.h.b16 %v1083
        %v1503 = vunpack.c.l.b16 %v1084
        %v1504 = vunpack.c.h.b16 %v1084
        %v1505 = vunpack.c.l.b16 %v1085
        %v1506 = vunpack.c.h.b16 %v1085
        %v1507 = vunpack.c.l.b16 %v1086
        %v1508 = vunpack.c.h.b16 %v1086
        %v1509 = vunpack.c.l.b16 %v1087
        %v1510 = vunpack.c.h.b16 %v1087
        %v1511 = vunpack.c.l.b16 %v1088
        %v1512 = vunpack.c.h.b16 %v1088
        %v1513 = vunpack.c.l.b16 %v1089
        %v1514 = vunpack.c.h.b16 %v1089
        %v1515 = vunpack.c.l.b16 %v1090
        %v1516 = vunpack.c.h.b16 %v1090
        %v1517 = vunpack.c.l.b16 %v1091
        %v1518 = vunpack.c.h.b16 %v1091
        %v1519 = vunpack.c.l.b16 %v1092
        %v1520 = vunpack.c.h.b16 %v1092
        %v1521 = vunpack.c.l.b16 %v1093
        %v1522 = vunpack.c.h.b16 %v1093
        %v1523 = vunpack.c.l.b16 %v1094
        %v1524 = vunpack.c.h.b16 %v1094
        %v1525 = vunpack.c.l.b16 %v1095
        %v1526 = vunpack.c.h.b16 %v1095
        %v1527 = vunpack.c.l.b16 %v1096
        %v1528 = vunpack.c.h.b16 %v1096
        %v1529 = vunpack.c.l.b16 %v1097
        %v1530 = vunpack.c.h.b16 %v1097
        %v1531 = vunpack.c.l.b16 %v1098
        %v1532 = vunpack.c.h.b16 %v1098
        %v1533 = vunpack.c.l.b16 %v1099
        %v1534 = vunpack.c.h.b16 %v1099
        %v1535 = vunpack.c.l.b16 %v1100
        %v1536 = vunpack.c.h.b16 %v1100
        %v1537 = vunpack.c.l.b16 %v1101
        %v1538 = vunpack.c.h.b16 %v1101
        %v1539 = vunpack.c.l.b16 %v1102
        %v1540 = vunpack.c.h.b16 %v1102
        %v1541 = vunpack.c.l.b16 %v1103
        %v1542 = vunpack.c.h.b16 %v1103
        %v1543 = vunpack.c.l.b16 %v1104
        %v1544 = vunpack.c.h.b16 %v1104
        %v1545 = vunpack.c.l.b16 %v1105
        %v1546 = vunpack.c.h.b16 %v1105
        %v1547 = vunpack.c.l.b16 %v1106
        %v1548 = vunpack.c.h.b16 %v1106
        %v1549 = vunpack.c.l.b16 %v1107
        %v1550 = vunpack.c.h.b16 %v1107
        %v1551 = vunpack.c.l.b16 %v1108
        %v1552 = vunpack.c.h.b16 %v1108
        %v1553 = vunpack.c.l.b16 %v1109
        %v1554 = vunpack.c.h.b16 %v1109
        %v1555 = vunpack.c.l.b16 %v1110
        %v1556 = vunpack.c.h.b16 %v1110
        %v1557 = vunpack.c.l.b16 %v1111
        %v1558 = vunpack.c.h.b16 %v1111
        %v1559 = vunpack.c.l.b16 %v1112
        %v1560 = vunpack.c.h.b16 %v1112
        %v1561 = vunpack.c.l.b16 %v1113
        %v1562 = vunpack.c.h.b16 %v1113
        %v1563 = vunpack.c.l.b16 %v1114
        %v1564 = vunpack.c.h.b16 %v1114
        %v1565 = vunpack.c.l.b16 %v1115
        %v1566 = vunpack.c.h.b16 %v1115
        %v1567 = vunpack.c.l.b16 %v1116
        %v1568 = vunpack.c.h.b16 %v1116
        %v1569 = vunpack.c.l.b16 %v1117
        %v1570 = vunpack.c.h.b16 %v1117
        %v1571 = vunpack.c.l.b16 %v1118
        %v1572 = vunpack.c.h.b16 %v1118
        %v1573 = vunpack.c.l.b16 %v1119
        %v1574 = vunpack.c.h.b16 %v1119
        %v1575 = vunpack.c.l.b16 %v1120
        %v1576 = vunpack.c.h.b16 %v1120
        %v1577 = vunpack.c.l.b16 %v1121
        %v1578 = vunpack.c.h.b16 %v1121
        %v1579 = vunpack.c.l.b16 %v1122
        %v1580 = vunpack.c.h.b16 %v1122
        %v1581 = vunpack.c.l.b16 %v1123
        %v1582 = vunpack.c.h.b16 %v1123
        %v1583 = vunpack.c.l.b16 %v1124
        %v1584 = vunpack.c.h.b16 %v1124
        %v1585 = vunpack.c.l.b16 %v1125
        %v1586 = vunpack.c.h.b16 %v1125
        %v1587 = vunpack.c.l.b16 %v1126
        %v1588 = vunpack.c.h.b16 %v1126
        %v1589 = vunpack.c.l.b16 %v1127
        %v1590 = vunpack.c.h.b16 %v1127
        %v1591 = vunpack.c.l.b16 %v1128
        %v1592 = vunpack.c.h.b16 %v1128
        %v1593 = vunpack.c.l.b16 %v1129
        %v1594 = vunpack.c.h.b16 %v1129
        %v1595 = vunpack.c.l.b16 %v1130
        %v1596 = vunpack.c.h.b16 %v1130
        %v1597 = vunpack.c.l.b16 %v1131
        %v1598 = vunpack.c.h.b16 %v1131
        %v1599 = vunpack.c.l.b16 %v1132
        %v1600 = vunpack.c.h.b16 %v1132
        %v1601 = vunpack.c.l.b16 %v1133
        %v1602 = vunpack.c.h.b16 %v1133
        %v1603 = vunpack.c.l.b16 %v1134
        %v1604 = vunpack.c.h.b16 %v1134
        %v1605 = vunpack.c.l.b16 %v1135
        %v1606 = vunpack.c.h.b16 %v1135
        %v1607 = vunpack.c.l.b16 %v1136
        %v1608 = vunpack.c.h.b16 %v1136
        %v1609 = vunpack.c.l.b16 %v1137
        %v1610 = vunpack.c.h.b16 %v1137
        %v1611 = vunpack.c.l.b16 %v1138
        %v1612 = vunpack.c.h.b16 %v1138
        %v1613 = vunpack.c.l.b16 %v1139
        %v1614 = vunpack.c.h.b16 %v1139
        %v1615 = vunpack.c.l.b16 %v1140
        %v1616 = vunpack.c.h.b16 %v1140
        %v1617 = vunpack.c.l.b16 %v1141
        %v1618 = vunpack.c.h.b16 %v1141
        %v1619 = vunpack.c.l.b16 %v1142
        %v1620 = vunpack.c.h.b16 %v1142
        %v1621 = vunpack.c.l.b16 %v1143
        %v1622 = vunpack.c.h.b16 %v1143
        %v1623 = vunpack.c.l.b16 %v1144
        %v1624 = vunpack.c.h.b16 %v1144
        %v1625 = vunpack.c.l.b16 %v1145
        %v1626 = vunpack.c.h.b16 %v1145
        %v1627 = vunpack.c.l.b16 %v1146
        %v1628 = vunpack.c.h.b16 %v1146
        %v1629 = vunpack.c.l.b16 %v1147
        %v1630 = vunpack.c.h.b16 %v1147
        %v1631 = vunpack.c.l.b16 %v1148
        %v1632 = vunpack.c.h.b16 %v1148
        %v1633 = vunpack.c.l.b16 %v1149
        %v1634 = vunpack.c.h.b16 %v1149
        %v1635 = vunpack.c.l.b16 %v1150
        %v1636 = vunpack.c.h.b16 %v1150
        %v1637 = vunpack.c.l.b16 %v1151
        %v1638 = vunpack.c.h.b16 %v1151
        %v1639 = vunpack.c.l.b16 %v1152
        %v1640 = vunpack.c.h.b16 %v1152
        %v1641 = vunpack.c.l.b16 %v1153
        %v1642 = vunpack.c.h.b16 %v1153
        %v1643 = vunpack.c.l.b16 %v1154
        %v1644 = vunpack.c.h.b16 %v1154
        %v1645 = vunpack.c.l.b16 %v1155
        %v1646 = vunpack.c.h.b16 %v1155
        %v1647 = vpack.c.b16 %v1395, %v1391
        %v1648 = vpack.c.b16 %v1396, %v1392
        %v1649 = vpack.c.b16 %v1397, %v1393
        %v1650 = vpack.c.b16 %v1398, %v1394
        %v1651 = vpack.c.b16 %v1403, %v1399
        %v1652 = vpack.c.b16 %v1404, %v1400
        %v1653 = vpack.c.b16 %v1405, %v1401
        %v1654 = vpack.c.b16 %v1406, %v1402
        %v1655 = vpack.c.b16 %v1411, %v1407
        %v1656 = vpack.c.b16 %v1412, %v1408
        %v1657 = vpack.c.b16 %v1413, %v1409
        %v1658 = vpack.c.b16 %v1414, %v1410
        %v1659 = vpack.c.b16 %v1419, %v1415
        %v1660 = vpack.c.b16 %v1420, %v1416
        %v1661 = vpack.c.b16 %v1421, %v1417
        %v1662 = vpack.c.b16 %v1422, %v1418
        %v1663 = vpack.c.b16 %v1427, %v1423
        %v1664 = vpack.c.b16 %v1428, %v1424
        %v1665 = vpack.c.b16 %v1429, %v1425
        %v1666 = vpack.c.b16 %v1430, %v1426
        %v1667 = vpack.c.b16 %v1435, %v1431
        %v1668 = vpack.c.b16 %v1436, %v1432
        %v1669 = vpack.c.b16 %v1437, %v1433
        %v1670 = vpack.c.b16 %v1438, %v1434
        %v1671 = vpack.c.b16 %v1443, %v1439
        %v1672 = vpack.c.b16 %v1444, %v1440
        %v1673 = vpack.c.b16 %v1445, %v1441
        %v1674 = vpack.c.b16 %v1446, %v1442
        %v1675 = vpack.c.b16 %v1451, %v1447
        %v1676 = vpack.c.b16 %v1452, %v1448
        %v1677 = vpack.c.b16 %v1453, %v1449
        %v1678 = vpack.c.b16 %v1454, %v1450
        %v1679 = vpack.c.b16 %v1459, %v1455
        %v1680 = vpack.c.b16 %v1460, %v1456
        %v1681 = vpack.c.b16 %v1461, %v1457
        %v1682 = vpack.c.b16 %v1462, %v1458
        %v1683 = vpack.c.b16 %v1467, %v1463
        %v1684 = vpack.c.b16 %v1468, %v1464
        %v1685 = vpack.c.b16 %v1469, %v1465
        %v1686 = vpack.c.b16 %v1470, %v1466
        %v1687 = vpack.c.b16 %v1475, %v1471
        %v1688 = vpack.c.b16 %v1476, %v1472
        %v1689 = vpack.c.b16 %v1477, %v1473
        %v1690 = vpack.c.b16 %v1478, %v1474
        %v1691 = vpack.c.b16 %v1483, %v1479
        %v1692 = vpack.c.b16 %v1484, %v1480
        %v1693 = vpack.c.b16 %v1485, %v1481
        %v1694 = vpack.c.b16 %v1486, %v1482
        %v1695 = vpack.c.b16 %v1491, %v1487
        %v1696 = vpack.c.b16 %v1492, %v1488
        %v1697 = vpack.c.b16 %v1493, %v1489
        %v1698 = vpack.c.b16 %v1494, %v1490
        %v1699 = vpack.c.b16 %v1499, %v1495
        %v1700 = vpack.c.b16 %v1500, %v1496
        %v1701 = vpack.c.b16 %v1501, %v1497
        %v1702 = vpack.c.b16 %v1502, %v1498
        %v1703 = vpack.c.b16 %v1507, %v1503
        %v1704 = vpack.c.b16 %v1508, %v1504
        %v1705 = vpack.c.b16 %v1509, %v1505
        %v1706 = vpack.c.b16 %v1510, %v1506
        %v1707 = vpack.c.b16 %v1515, %v1511
        %v1708 = vpack.c.b16 %v1516, %v1512
        %v1709 = vpack.c.b16 %v1517, %v1513
        %v1710 = vpack.c.b16 %v1518, %v1514
        %v1711 = vpack.c.b16 %v1523, %v1519
        %v1712 = vpack.c.b16 %v1524, %v1520
        %v1713 = vpack.c.b16 %v1525, %v1521
        %v1714 = vpack.c.b16 %v1526, %v1522
        %v1715 = vpack.c.b16 %v1531, %v1527
        %v1716 = vpack.c.b16 %v1532, %v1528
        %v1717 = vpack.c.b16 %v1533, %v1529
        %v1718 = vpack.c.b16 %v1534, %v1530
        %v1719 = vpack.c.b16 %v1539, %v1535
        %v1720 = vpack.c.b16 %v1540, %v1536
        %v1721 = vpack.c.b16 %v1541, %v1537
        %v1722 = vpack.c.b16 %v1542, %v1538
        %v1723 = vpack.c.b16 %v1547, %v1543
        %v1724 = vpack.c.b16 %v1548, %v1544
        %v1725 = vpack.c.b16 %v1549, %v1545
        %v1726 = vpack.c.b16 %v1550, %v1546
        %v1727 = vpack.c.b16 %v1555, %v1551
        %v1728 = vpack.c.b16 %v1556, %v1552
        %v1729 = vpack.c.b16 %v1557, %v1553
        %v1730 = vpack.c.b16 %v1558, %v1554
        %v1731 = vpack.c.b16 %v1563, %v1559
        %v1732 = vpack.c.b16 %v1564, %v1560
        %v1733 = vpack.c.b16 %v1565, %v1561
        %v1734 = vpack.c.b16 %v1566, %v1562
        %v1735 = vpack.c.b16 %v1571, %v1567
        %v1736 = vpack.c.b16 %v1572, %v1568
        %v1737 = vpack.c.b16 %v1573, %v1569
        %v1738 = vpack.c.b16 %v1574, %v1570
        %v1739 = vpack.c.b16 %v1579, %v1575
        %v1740 = vpack.c.b16 %v1580, %v1576
        %v1741 = vpack.c.b16 %v1581, %v1577
        %v1742 = vpack.c.b16 %v1582, %v1578
        %v1743 = vpack.c.b16 %v1587, %v1583
        %v1744 = vpack.c.b16 %v1588, %v1584
        %v1745 = vpack.c.b16 %v1589, %v1585
        %v1746 = vpack.c.b16 %v1590, %v1586
        %v1747 = vpack.c.b16 %v1595, %v1591
        %v1748 = vpack.c.b16 %v1596, %v1592
        %v1749 = vpack.c.b16 %v1597, %v1593
        %v1750 = vpack.c.b16 %v1598, %v1594
        %v1751 = vpack.c.b16 %v1603, %v1599
        %v1752 = vpack.c.b16 %v1604, %v1600
        %v1753 = vpack.c.b16 %v1605, %v1601
        %v1754 = vpack.c.b16 %v1606, %v1602
        %v1755 = vpack.c.b16 %v1611, %v1607
        %v1756 = vpack.c.b16 %v1612, %v1608
        %v1757 = vpack.c.b16 %v1613, %v1609
        %v1758 = vpack.c.b16 %v1614, %v1610
        %v1759 = vpack.c.b16 %v1619, %v1615
        %v1760 = vpack.c.b16 %v1620, %v1616
        %v1761 = vpack.c.b16 %v1621, %v1617
        %v1762 = vpack.c.b16 %v1622, %v1618
        %v1763 = vpack.c.b16 %v1627, %v1623
        %v1764 = vpack.c.b16 %v1628, %v1624
        %v1765 = vpack.c.b16 %v1629, %v1625
        %v1766 = vpack.c.b16 %v1630, %v1626
        %v1767 = vpack.c.b16 %v1635, %v1631
        %v1768 = vpack.c.b16 %v1636, %v1632
        %v1769 = vpack.c.b16 %v1637, %v1633
        %v1770 = vpack.c.b16 %v1638, %v1634
        %v1771 = vpack.c.b16 %v1643, %v1639
        %v1772 = vpack.c.b16 %v1644, %v1640
        %v1773 = vpack.c.b16 %v1645, %v1641
        %v1774 = vpack.c.b16 %v1646, %v1642
        %1903 = vmatprep.subr.bf16.mxu0 %v1648
        %1904 = vmatpush1.bf16.msra.mxu0 %v1647
        %1905 = vmatprep.subr.bf16.mxu0 %v1652
        %1906 = vmatpush1.bf16.msra.mxu0 %v1651
        %1907 = vmatprep.subr.bf16.mxu0 %v1656
        %1908 = vmatpush1.bf16.msra.mxu0 %v1655
        %1909 = vmatprep.subr.bf16.mxu0 %v1660
        %1910 = vmatpush1.bf16.msra.mxu0 %v1659
        %1911 = vmatprep.subr.bf16.mxu0 %v1664
        %1912 = vmatpush1.bf16.msra.mxu0 %v1663
        %1913 = vmatprep.subr.bf16.mxu0 %v1668
        %1914 = vmatpush1.bf16.msra.mxu0 %v1667
        %1915 = vmatprep.subr.bf16.mxu0 %v1672
        %1916 = vmatpush1.bf16.msra.mxu0 %v1671
        %1917 = vmatprep.subr.bf16.mxu0 %v1676
        %1918 = vmatpush1.bf16.msra.mxu0 %v1675
        %1919 = vmatprep.subr.bf16.mxu0 %v1680
        %1920 = vmatpush1.bf16.msra.mxu0 %v1679
        %1921 = vmatprep.subr.bf16.mxu0 %v1684
        %1922 = vmatpush1.bf16.msra.mxu0 %v1683
        %1923 = vmatprep.subr.bf16.mxu0 %v1688
        %1924 = vmatpush1.bf16.msra.mxu0 %v1687
        %1925 = vmatprep.subr.bf16.mxu0 %v1692
        %1926 = vmatpush1.bf16.msra.mxu0 %v1691
        %1927 = vmatprep.subr.bf16.mxu0 %v1696
        %1928 = vmatpush1.bf16.msra.mxu0 %v1695
        %1929 = vmatprep.subr.bf16.mxu0 %v1700
        %1930 = vmatpush1.bf16.msra.mxu0 %v1699
        %1931 = vmatprep.subr.bf16.mxu0 %v1704
        %1932 = vmatpush1.bf16.msra.mxu0 %v1703
        %1933 = vmatprep.subr.bf16.mxu0 %v1708
        %1934 = vmatpush1.bf16.msra.mxu0 %v1707
        %1935 = vmatprep.mubr.bf16.mxu0 %v1256
        %1936 = vmatmul.mubr.bf16.gmra.mrb[0].mxu0 %v1255
        %v1937 = vpop.f32.mrb[0].mxu0
        %v1938 = vadd.f32 0.0, %v1937
        %v1939 = vpop.f32.mrb[0].mxu0
        %v1940 = vadd.f32 0.0, %v1939
        %v1941 = vpop.f32.mrb[0].mxu0
        %v1942 = vpop.f32.mrb[0].mxu0
        %1943 = vdwg.mxu0
        %1944 = vmatprep.subr.bf16.mxu0 %v1712
        %1945 = vmatpush1.bf16.msra.mxu0 %v1711
        %1946 = vmatprep.subr.bf16.mxu0 %v1716
        %1947 = vmatpush1.bf16.msra.mxu0 %v1715
        %1948 = vmatprep.subr.bf16.mxu0 %v1720
        %1949 = vmatpush1.bf16.msra.mxu0 %v1719
        %1950 = vmatprep.subr.bf16.mxu0 %v1724
        %1951 = vmatpush1.bf16.msra.mxu0 %v1723
        %1952 = vmatprep.subr.bf16.mxu0 %v1728
        %1953 = vmatpush1.bf16.msra.mxu0 %v1727
        %1954 = vmatprep.subr.bf16.mxu0 %v1732
        %1955 = vmatpush1.bf16.msra.mxu0 %v1731
        %1956 = vmatprep.subr.bf16.mxu0 %v1736
        %1957 = vmatpush1.bf16.msra.mxu0 %v1735
        %1958 = vmatprep.subr.bf16.mxu0 %v1740
        %1959 = vmatpush1.bf16.msra.mxu0 %v1739
        %1960 = vmatprep.subr.bf16.mxu0 %v1744
        %1961 = vmatpush1.bf16.msra.mxu0 %v1743
        %1962 = vmatprep.subr.bf16.mxu0 %v1748
        %1963 = vmatpush1.bf16.msra.mxu0 %v1747
        %1964 = vmatprep.subr.bf16.mxu0 %v1752
        %1965 = vmatpush1.bf16.msra.mxu0 %v1751
        %1966 = vmatprep.subr.bf16.mxu0 %v1756
        %1967 = vmatpush1.bf16.msra.mxu0 %v1755
        %1968 = vmatprep.subr.bf16.mxu0 %v1760
        %1969 = vmatpush1.bf16.msra.mxu0 %v1759
        %1970 = vmatprep.subr.bf16.mxu0 %v1764
        %1971 = vmatpush1.bf16.msra.mxu0 %v1763
        %1972 = vmatprep.subr.bf16.mxu0 %v1768
        %1973 = vmatpush1.bf16.msra.mxu0 %v1767
        %1974 = vmatprep.subr.bf16.mxu0 %v1772
        %1975 = vmatpush1.bf16.msra.mxu0 %v1771
        %1976 = vmatprep.mubr.bf16.mxu0 %v1258
        %1977 = vmatmul.mubr.bf16.gmra.mrb[0].mxu0 %v1257
        %v1978 = vpop.f32.mrb[0].mxu0
        %v1979 = vadd.f32 %v1938, %v1978
        %v1980 = vpop.f32.mrb[0].mxu0
        %v1981 = vadd.f32 %v1940, %v1980
        %v1982 = vpop.f32.mrb[0].mxu0
        %v1983 = vpop.f32.mrb[0].mxu0
        %1984 = vdwg.mxu0
        %1985 = vmatprep.subr.bf16.mxu0 %v1650
        %1986 = vmatpush1.bf16.msra.mxu0 %v1649
        %1987 = vmatprep.subr.bf16.mxu0 %v1654
        %1988 = vmatpush1.bf16.msra.mxu0 %v1653
        %1989 = vmatprep.subr.bf16.mxu0 %v1658
        %1990 = vmatpush1.bf16.msra.mxu0 %v1657
        %1991 = vmatprep.subr.bf16.mxu0 %v1662
        %1992 = vmatpush1.bf16.msra.mxu0 %v1661
        %1993 = vmatprep.subr.bf16.mxu0 %v1666
        %1994 = vmatpush1.bf16.msra.mxu0 %v1665
        %1995 = vmatprep.subr.bf16.mxu0 %v1670
        %1996 = vmatpush1.bf16.msra.mxu0 %v1669
        %1997 = vmatprep.subr.bf16.mxu0 %v1674
        %1998 = vmatpush1.bf16.msra.mxu0 %v1673
        %1999 = vmatprep.subr.bf16.mxu0 %v1678
        %2000 = vmatpush1.bf16.msra.mxu0 %v1677
        %2001 = vmatprep.subr.bf16.mxu0 %v1682
        %2002 = vmatpush1.bf16.msra.mxu0 %v1681
        %2003 = vmatprep.subr.bf16.mxu0 %v1686
        %2004 = vmatpush1.bf16.msra.mxu0 %v1685
        %2005 = vmatprep.subr.bf16.mxu0 %v1690
        %2006 = vmatpush1.bf16.msra.mxu0 %v1689
        %2007 = vmatprep.subr.bf16.mxu0 %v1694
        %2008 = vmatpush1.bf16.msra.mxu0 %v1693
        %2009 = vmatprep.subr.bf16.mxu0 %v1698
        %2010 = vmatpush1.bf16.msra.mxu0 %v1697
        %2011 = vmatprep.subr.bf16.mxu0 %v1702
        %2012 = vmatpush1.bf16.msra.mxu0 %v1701
        %2013 = vmatprep.subr.bf16.mxu0 %v1706
        %2014 = vmatpush1.bf16.msra.mxu0 %v1705
        %2015 = vmatprep.subr.bf16.mxu0 %v1710
        %2016 = vmatpush1.bf16.msra.mxu0 %v1709
        %2017 = vmatprep.mubr.bf16.mxu0 %v1256
        %2018 = vmatmul.mubr.bf16.gmra.mrb[0].mxu0 %v1255
        %v2019 = vpop.f32.mrb[0].mxu0
        %v2020 = vadd.f32 0.0, %v2019
        %v2021 = vpop.f32.mrb[0].mxu0
        %v2022 = vadd.f32 0.0, %v2021
        %v2023 = vpop.f32.mrb[0].mxu0
        %v2024 = vpop.f32.mrb[0].mxu0
        %2025 = vdwg.mxu0
        %2026 = vmatprep.subr.bf16.mxu0 %v1714
        %2027 = vmatpush1.bf16.msra.mxu0 %v1713
        %2028 = vmatprep.subr.bf16.mxu0 %v1718
        %2029 = vmatpush1.bf16.msra.mxu0 %v1717
        %2030 = vmatprep.subr.bf16.mxu0 %v1722
        %2031 = vmatpush1.bf16.msra.mxu0 %v1721
        %2032 = vmatprep.subr.bf16.mxu0 %v1726
        %2033 = vmatpush1.bf16.msra.mxu0 %v1725
        %2034 = vmatprep.subr.bf16.mxu0 %v1730
        %2035 = vmatpush1.bf16.msra.mxu0 %v1729
        %2036 = vmatprep.subr.bf16.mxu0 %v1734
        %2037 = vmatpush1.bf16.msra.mxu0 %v1733
        %2038 = vmatprep.subr.bf16.mxu0 %v1738
        %2039 = vmatpush1.bf16.msra.mxu0 %v1737
        %2040 = vmatprep.subr.bf16.mxu0 %v1742
        %2041 = vmatpush1.bf16.msra.mxu0 %v1741
        %2042 = vmatprep.subr.bf16.mxu0 %v1746
        %2043 = vmatpush1.bf16.msra.mxu0 %v1745
        %2044 = vmatprep.subr.bf16.mxu0 %v1750
        %2045 = vmatpush1.bf16.msra.mxu0 %v1749
        %2046 = vmatprep.subr.bf16.mxu0 %v1754
        %2047 = vmatpush1.bf16.msra.mxu0 %v1753
        %2048 = vmatprep.subr.bf16.mxu0 %v1758
        %2049 = vmatpush1.bf16.msra.mxu0 %v1757
        %2050 = vmatprep.subr.bf16.mxu0 %v1762
        %2051 = vmatpush1.bf16.msra.mxu0 %v1761
        %2052 = vmatprep.subr.bf16.mxu0 %v1766
        %2053 = vmatpush1.bf16.msra.mxu0 %v1765
        %2054 = vmatprep.subr.bf16.mxu0 %v1770
        %2055 = vmatpush1.bf16.msra.mxu0 %v1769
        %2056 = vmatprep.subr.bf16.mxu0 %v1774
        %2057 = vmatpush1.bf16.msra.mxu0 %v1773
        %2058 = vmatprep.mubr.bf16.mxu0 %v1258
        %2059 = vmatmul.mubr.bf16.gmra.mrb[0].mxu0 %v1257
        %v2060 = vpop.f32.mrb[0].mxu0
        %v2061 = vadd.f32 %v2020, %v2060
        %v2062 = vpop.f32.mrb[0].mxu0
        %v2063 = vadd.f32 %v2022, %v2062
        %v2064 = vpop.f32.mrb[0].mxu0
        %v2065 = vpop.f32.mrb[0].mxu0
        %2066 = vdwg.mxu0
        %v2067 = vadd.f32 %v992, %v1979
        %v2068 = vadd.f32 %v993, %v1981
        %v2069 = vadd.f32 %v994, %v2061
        %v2070 = vadd.f32 %v995, %v2063
        %2071 = vst [vmem:[#allocation2] sm:$0xff] %v2067
        %2072 = vst [vmem:[#allocation2 + $0x8] sm:$0xff] %v2068
        %2073 = vst [vmem:[#allocation2 + $0x10] sm:$0xff] %v2069
        %2074 = vst [vmem:[#allocation2 + $0x18] sm:$0xff] %v2070
        %v2075 = vld [vmem:[#allocation3] sm:$0xff]
        %v2076 = vld [vmem:[#allocation3 + $0x8] sm:$0xff]
        %v2077 = vld [vmem:[#allocation3 + $0x10] sm:$0xff]
        %v2078 = vld [vmem:[#allocation3 + $0x18] sm:$0xff]
        %v2079 = vld [vmem:[%s552] sm:$0xff]
        %v2080 = vld [vmem:[%s552 + $0x8] sm:$0xff]
        %v2081 = vld [vmem:[%s552 + $0x10] sm:$0xff]
        %v2082 = vld [vmem:[%s552 + $0x18] sm:$0xff]
        %v2083 = vpack.c.bf16 %v2079, %v2079
        %v2084 = vpack.c.bf16 %v2080, %v2080
        %v2085 = vpack.c.bf16 %v2081, %v2081
        %v2086 = vpack.c.bf16 %v2082, %v2082
        %v2087 = vld [vmem:[%s570] sm:$0xff]
        %v2088 = vld [vmem:[%s570 + $0x8] sm:$0xff]
        %v2089 = vld [vmem:[%s570 + $0x10] sm:$0xff]
        %v2090 = vld [vmem:[%s570 + $0x18] sm:$0xff]
        %v2091 = vld [vmem:[%s570 + $0x20] sm:$0xff]
        %v2092 = vld [vmem:[%s570 + $0x28] sm:$0xff]
        %v2093 = vld [vmem:[%s570 + $0x30] sm:$0xff]
        %v2094 = vld [vmem:[%s570 + $0x38] sm:$0xff]
        %v2095 = vld [vmem:[%s570 + $0x40] sm:$0xff]
        %v2096 = vld [vmem:[%s570 + $0x48] sm:$0xff]
        %v2097 = vld [vmem:[%s570 + $0x50] sm:$0xff]
        %v2098 = vld [vmem:[%s570 + $0x58] sm:$0xff]
        %v2099 = vld [vmem:[%s570 + $0x60] sm:$0xff]
        %v2100 = vld [vmem:[%s570 + $0x68] sm:$0xff]
        %v2101 = vld [vmem:[%s570 + $0x70] sm:$0xff]
        %v2102 = vld [vmem:[%s570 + $0x78] sm:$0xff]
        %v2103 = vld [vmem:[%s570 + $0x80] sm:$0xff]
        %v2104 = vld [vmem:[%s570 + $0x88] sm:$0xff]
        %v2105 = vld [vmem:[%s570 + $0x90] sm:$0xff]
        %v2106 = vld [vmem:[%s570 + $0x98] sm:$0xff]
        %v2107 = vld [vmem:[%s570 + $0xa0] sm:$0xff]
        %v2108 = vld [vmem:[%s570 + $0xa8] sm:$0xff]
        %v2109 = vld [vmem:[%s570 + $0xb0] sm:$0xff]
        %v2110 = vld [vmem:[%s570 + $0xb8] sm:$0xff]
        %v2111 = vld [vmem:[%s570 + $0xc0] sm:$0xff]
        %v2112 = vld [vmem:[%s570 + $0xc8] sm:$0xff]
        %v2113 = vld [vmem:[%s570 + $0xd0] sm:$0xff]
        %v2114 = vld [vmem:[%s570 + $0xd8] sm:$0xff]
        %v2115 = vld [vmem:[%s570 + $0xe0] sm:$0xff]
        %v2116 = vld [vmem:[%s570 + $0xe8] sm:$0xff]
        %v2117 = vld [vmem:[%s570 + $0xf0] sm:$0xff]
        %v2118 = vld [vmem:[%s570 + $0xf8] sm:$0xff]
        %v2119 = vld [vmem:[%s570 + $0x100] sm:$0xff]
        %v2120 = vld [vmem:[%s570 + $0x108] sm:$0xff]
        %v2121 = vld [vmem:[%s570 + $0x110] sm:$0xff]
        %v2122 = vld [vmem:[%s570 + $0x118] sm:$0xff]
        %v2123 = vld [vmem:[%s570 + $0x120] sm:$0xff]
        %v2124 = vld [vmem:[%s570 + $0x128] sm:$0xff]
        %v2125 = vld [vmem:[%s570 + $0x130] sm:$0xff]
        %v2126 = vld [vmem:[%s570 + $0x138] sm:$0xff]
        %v2127 = vld [vmem:[%s570 + $0x140] sm:$0xff]
        %v2128 = vld [vmem:[%s570 + $0x148] sm:$0xff]
        %v2129 = vld [vmem:[%s570 + $0x150] sm:$0xff]
        %v2130 = vld [vmem:[%s570 + $0x158] sm:$0xff]
        %v2131 = vld [vmem:[%s570 + $0x160] sm:$0xff]
        %v2132 = vld [vmem:[%s570 + $0x168] sm:$0xff]
        %v2133 = vld [vmem:[%s570 + $0x170] sm:$0xff]
        %v2134 = vld [vmem:[%s570 + $0x178] sm:$0xff]
        %v2135 = vld [vmem:[%s570 + $0x180] sm:$0xff]
        %v2136 = vld [vmem:[%s570 + $0x188] sm:$0xff]
        %v2137 = vld [vmem:[%s570 + $0x190] sm:$0xff]
        %v2138 = vld [vmem:[%s570 + $0x198] sm:$0xff]
        %v2139 = vld [vmem:[%s570 + $0x1a0] sm:$0xff]
        %v2140 = vld [vmem:[%s570 + $0x1a8] sm:$0xff]
        %v2141 = vld [vmem:[%s570 + $0x1b0] sm:$0xff]
        %v2142 = vld [vmem:[%s570 + $0x1b8] sm:$0xff]
        %v2143 = vld [vmem:[%s570 + $0x1c0] sm:$0xff]
        %v2144 = vld [vmem:[%s570 + $0x1c8] sm:$0xff]
        %v2145 = vld [vmem:[%s570 + $0x1d0] sm:$0xff]
        %v2146 = vld [vmem:[%s570 + $0x1d8] sm:$0xff]
        %v2147 = vld [vmem:[%s570 + $0x1e0] sm:$0xff]
        %v2148 = vld [vmem:[%s570 + $0x1e8] sm:$0xff]
        %v2149 = vld [vmem:[%s570 + $0x1f0] sm:$0xff]
        %v2150 = vld [vmem:[%s570 + $0x1f8] sm:$0xff]
        %v2151 = vld [vmem:[%s570 + $0x200] sm:$0xff]
        %v2152 = vld [vmem:[%s570 + $0x208] sm:$0xff]
        %v2153 = vld [vmem:[%s570 + $0x210] sm:$0xff]
        %v2154 = vld [vmem:[%s570 + $0x218] sm:$0xff]
        %v2155 = vld [vmem:[%s570 + $0x220] sm:$0xff]
        %v2156 = vld [vmem:[%s570 + $0x228] sm:$0xff]
        %v2157 = vld [vmem:[%s570 + $0x230] sm:$0xff]
        %v2158 = vld [vmem:[%s570 + $0x238] sm:$0xff]
        %v2159 = vld [vmem:[%s570 + $0x240] sm:$0xff]
        %v2160 = vld [vmem:[%s570 + $0x248] sm:$0xff]
        %v2161 = vld [vmem:[%s570 + $0x250] sm:$0xff]
        %v2162 = vld [vmem:[%s570 + $0x258] sm:$0xff]
        %v2163 = vld [vmem:[%s570 + $0x260] sm:$0xff]
        %v2164 = vld [vmem:[%s570 + $0x268] sm:$0xff]
        %v2165 = vld [vmem:[%s570 + $0x270] sm:$0xff]
        %v2166 = vld [vmem:[%s570 + $0x278] sm:$0xff]
        %v2167 = vld [vmem:[%s570 + $0x280] sm:$0xff]
        %v2168 = vld [vmem:[%s570 + $0x288] sm:$0xff]
        %v2169 = vld [vmem:[%s570 + $0x290] sm:$0xff]
        %v2170 = vld [vmem:[%s570 + $0x298] sm:$0xff]
        %v2171 = vld [vmem:[%s570 + $0x2a0] sm:$0xff]
        %v2172 = vld [vmem:[%s570 + $0x2a8] sm:$0xff]
        %v2173 = vld [vmem:[%s570 + $0x2b0] sm:$0xff]
        %v2174 = vld [vmem:[%s570 + $0x2b8] sm:$0xff]
        %v2175 = vld [vmem:[%s570 + $0x2c0] sm:$0xff]
        %v2176 = vld [vmem:[%s570 + $0x2c8] sm:$0xff]
        %v2177 = vld [vmem:[%s570 + $0x2d0] sm:$0xff]
        %v2178 = vld [vmem:[%s570 + $0x2d8] sm:$0xff]
        %v2179 = vld [vmem:[%s570 + $0x2e0] sm:$0xff]
        %v2180 = vld [vmem:[%s570 + $0x2e8] sm:$0xff]
        %v2181 = vld [vmem:[%s570 + $0x2f0] sm:$0xff]
        %v2182 = vld [vmem:[%s570 + $0x2f8] sm:$0xff]
        %v2183 = vld [vmem:[%s570 + $0x300] sm:$0xff]
        %v2184 = vld [vmem:[%s570 + $0x308] sm:$0xff]
        %v2185 = vld [vmem:[%s570 + $0x310] sm:$0xff]
        %v2186 = vld [vmem:[%s570 + $0x318] sm:$0xff]
        %v2187 = vld [vmem:[%s570 + $0x320] sm:$0xff]
        %v2188 = vld [vmem:[%s570 + $0x328] sm:$0xff]
        %v2189 = vld [vmem:[%s570 + $0x330] sm:$0xff]
        %v2190 = vld [vmem:[%s570 + $0x338] sm:$0xff]
        %v2191 = vld [vmem:[%s570 + $0x340] sm:$0xff]
        %v2192 = vld [vmem:[%s570 + $0x348] sm:$0xff]
        %v2193 = vld [vmem:[%s570 + $0x350] sm:$0xff]
        %v2194 = vld [vmem:[%s570 + $0x358] sm:$0xff]
        %v2195 = vld [vmem:[%s570 + $0x360] sm:$0xff]
        %v2196 = vld [vmem:[%s570 + $0x368] sm:$0xff]
        %v2197 = vld [vmem:[%s570 + $0x370] sm:$0xff]
        %v2198 = vld [vmem:[%s570 + $0x378] sm:$0xff]
        %v2199 = vld [vmem:[%s570 + $0x380] sm:$0xff]
        %v2200 = vld [vmem:[%s570 + $0x388] sm:$0xff]
        %v2201 = vld [vmem:[%s570 + $0x390] sm:$0xff]
        %v2202 = vld [vmem:[%s570 + $0x398] sm:$0xff]
        %v2203 = vld [vmem:[%s570 + $0x3a0] sm:$0xff]
        %v2204 = vld [vmem:[%s570 + $0x3a8] sm:$0xff]
        %v2205 = vld [vmem:[%s570 + $0x3b0] sm:$0xff]
        %v2206 = vld [vmem:[%s570 + $0x3b8] sm:$0xff]
        %v2207 = vld [vmem:[%s570 + $0x3c0] sm:$0xff]
        %v2208 = vld [vmem:[%s570 + $0x3c8] sm:$0xff]
        %v2209 = vld [vmem:[%s570 + $0x3d0] sm:$0xff]
        %v2210 = vld [vmem:[%s570 + $0x3d8] sm:$0xff]
        %v2211 = vld [vmem:[%s570 + $0x3e0] sm:$0xff]
        %v2212 = vld [vmem:[%s570 + $0x3e8] sm:$0xff]
        %v2213 = vld [vmem:[%s570 + $0x3f0] sm:$0xff]
        %v2214 = vld [vmem:[%s570 + $0x3f8] sm:$0xff]
        %v2343 = vunpack.c.l.b16 %v2087
        %v2344 = vunpack.c.h.b16 %v2087
        %v2345 = vunpack.c.l.b16 %v2088
        %v2346 = vunpack.c.h.b16 %v2088
        %v2347 = vunpack.c.l.b16 %v2089
        %v2348 = vunpack.c.h.b16 %v2089
        %v2349 = vunpack.c.l.b16 %v2090
        %v2350 = vunpack.c.h.b16 %v2090
        %v2351 = vunpack.c.l.b16 %v2091
        %v2352 = vunpack.c.h.b16 %v2091
        %v2353 = vunpack.c.l.b16 %v2092
        %v2354 = vunpack.c.h.b16 %v2092
        %v2355 = vunpack.c.l.b16 %v2093
        %v2356 = vunpack.c.h.b16 %v2093
        %v2357 = vunpack.c.l.b16 %v2094
        %v2358 = vunpack.c.h.b16 %v2094
        %v2359 = vunpack.c.l.b16 %v2095
        %v2360 = vunpack.c.h.b16 %v2095
        %v2361 = vunpack.c.l.b16 %v2096
        %v2362 = vunpack.c.h.b16 %v2096
        %v2363 = vunpack.c.l.b16 %v2097
        %v2364 = vunpack.c.h.b16 %v2097
        %v2365 = vunpack.c.l.b16 %v2098
        %v2366 = vunpack.c.h.b16 %v2098
        %v2367 = vunpack.c.l.b16 %v2099
        %v2368 = vunpack.c.h.b16 %v2099
        %v2369 = vunpack.c.l.b16 %v2100
        %v2370 = vunpack.c.h.b16 %v2100
        %v2371 = vunpack.c.l.b16 %v2101
        %v2372 = vunpack.c.h.b16 %v2101
        %v2373 = vunpack.c.l.b16 %v2102
        %v2374 = vunpack.c.h.b16 %v2102
        %v2375 = vunpack.c.l.b16 %v2103
        %v2376 = vunpack.c.h.b16 %v2103
        %v2377 = vunpack.c.l.b16 %v2104
        %v2378 = vunpack.c.h.b16 %v2104
        %v2379 = vunpack.c.l.b16 %v2105
        %v2380 = vunpack.c.h.b16 %v2105
        %v2381 = vunpack.c.l.b16 %v2106
        %v2382 = vunpack.c.h.b16 %v2106
        %v2383 = vunpack.c.l.b16 %v2107
        %v2384 = vunpack.c.h.b16 %v2107
        %v2385 = vunpack.c.l.b16 %v2108
        %v2386 = vunpack.c.h.b16 %v2108
        %v2387 = vunpack.c.l.b16 %v2109
        %v2388 = vunpack.c.h.b16 %v2109
        %v2389 = vunpack.c.l.b16 %v2110
        %v2390 = vunpack.c.h.b16 %v2110
        %v2391 = vunpack.c.l.b16 %v2111
        %v2392 = vunpack.c.h.b16 %v2111
        %v2393 = vunpack.c.l.b16 %v2112
        %v2394 = vunpack.c.h.b16 %v2112
        %v2395 = vunpack.c.l.b16 %v2113
        %v2396 = vunpack.c.h.b16 %v2113
        %v2397 = vunpack.c.l.b16 %v2114
        %v2398 = vunpack.c.h.b16 %v2114
        %v2399 = vunpack.c.l.b16 %v2115
        %v2400 = vunpack.c.h.b16 %v2115
        %v2401 = vunpack.c.l.b16 %v2116
        %v2402 = vunpack.c.h.b16 %v2116
        %v2403 = vunpack.c.l.b16 %v2117
        %v2404 = vunpack.c.h.b16 %v2117
        %v2405 = vunpack.c.l.b16 %v2118
        %v2406 = vunpack.c.h.b16 %v2118
        %v2407 = vunpack.c.l.b16 %v2119
        %v2408 = vunpack.c.h.b16 %v2119
        %v2409 = vunpack.c.l.b16 %v2120
        %v2410 = vunpack.c.h.b16 %v2120
        %v2411 = vunpack.c.l.b16 %v2121
        %v2412 = vunpack.c.h.b16 %v2121
        %v2413 = vunpack.c.l.b16 %v2122
        %v2414 = vunpack.c.h.b16 %v2122
        %v2415 = vunpack.c.l.b16 %v2123
        %v2416 = vunpack.c.h.b16 %v2123
        %v2417 = vunpack.c.l.b16 %v2124
        %v2418 = vunpack.c.h.b16 %v2124
        %v2419 = vunpack.c.l.b16 %v2125
        %v2420 = vunpack.c.h.b16 %v2125
        %v2421 = vunpack.c.l.b16 %v2126
        %v2422 = vunpack.c.h.b16 %v2126
        %v2423 = vunpack.c.l.b16 %v2127
        %v2424 = vunpack.c.h.b16 %v2127
        %v2425 = vunpack.c.l.b16 %v2128
        %v2426 = vunpack.c.h.b16 %v2128
        %v2427 = vunpack.c.l.b16 %v2129
        %v2428 = vunpack.c.h.b16 %v2129
        %v2429 = vunpack.c.l.b16 %v2130
        %v2430 = vunpack.c.h.b16 %v2130
        %v2431 = vunpack.c.l.b16 %v2131
        %v2432 = vunpack.c.h.b16 %v2131
        %v2433 = vunpack.c.l.b16 %v2132
        %v2434 = vunpack.c.h.b16 %v2132
        %v2435 = vunpack.c.l.b16 %v2133
        %v2436 = vunpack.c.h.b16 %v2133
        %v2437 = vunpack.c.l.b16 %v2134
        %v2438 = vunpack.c.h.b16 %v2134
        %v2439 = vunpack.c.l.b16 %v2135
        %v2440 = vunpack.c.h.b16 %v2135
        %v2441 = vunpack.c.l.b16 %v2136
        %v2442 = vunpack.c.h.b16 %v2136
        %v2443 = vunpack.c.l.b16 %v2137
        %v2444 = vunpack.c.h.b16 %v2137
        %v2445 = vunpack.c.l.b16 %v2138
        %v2446 = vunpack.c.h.b16 %v2138
        %v2447 = vunpack.c.l.b16 %v2139
        %v2448 = vunpack.c.h.b16 %v2139
        %v2449 = vunpack.c.l.b16 %v2140
        %v2450 = vunpack.c.h.b16 %v2140
        %v2451 = vunpack.c.l.b16 %v2141
        %v2452 = vunpack.c.h.b16 %v2141
        %v2453 = vunpack.c.l.b16 %v2142
        %v2454 = vunpack.c.h.b16 %v2142
        %v2455 = vunpack.c.l.b16 %v2143
        %v2456 = vunpack.c.h.b16 %v2143
        %v2457 = vunpack.c.l.b16 %v2144
        %v2458 = vunpack.c.h.b16 %v2144
        %v2459 = vunpack.c.l.b16 %v2145
        %v2460 = vunpack.c.h.b16 %v2145
        %v2461 = vunpack.c.l.b16 %v2146
        %v2462 = vunpack.c.h.b16 %v2146
        %v2463 = vunpack.c.l.b16 %v2147
        %v2464 = vunpack.c.h.b16 %v2147
        %v2465 = vunpack.c.l.b16 %v2148
        %v2466 = vunpack.c.h.b16 %v2148
        %v2467 = vunpack.c.l.b16 %v2149
        %v2468 = vunpack.c.h.b16 %v2149
        %v2469 = vunpack.c.l.b16 %v2150
        %v2470 = vunpack.c.h.b16 %v2150
        %v2471 = vunpack.c.l.b16 %v2151
        %v2472 = vunpack.c.h.b16 %v2151
        %v2473 = vunpack.c.l.b16 %v2152
        %v2474 = vunpack.c.h.b16 %v2152
        %v2475 = vunpack.c.l.b16 %v2153
        %v2476 = vunpack.c.h.b16 %v2153
        %v2477 = vunpack.c.l.b16 %v2154
        %v2478 = vunpack.c.h.b16 %v2154
        %v2479 = vunpack.c.l.b16 %v2155
        %v2480 = vunpack.c.h.b16 %v2155
        %v2481 = vunpack.c.l.b16 %v2156
        %v2482 = vunpack.c.h.b16 %v2156
        %v2483 = vunpack.c.l.b16 %v2157
        %v2484 = vunpack.c.h.b16 %v2157
        %v2485 = vunpack.c.l.b16 %v2158
        %v2486 = vunpack.c.h.b16 %v2158
        %v2487 = vunpack.c.l.b16 %v2159
        %v2488 = vunpack.c.h.b16 %v2159
        %v2489 = vunpack.c.l.b16 %v2160
        %v2490 = vunpack.c.h.b16 %v2160
        %v2491 = vunpack.c.l.b16 %v2161
        %v2492 = vunpack.c.h.b16 %v2161
        %v2493 = vunpack.c.l.b16 %v2162
        %v2494 = vunpack.c.h.b16 %v2162
        %v2495 = vunpack.c.l.b16 %v2163
        %v2496 = vunpack.c.h.b16 %v2163
        %v2497 = vunpack.c.l.b16 %v2164
        %v2498 = vunpack.c.h.b16 %v2164
        %v2499 = vunpack.c.l.b16 %v2165
        %v2500 = vunpack.c.h.b16 %v2165
        %v2501 = vunpack.c.l.b16 %v2166
        %v2502 = vunpack.c.h.b16 %v2166
        %v2503 = vunpack.c.l.b16 %v2167
        %v2504 = vunpack.c.h.b16 %v2167
        %v2505 = vunpack.c.l.b16 %v2168
        %v2506 = vunpack.c.h.b16 %v2168
        %v2507 = vunpack.c.l.b16 %v2169
        %v2508 = vunpack.c.h.b16 %v2169
        %v2509 = vunpack.c.l.b16 %v2170
        %v2510 = vunpack.c.h.b16 %v2170
        %v2511 = vunpack.c.l.b16 %v2171
        %v2512 = vunpack.c.h.b16 %v2171
        %v2513 = vunpack.c.l.b16 %v2172
        %v2514 = vunpack.c.h.b16 %v2172
        %v2515 = vunpack.c.l.b16 %v2173
        %v2516 = vunpack.c.h.b16 %v2173
        %v2517 = vunpack.c.l.b16 %v2174
        %v2518 = vunpack.c.h.b16 %v2174
        %v2519 = vunpack.c.l.b16 %v2175
        %v2520 = vunpack.c.h.b16 %v2175
        %v2521 = vunpack.c.l.b16 %v2176
        %v2522 = vunpack.c.h.b16 %v2176
        %v2523 = vunpack.c.l.b16 %v2177
        %v2524 = vunpack.c.h.b16 %v2177
        %v2525 = vunpack.c.l.b16 %v2178
        %v2526 = vunpack.c.h.b16 %v2178
        %v2527 = vunpack.c.l.b16 %v2179
        %v2528 = vunpack.c.h.b16 %v2179
        %v2529 = vunpack.c.l.b16 %v2180
        %v2530 = vunpack.c.h.b16 %v2180
        %v2531 = vunpack.c.l.b16 %v2181
        %v2532 = vunpack.c.h.b16 %v2181
        %v2533 = vunpack.c.l.b16 %v2182
        %v2534 = vunpack.c.h.b16 %v2182
        %v2535 = vunpack.c.l.b16 %v2183
        %v2536 = vunpack.c.h.b16 %v2183
        %v2537 = vunpack.c.l.b16 %v2184
        %v2538 = vunpack.c.h.b16 %v2184
        %v2539 = vunpack.c.l.b16 %v2185
        %v2540 = vunpack.c.h.b16 %v2185
        %v2541 = vunpack.c.l.b16 %v2186
        %v2542 = vunpack.c.h.b16 %v2186
        %v2543 = vunpack.c.l.b16 %v2187
        %v2544 = vunpack.c.h.b16 %v2187
        %v2545 = vunpack.c.l.b16 %v2188
        %v2546 = vunpack.c.h.b16 %v2188
        %v2547 = vunpack.c.l.b16 %v2189
        %v2548 = vunpack.c.h.b16 %v2189
        %v2549 = vunpack.c.l.b16 %v2190
        %v2550 = vunpack.c.h.b16 %v2190
        %v2551 = vunpack.c.l.b16 %v2191
        %v2552 = vunpack.c.h.b16 %v2191
        %v2553 = vunpack.c.l.b16 %v2192
        %v2554 = vunpack.c.h.b16 %v2192
        %v2555 = vunpack.c.l.b16 %v2193
        %v2556 = vunpack.c.h.b16 %v2193
        %v2557 = vunpack.c.l.b16 %v2194
        %v2558 = vunpack.c.h.b16 %v2194
        %v2559 = vunpack.c.l.b16 %v2195
        %v2560 = vunpack.c.h.b16 %v2195
        %v2561 = vunpack.c.l.b16 %v2196
        %v2562 = vunpack.c.h.b16 %v2196
        %v2563 = vunpack.c.l.b16 %v2197
        %v2564 = vunpack.c.h.b16 %v2197
        %v2565 = vunpack.c.l.b16 %v2198
        %v2566 = vunpack.c.h.b16 %v2198
        %v2567 = vunpack.c.l.b16 %v2199
        %v2568 = vunpack.c.h.b16 %v2199
        %v2569 = vunpack.c.l.b16 %v2200
        %v2570 = vunpack.c.h.b16 %v2200
        %v2571 = vunpack.c.l.b16 %v2201
        %v2572 = vunpack.c.h.b16 %v2201
        %v2573 = vunpack.c.l.b16 %v2202
        %v2574 = vunpack.c.h.b16 %v2202
        %v2575 = vunpack.c.l.b16 %v2203
        %v2576 = vunpack.c.h.b16 %v2203
        %v2577 = vunpack.c.l.b16 %v2204
        %v2578 = vunpack.c.h.b16 %v2204
        %v2579 = vunpack.c.l.b16 %v2205
        %v2580 = vunpack.c.h.b16 %v2205
        %v2581 = vunpack.c.l.b16 %v2206
        %v2582 = vunpack.c.h.b16 %v2206
        %v2583 = vunpack.c.l.b16 %v2207
        %v2584 = vunpack.c.h.b16 %v2207
        %v2585 = vunpack.c.l.b16 %v2208
        %v2586 = vunpack.c.h.b16 %v2208
        %v2587 = vunpack.c.l.b16 %v2209
        %v2588 = vunpack.c.h.b16 %v2209
        %v2589 = vunpack.c.l.b16 %v2210
        %v2590 = vunpack.c.h.b16 %v2210
        %v2591 = vunpack.c.l.b16 %v2211
        %v2592 = vunpack.c.h.b16 %v2211
        %v2593 = vunpack.c.l.b16 %v2212
        %v2594 = vunpack.c.h.b16 %v2212
        %v2595 = vunpack.c.l.b16 %v2213
        %v2596 = vunpack.c.h.b16 %v2213
        %v2597 = vunpack.c.l.b16 %v2214
        %v2598 = vunpack.c.h.b16 %v2214
        %v2599 = vpack.c.b16 %v2347, %v2343
        %v2600 = vpack.c.b16 %v2348, %v2344
        %v2601 = vpack.c.b16 %v2349, %v2345
        %v2602 = vpack.c.b16 %v2350, %v2346
        %v2603 = vpack.c.b16 %v2355, %v2351
        %v2604 = vpack.c.b16 %v2356, %v2352
        %v2605 = vpack.c.b16 %v2357, %v2353
        %v2606 = vpack.c.b16 %v2358, %v2354
        %v2607 = vpack.c.b16 %v2363, %v2359
        %v2608 = vpack.c.b16 %v2364, %v2360
        %v2609 = vpack.c.b16 %v2365, %v2361
        %v2610 = vpack.c.b16 %v2366, %v2362
        %v2611 = vpack.c.b16 %v2371, %v2367
        %v2612 = vpack.c.b16 %v2372, %v2368
        %v2613 = vpack.c.b16 %v2373, %v2369
        %v2614 = vpack.c.b16 %v2374, %v2370
        %v2615 = vpack.c.b16 %v2379, %v2375
        %v2616 = vpack.c.b16 %v2380, %v2376
        %v2617 = vpack.c.b16 %v2381, %v2377
        %v2618 = vpack.c.b16 %v2382, %v2378
        %v2619 = vpack.c.b16 %v2387, %v2383
        %v2620 = vpack.c.b16 %v2388, %v2384
        %v2621 = vpack.c.b16 %v2389, %v2385
        %v2622 = vpack.c.b16 %v2390, %v2386
        %v2623 = vpack.c.b16 %v2395, %v2391
        %v2624 = vpack.c.b16 %v2396, %v2392
        %v2625 = vpack.c.b16 %v2397, %v2393
        %v2626 = vpack.c.b16 %v2398, %v2394
        %v2627 = vpack.c.b16 %v2403, %v2399
        %v2628 = vpack.c.b16 %v2404, %v2400
        %v2629 = vpack.c.b16 %v2405, %v2401
        %v2630 = vpack.c.b16 %v2406, %v2402
        %v2631 = vpack.c.b16 %v2411, %v2407
        %v2632 = vpack.c.b16 %v2412, %v2408
        %v2633 = vpack.c.b16 %v2413, %v2409
        %v2634 = vpack.c.b16 %v2414, %v2410
        %v2635 = vpack.c.b16 %v2419, %v2415
        %v2636 = vpack.c.b16 %v2420, %v2416
        %v2637 = vpack.c.b16 %v2421, %v2417
        %v2638 = vpack.c.b16 %v2422, %v2418
        %v2639 = vpack.c.b16 %v2427, %v2423
        %v2640 = vpack.c.b16 %v2428, %v2424
        %v2641 = vpack.c.b16 %v2429, %v2425
        %v2642 = vpack.c.b16 %v2430, %v2426
        %v2643 = vpack.c.b16 %v2435, %v2431
        %v2644 = vpack.c.b16 %v2436, %v2432
        %v2645 = vpack.c.b16 %v2437, %v2433
        %v2646 = vpack.c.b16 %v2438, %v2434
        %v2647 = vpack.c.b16 %v2443, %v2439
        %v2648 = vpack.c.b16 %v2444, %v2440
        %v2649 = vpack.c.b16 %v2445, %v2441
        %v2650 = vpack.c.b16 %v2446, %v2442
        %v2651 = vpack.c.b16 %v2451, %v2447
        %v2652 = vpack.c.b16 %v2452, %v2448
        %v2653 = vpack.c.b16 %v2453, %v2449
        %v2654 = vpack.c.b16 %v2454, %v2450
        %v2655 = vpack.c.b16 %v2459, %v2455
        %v2656 = vpack.c.b16 %v2460, %v2456
        %v2657 = vpack.c.b16 %v2461, %v2457
        %v2658 = vpack.c.b16 %v2462, %v2458
        %v2659 = vpack.c.b16 %v2467, %v2463
        %v2660 = vpack.c.b16 %v2468, %v2464
        %v2661 = vpack.c.b16 %v2469, %v2465
        %v2662 = vpack.c.b16 %v2470, %v2466
        %v2663 = vpack.c.b16 %v2475, %v2471
        %v2664 = vpack.c.b16 %v2476, %v2472
        %v2665 = vpack.c.b16 %v2477, %v2473
        %v2666 = vpack.c.b16 %v2478, %v2474
        %v2667 = vpack.c.b16 %v2483, %v2479
        %v2668 = vpack.c.b16 %v2484, %v2480
        %v2669 = vpack.c.b16 %v2485, %v2481
        %v2670 = vpack.c.b16 %v2486, %v2482
        %v2671 = vpack.c.b16 %v2491, %v2487
        %v2672 = vpack.c.b16 %v2492, %v2488
        %v2673 = vpack.c.b16 %v2493, %v2489
        %v2674 = vpack.c.b16 %v2494, %v2490
        %v2675 = vpack.c.b16 %v2499, %v2495
        %v2676 = vpack.c.b16 %v2500, %v2496
        %v2677 = vpack.c.b16 %v2501, %v2497
        %v2678 = vpack.c.b16 %v2502, %v2498
        %v2679 = vpack.c.b16 %v2507, %v2503
        %v2680 = vpack.c.b16 %v2508, %v2504
        %v2681 = vpack.c.b16 %v2509, %v2505
        %v2682 = vpack.c.b16 %v2510, %v2506
        %v2683 = vpack.c.b16 %v2515, %v2511
        %v2684 = vpack.c.b16 %v2516, %v2512
        %v2685 = vpack.c.b16 %v2517, %v2513
        %v2686 = vpack.c.b16 %v2518, %v2514
        %v2687 = vpack.c.b16 %v2523, %v2519
        %v2688 = vpack.c.b16 %v2524, %v2520
        %v2689 = vpack.c.b16 %v2525, %v2521
        %v2690 = vpack.c.b16 %v2526, %v2522
        %v2691 = vpack.c.b16 %v2531, %v2527
        %v2692 = vpack.c.b16 %v2532, %v2528
        %v2693 = vpack.c.b16 %v2533, %v2529
        %v2694 = vpack.c.b16 %v2534, %v2530
        %v2695 = vpack.c.b16 %v2539, %v2535
        %v2696 = vpack.c.b16 %v2540, %v2536
        %v2697 = vpack.c.b16 %v2541, %v2537
        %v2698 = vpack.c.b16 %v2542, %v2538
        %v2699 = vpack.c.b16 %v2547, %v2543
        %v2700 = vpack.c.b16 %v2548, %v2544
        %v2701 = vpack.c.b16 %v2549, %v2545
        %v2702 = vpack.c.b16 %v2550, %v2546
        %v2703 = vpack.c.b16 %v2555, %v2551
        %v2704 = vpack.c.b16 %v2556, %v2552
        %v2705 = vpack.c.b16 %v2557, %v2553
        %v2706 = vpack.c.b16 %v2558, %v2554
        %v2707 = vpack.c.b16 %v2563, %v2559
        %v2708 = vpack.c.b16 %v2564, %v2560
        %v2709 = vpack.c.b16 %v2565, %v2561
        %v2710 = vpack.c.b16 %v2566, %v2562
        %v2711 = vpack.c.b16 %v2571, %v2567
        %v2712 = vpack.c.b16 %v2572, %v2568
        %v2713 = vpack.c.b16 %v2573, %v2569
        %v2714 = vpack.c.b16 %v2574, %v2570
        %v2715 = vpack.c.b16 %v2579, %v2575
        %v2716 = vpack.c.b16 %v2580, %v2576
        %v2717 = vpack.c.b16 %v2581, %v2577
        %v2718 = vpack.c.b16 %v2582, %v2578
        %v2719 = vpack.c.b16 %v2587, %v2583
        %v2720 = vpack.c.b16 %v2588, %v2584
        %v2721 = vpack.c.b16 %v2589, %v2585
        %v2722 = vpack.c.b16 %v2590, %v2586
        %v2723 = vpack.c.b16 %v2595, %v2591
        %v2724 = vpack.c.b16 %v2596, %v2592
        %v2725 = vpack.c.b16 %v2597, %v2593
        %v2726 = vpack.c.b16 %v2598, %v2594
        %2855 = vmatprep.subr.bf16.mxu0 %v2600
        %2856 = vmatpush1.bf16.msra.mxu0 %v2599
        %2857 = vmatprep.subr.bf16.mxu0 %v2604
        %2858 = vmatpush1.bf16.msra.mxu0 %v2603
        %2859 = vmatprep.subr.bf16.mxu0 %v2608
        %2860 = vmatpush1.bf16.msra.mxu0 %v2607
        %2861 = vmatprep.subr.bf16.mxu0 %v2612
        %2862 = vmatpush1.bf16.msra.mxu0 %v2611
        %2863 = vmatprep.subr.bf16.mxu0 %v2616
        %2864 = vmatpush1.bf16.msra.mxu0 %v2615
        %2865 = vmatprep.subr.bf16.mxu0 %v2620
        %2866 = vmatpush1.bf16.msra.mxu0 %v2619
        %2867 = vmatprep.subr.bf16.mxu0 %v2624
        %2868 = vmatpush1.bf16.msra.mxu0 %v2623
        %2869 = vmatprep.subr.bf16.mxu0 %v2628
        %2870 = vmatpush1.bf16.msra.mxu0 %v2627
        %2871 = vmatprep.subr.bf16.mxu0 %v2632
        %2872 = vmatpush1.bf16.msra.mxu0 %v2631
        %2873 = vmatprep.subr.bf16.mxu0 %v2636
        %2874 = vmatpush1.bf16.msra.mxu0 %v2635
        %2875 = vmatprep.subr.bf16.mxu0 %v2640
        %2876 = vmatpush1.bf16.msra.mxu0 %v2639
        %2877 = vmatprep.subr.bf16.mxu0 %v2644
        %2878 = vmatpush1.bf16.msra.mxu0 %v2643
        %2879 = vmatprep.subr.bf16.mxu0 %v2648
        %2880 = vmatpush1.bf16.msra.mxu0 %v2647
        %2881 = vmatprep.subr.bf16.mxu0 %v2652
        %2882 = vmatpush1.bf16.msra.mxu0 %v2651
        %2883 = vmatprep.subr.bf16.mxu0 %v2656
        %2884 = vmatpush1.bf16.msra.mxu0 %v2655
        %2885 = vmatprep.subr.bf16.mxu0 %v2660
        %2886 = vmatpush1.bf16.msra.mxu0 %v2659
        %2887 = vmatprep.mubr.bf16.mxu0 %v2084
        %2888 = vmatmul.mubr.bf16.gmra.mrb[0].mxu0 %v2083
        %v2889 = vpop.f32.mrb[0].mxu0
        %v2890 = vadd.f32 0.0, %v2889
        %v2891 = vpop.f32.mrb[0].mxu0
        %v2892 = vadd.f32 0.0, %v2891
        %v2893 = vpop.f32.mrb[0].mxu0
        %v2894 = vpop.f32.mrb[0].mxu0
        %2895 = vdwg.mxu0
        %2896 = vmatprep.subr.bf16.mxu0 %v2664
        %2897 = vmatpush1.bf16.msra.mxu0 %v2663
        %2898 = vmatprep.subr.bf16.mxu0 %v2668
        %2899 = vmatpush1.bf16.msra.mxu0 %v2667
        %2900 = vmatprep.subr.bf16.mxu0 %v2672
        %2901 = vmatpush1.bf16.msra.mxu0 %v2671
        %2902 = vmatprep.subr.bf16.mxu0 %v2676
        %2903 = vmatpush1.bf16.msra.mxu0 %v2675
        %2904 = vmatprep.subr.bf16.mxu0 %v2680
        %2905 = vmatpush1.bf16.msra.mxu0 %v2679
        %2906 = vmatprep.subr.bf16.mxu0 %v2684
        %2907 = vmatpush1.bf16.msra.mxu0 %v2683
        %2908 = vmatprep.subr.bf16.mxu0 %v2688
        %2909 = vmatpush1.bf16.msra.mxu0 %v2687
        %2910 = vmatprep.subr.bf16.mxu0 %v2692
        %2911 = vmatpush1.bf16.msra.mxu0 %v2691
        %2912 = vmatprep.subr.bf16.mxu0 %v2696
        %2913 = vmatpush1.bf16.msra.mxu0 %v2695
        %2914 = vmatprep.subr.bf16.mxu0 %v2700
        %2915 = vmatpush1.bf16.msra.mxu0 %v2699
        %2916 = vmatprep.subr.bf16.mxu0 %v2704
        %2917 = vmatpush1.bf16.msra.mxu0 %v2703
        %2918 = vmatprep.subr.bf16.mxu0 %v2708
        %2919 = vmatpush1.bf16.msra.mxu0 %v2707
        %2920 = vmatprep.subr.bf16.mxu0 %v2712
        %2921 = vmatpush1.bf16.msra.mxu0 %v2711
        %2922 = vmatprep.subr.bf16.mxu0 %v2716
        %2923 = vmatpush1.bf16.msra.mxu0 %v2715
        %2924 = vmatprep.subr.bf16.mxu0 %v2720
        %2925 = vmatpush1.bf16.msra.mxu0 %v2719
        %2926 = vmatprep.subr.bf16.mxu0 %v2724
        %2927 = vmatpush1.bf16.msra.mxu0 %v2723
        %2928 = vmatprep.mubr.bf16.mxu0 %v2086
        %2929 = vmatmul.mubr.bf16.gmra.mrb[0].mxu0 %v2085
        %v2930 = vpop.f32.mrb[0].mxu0
        %v2931 = vadd.f32 %v2890, %v2930
        %v2932 = vpop.f32.mrb[0].mxu0
        %v2933 = vadd.f32 %v2892, %v2932
        %v2934 = vpop.f32.mrb[0].mxu0
        %v2935 = vpop.f32.mrb[0].mxu0
        %2936 = vdwg.mxu0
        %2937 = vmatprep.subr.bf16.mxu0 %v2602
        %2938 = vmatpush1.bf16.msra.mxu0 %v2601
        %2939 = vmatprep.subr.bf16.mxu0 %v2606
        %2940 = vmatpush1.bf16.msra.mxu0 %v2605
        %2941 = vmatprep.subr.bf16.mxu0 %v2610
        %2942 = vmatpush1.bf16.msra.mxu0 %v2609
        %2943 = vmatprep.subr.bf16.mxu0 %v2614
        %2944 = vmatpush1.bf16.msra.mxu0 %v2613
        %2945 = vmatprep.subr.bf16.mxu0 %v2618
        %2946 = vmatpush1.bf16.msra.mxu0 %v2617
        %2947 = vmatprep.subr.bf16.mxu0 %v2622
        %2948 = vmatpush1.bf16.msra.mxu0 %v2621
        %2949 = vmatprep.subr.bf16.mxu0 %v2626
        %2950 = vmatpush1.bf16.msra.mxu0 %v2625
        %2951 = vmatprep.subr.bf16.mxu0 %v2630
        %2952 = vmatpush1.bf16.msra.mxu0 %v2629
        %2953 = vmatprep.subr.bf16.mxu0 %v2634
        %2954 = vmatpush1.bf16.msra.mxu0 %v2633
        %2955 = vmatprep.subr.bf16.mxu0 %v2638
        %2956 = vmatpush1.bf16.msra.mxu0 %v2637
        %2957 = vmatprep.subr.bf16.mxu0 %v2642
        %2958 = vmatpush1.bf16.msra.mxu0 %v2641
        %2959 = vmatprep.subr.bf16.mxu0 %v2646
        %2960 = vmatpush1.bf16.msra.mxu0 %v2645
        %2961 = vmatprep.subr.bf16.mxu0 %v2650
        %2962 = vmatpush1.bf16.msra.mxu0 %v2649
        %2963 = vmatprep.subr.bf16.mxu0 %v2654
        %2964 = vmatpush1.bf16.msra.mxu0 %v2653
        %2965 = vmatprep.subr.bf16.mxu0 %v2658
        %2966 = vmatpush1.bf16.msra.mxu0 %v2657
        %2967 = vmatprep.subr.bf16.mxu0 %v2662
        %2968 = vmatpush1.bf16.msra.mxu0 %v2661
        %2969 = vmatprep.mubr.bf16.mxu0 %v2084
        %2970 = vmatmul.mubr.bf16.gmra.mrb[0].mxu0 %v2083
        %v2971 = vpop.f32.mrb[0].mxu0
        %v2972 = vadd.f32 0.0, %v2971
        %v2973 = vpop.f32.mrb[0].mxu0
        %v2974 = vadd.f32 0.0, %v2973
        %v2975 = vpop.f32.mrb[0].mxu0
        %v2976 = vpop.f32.mrb[0].mxu0
        %2977 = vdwg.mxu0
        %2978 = vmatprep.subr.bf16.mxu0 %v2666
        %2979 = vmatpush1.bf16.msra.mxu0 %v2665
        %2980 = vmatprep.subr.bf16.mxu0 %v2670
        %2981 = vmatpush1.bf16.msra.mxu0 %v2669
        %2982 = vmatprep.subr.bf16.mxu0 %v2674
        %2983 = vmatpush1.bf16.msra.mxu0 %v2673
        %2984 = vmatprep.subr.bf16.mxu0 %v2678
        %2985 = vmatpush1.bf16.msra.mxu0 %v2677
        %2986 = vmatprep.subr.bf16.mxu0 %v2682
        %2987 = vmatpush1.bf16.msra.mxu0 %v2681
        %2988 = vmatprep.subr.bf16.mxu0 %v2686
        %2989 = vmatpush1.bf16.msra.mxu0 %v2685
        %2990 = vmatprep.subr.bf16.mxu0 %v2690
        %2991 = vmatpush1.bf16.msra.mxu0 %v2689
        %2992 = vmatprep.subr.bf16.mxu0 %v2694
        %2993 = vmatpush1.bf16.msra.mxu0 %v2693
        %2994 = vmatprep.subr.bf16.mxu0 %v2698
        %2995 = vmatpush1.bf16.msra.mxu0 %v2697
        %2996 = vmatprep.subr.bf16.mxu0 %v2702
        %2997 = vmatpush1.bf16.msra.mxu0 %v2701
        %2998 = vmatprep.subr.bf16.mxu0 %v2706
        %2999 = vmatpush1.bf16.msra.mxu0 %v2705
        %3000 = vmatprep.subr.bf16.mxu0 %v2710
        %3001 = vmatpush1.bf16.msra.mxu0 %v2709
        %3002 = vmatprep.subr.bf16.mxu0 %v2714
        %3003 = vmatpush1.bf16.msra.mxu0 %v2713
        %3004 = vmatprep.subr.bf16.mxu0 %v2718
        %3005 = vmatpush1.bf16.msra.mxu0 %v2717
        %3006 = vmatprep.subr.bf16.mxu0 %v2722
        %3007 = vmatpush1.bf16.msra.mxu0 %v2721
        %3008 = vmatprep.subr.bf16.mxu0 %v2726
        %3009 = vmatpush1.bf16.msra.mxu0 %v2725
        %3010 = vmatprep.mubr.bf16.mxu0 %v2086
        %3011 = vmatmul.mubr.bf16.gmra.mrb[0].mxu0 %v2085
        %v3012 = vpop.f32.mrb[0].mxu0
        %v3013 = vadd.f32 %v2972, %v3012
        %v3014 = vpop.f32.mrb[0].mxu0
        %v3015 = vadd.f32 %v2974, %v3014
        %v3016 = vpop.f32.mrb[0].mxu0
        %v3017 = vpop.f32.mrb[0].mxu0
        %3018 = vdwg.mxu0
        %v3019 = vadd.f32 %v2075, %v2931
        %v3020 = vadd.f32 %v2076, %v2933
        %v3021 = vadd.f32 %v2077, %v3013
        %v3022 = vadd.f32 %v2078, %v3015
        %3023 = vst [vmem:[#allocation3] sm:$0xff] %v3019
        %3024 = vst [vmem:[#allocation3 + $0x8] sm:$0xff] %v3020
        %3025 = vst [vmem:[#allocation3 + $0x10] sm:$0xff] %v3021
        %3026 = vst [vmem:[#allocation3 + $0x18] sm:$0xff] %v3022
        %p3027 = scmp.eq.s32.totalorder %s42, 4
        // Predicated region
        $region109: #{tpu_custom_call.1} parent=63 // pred_check
          %p3028 = pneg %p3027
        $region110: #{tpu_custom_call.1} parent=63 // pred_check_branch
          %3030 = sbr.rel (%p3028) target = $region112
        $region111: #{tpu_custom_call.1} parent=63 // pred_region
          %v3031 = vld [vmem:[#allocation2] sm:$0xff]
          %v3032 = vld [vmem:[#allocation2 + $0x8] sm:$0xff]
          %v3033 = vld [vmem:[#allocation2 + $0x10] sm:$0xff]
          %v3034 = vld [vmem:[#allocation2 + $0x18] sm:$0xff]
          %v3035 = vld [vmem:[#allocation12] sm:$0xf]
          %v3037 = vlaneseq
          %v3038 = vshrl.u32 %v3037, 7
          %v3039 = vsub.s32 0, %v3038
          %v3040 = vrot.slane %v3035, %v3039
          %v3041 = vlaneseq
          %v3042 = vshrl.u32 %v3041, 7
          %v3043 = vsub.s32 1, %v3042
          %v3044 = vrot.slane %v3035, %v3043
          %v3045 = vlaneseq
          %v3046 = vshrl.u32 %v3045, 7
          %v3047 = vsub.s32 2, %v3046
          %v3048 = vrot.slane %v3035, %v3047
          %v3049 = vlaneseq
          %v3050 = vshrl.u32 %v3049, 7
          %v3051 = vsub.s32 3, %v3050
          %v3052 = vrot.slane %v3035, %v3051
          %v3057 = vadd.f32 %v3031, %v3040
          %v3058 = vadd.f32 %v3032, %v3044
          %v3059 = vadd.f32 %v3033, %v3048
          %v3060 = vadd.f32 %v3034, %v3052
          %v3061 = vmax.f32 %v3057, 0.0
          %v3062 = vmax.f32 %v3058, 0.0
          %v3063 = vmax.f32 %v3059, 0.0
          %v3064 = vmax.f32 %v3060, 0.0
          %v3065 = vld [vmem:[#allocation3] sm:$0xff]
          %v3066 = vld [vmem:[#allocation3 + $0x8] sm:$0xff]
          %v3067 = vld [vmem:[#allocation3 + $0x10] sm:$0xff]
          %v3068 = vld [vmem:[#allocation3 + $0x18] sm:$0xff]
          %v3069 = vld [vmem:[#allocation13] sm:$0xf]
          %v3071 = vlaneseq
          %v3072 = vshrl.u32 %v3071, 7
          %v3073 = vsub.s32 0, %v3072
          %v3074 = vrot.slane %v3069, %v3073
          %v3075 = vlaneseq
          %v3076 = vshrl.u32 %v3075, 7
          %v3077 = vsub.s32 1, %v3076
          %v3078 = vrot.slane %v3069, %v3077
          %v3079 = vlaneseq
          %v3080 = vshrl.u32 %v3079, 7
          %v3081 = vsub.s32 2, %v3080
          %v3082 = vrot.slane %v3069, %v3081
          %v3083 = vlaneseq
          %v3084 = vshrl.u32 %v3083, 7
          %v3085 = vsub.s32 3, %v3084
          %v3086 = vrot.slane %v3069, %v3085
          %v3091 = vadd.f32 %v3065, %v3074
          %v3092 = vadd.f32 %v3066, %v3078
          %v3093 = vadd.f32 %v3067, %v3082
          %v3094 = vadd.f32 %v3068, %v3086
          %v3095 = vmax.f32 %v3091, 0.0
          %v3096 = vmax.f32 %v3092, 0.0
          %v3097 = vmax.f32 %v3093, 0.0
          %v3098 = vmax.f32 %v3094, 0.0
          %v3099 = vpack.c.bf16 %v3061, %v3061
          %v3100 = vpack.c.bf16 %v3062, %v3062
          %v3101 = vpack.c.bf16 %v3063, %v3063
          %v3102 = vpack.c.bf16 %v3064, %v3064
          %v3103 = vld [vmem:[#allocation15] sm:$0xff]
          %v3104 = vld [vmem:[#allocation15 + $0x8] sm:$0xff]
          %v3105 = vld [vmem:[#allocation15 + $0x10] sm:$0xff]
          %v3106 = vld [vmem:[#allocation15 + $0x18] sm:$0xff]
          %v3107 = vld [vmem:[#allocation15 + $0x20] sm:$0xff]
          %v3108 = vld [vmem:[#allocation15 + $0x28] sm:$0xff]
          %v3109 = vld [vmem:[#allocation15 + $0x30] sm:$0xff]
          %v3110 = vld [vmem:[#allocation15 + $0x38] sm:$0xff]
          %v3111 = vld [vmem:[#allocation15 + $0x40] sm:$0xff]
          %v3112 = vld [vmem:[#allocation15 + $0x48] sm:$0xff]
          %v3113 = vld [vmem:[#allocation15 + $0x50] sm:$0xff]
          %v3114 = vld [vmem:[#allocation15 + $0x58] sm:$0xff]
          %v3115 = vld [vmem:[#allocation15 + $0x60] sm:$0xff]
          %v3116 = vld [vmem:[#allocation15 + $0x68] sm:$0xff]
          %v3117 = vld [vmem:[#allocation15 + $0x70] sm:$0xff]
          %v3118 = vld [vmem:[#allocation15 + $0x78] sm:$0xff]
          %v3119 = vld [vmem:[#allocation15 + $0x80] sm:$0xff]
          %v3120 = vld [vmem:[#allocation15 + $0x88] sm:$0xff]
          %v3121 = vld [vmem:[#allocation15 + $0x90] sm:$0xff]
          %v3122 = vld [vmem:[#allocation15 + $0x98] sm:$0xff]
          %v3123 = vld [vmem:[#allocation15 + $0xa0] sm:$0xff]
          %v3124 = vld [vmem:[#allocation15 + $0xa8] sm:$0xff]
          %v3125 = vld [vmem:[#allocation15 + $0xb0] sm:$0xff]
          %v3126 = vld [vmem:[#allocation15 + $0xb8] sm:$0xff]
          %v3127 = vld [vmem:[#allocation15 + $0xc0] sm:$0xff]
          %v3128 = vld [vmem:[#allocation15 + $0xc8] sm:$0xff]
          %v3129 = vld [vmem:[#allocation15 + $0xd0] sm:$0xff]
          %v3130 = vld [vmem:[#allocation15 + $0xd8] sm:$0xff]
          %v3131 = vld [vmem:[#allocation15 + $0xe0] sm:$0xff]
          %v3132 = vld [vmem:[#allocation15 + $0xe8] sm:$0xff]
          %v3133 = vld [vmem:[#allocation15 + $0xf0] sm:$0xff]
          %v3134 = vld [vmem:[#allocation15 + $0xf8] sm:$0xff]
          %v3135 = vld [vmem:[#allocation15 + $0x100] sm:$0xff]
          %v3136 = vld [vmem:[#allocation15 + $0x108] sm:$0xff]
          %v3137 = vld [vmem:[#allocation15 + $0x110] sm:$0xff]
          %v3138 = vld [vmem:[#allocation15 + $0x118] sm:$0xff]
          %v3139 = vld [vmem:[#allocation15 + $0x120] sm:$0xff]
          %v3140 = vld [vmem:[#allocation15 + $0x128] sm:$0xff]
          %v3141 = vld [vmem:[#allocation15 + $0x130] sm:$0xff]
          %v3142 = vld [vmem:[#allocation15 + $0x138] sm:$0xff]
          %v3143 = vld [vmem:[#allocation15 + $0x140] sm:$0xff]
          %v3144 = vld [vmem:[#allocation15 + $0x148] sm:$0xff]
          %v3145 = vld [vmem:[#allocation15 + $0x150] sm:$0xff]
          %v3146 = vld [vmem:[#allocation15 + $0x158] sm:$0xff]
          %v3147 = vld [vmem:[#allocation15 + $0x160] sm:$0xff]
          %v3148 = vld [vmem:[#allocation15 + $0x168] sm:$0xff]
          %v3149 = vld [vmem:[#allocation15 + $0x170] sm:$0xff]
          %v3150 = vld [vmem:[#allocation15 + $0x178] sm:$0xff]
          %v3151 = vld [vmem:[#allocation15 + $0x180] sm:$0xff]
          %v3152 = vld [vmem:[#allocation15 + $0x188] sm:$0xff]
          %v3153 = vld [vmem:[#allocation15 + $0x190] sm:$0xff]
          %v3154 = vld [vmem:[#allocation15 + $0x198] sm:$0xff]
          %v3155 = vld [vmem:[#allocation15 + $0x1a0] sm:$0xff]
          %v3156 = vld [vmem:[#allocation15 + $0x1a8] sm:$0xff]
          %v3157 = vld [vmem:[#allocation15 + $0x1b0] sm:$0xff]
          %v3158 = vld [vmem:[#allocation15 + $0x1b8] sm:$0xff]
          %v3159 = vld [vmem:[#allocation15 + $0x1c0] sm:$0xff]
          %v3160 = vld [vmem:[#allocation15 + $0x1c8] sm:$0xff]
          %v3161 = vld [vmem:[#allocation15 + $0x1d0] sm:$0xff]
          %v3162 = vld [vmem:[#allocation15 + $0x1d8] sm:$0xff]
          %v3163 = vld [vmem:[#allocation15 + $0x1e0] sm:$0xff]
          %v3164 = vld [vmem:[#allocation15 + $0x1e8] sm:$0xff]
          %v3165 = vld [vmem:[#allocation15 + $0x1f0] sm:$0xff]
          %v3166 = vld [vmem:[#allocation15 + $0x1f8] sm:$0xff]
          %v3167 = vld [vmem:[#allocation15 + $0x200] sm:$0xff]
          %v3168 = vld [vmem:[#allocation15 + $0x208] sm:$0xff]
          %v3169 = vld [vmem:[#allocation15 + $0x210] sm:$0xff]
          %v3170 = vld [vmem:[#allocation15 + $0x218] sm:$0xff]
          %v3171 = vld [vmem:[#allocation15 + $0x220] sm:$0xff]
          %v3172 = vld [vmem:[#allocation15 + $0x228] sm:$0xff]
          %v3173 = vld [vmem:[#allocation15 + $0x230] sm:$0xff]
          %v3174 = vld [vmem:[#allocation15 + $0x238] sm:$0xff]
          %v3175 = vld [vmem:[#allocation15 + $0x240] sm:$0xff]
          %v3176 = vld [vmem:[#allocation15 + $0x248] sm:$0xff]
          %v3177 = vld [vmem:[#allocation15 + $0x250] sm:$0xff]
          %v3178 = vld [vmem:[#allocation15 + $0x258] sm:$0xff]
          %v3179 = vld [vmem:[#allocation15 + $0x260] sm:$0xff]
          %v3180 = vld [vmem:[#allocation15 + $0x268] sm:$0xff]
          %v3181 = vld [vmem:[#allocation15 + $0x270] sm:$0xff]
          %v3182 = vld [vmem:[#allocation15 + $0x278] sm:$0xff]
          %v3183 = vld [vmem:[#allocation15 + $0x280] sm:$0xff]
          %v3184 = vld [vmem:[#allocation15 + $0x288] sm:$0xff]
          %v3185 = vld [vmem:[#allocation15 + $0x290] sm:$0xff]
          %v3186 = vld [vmem:[#allocation15 + $0x298] sm:$0xff]
          %v3187 = vld [vmem:[#allocation15 + $0x2a0] sm:$0xff]
          %v3188 = vld [vmem:[#allocation15 + $0x2a8] sm:$0xff]
          %v3189 = vld [vmem:[#allocation15 + $0x2b0] sm:$0xff]
          %v3190 = vld [vmem:[#allocation15 + $0x2b8] sm:$0xff]
          %v3191 = vld [vmem:[#allocation15 + $0x2c0] sm:$0xff]
          %v3192 = vld [vmem:[#allocation15 + $0x2c8] sm:$0xff]
          %v3193 = vld [vmem:[#allocation15 + $0x2d0] sm:$0xff]
          %v3194 = vld [vmem:[#allocation15 + $0x2d8] sm:$0xff]
          %v3195 = vld [vmem:[#allocation15 + $0x2e0] sm:$0xff]
          %v3196 = vld [vmem:[#allocation15 + $0x2e8] sm:$0xff]
          %v3197 = vld [vmem:[#allocation15 + $0x2f0] sm:$0xff]
          %v3198 = vld [vmem:[#allocation15 + $0x2f8] sm:$0xff]
          %v3199 = vld [vmem:[#allocation15 + $0x300] sm:$0xff]
          %v3200 = vld [vmem:[#allocation15 + $0x308] sm:$0xff]
          %v3201 = vld [vmem:[#allocation15 + $0x310] sm:$0xff]
          %v3202 = vld [vmem:[#allocation15 + $0x318] sm:$0xff]
          %v3203 = vld [vmem:[#allocation15 + $0x320] sm:$0xff]
          %v3204 = vld [vmem:[#allocation15 + $0x328] sm:$0xff]
          %v3205 = vld [vmem:[#allocation15 + $0x330] sm:$0xff]
          %v3206 = vld [vmem:[#allocation15 + $0x338] sm:$0xff]
          %v3207 = vld [vmem:[#allocation15 + $0x340] sm:$0xff]
          %v3208 = vld [vmem:[#allocation15 + $0x348] sm:$0xff]
          %v3209 = vld [vmem:[#allocation15 + $0x350] sm:$0xff]
          %v3210 = vld [vmem:[#allocation15 + $0x358] sm:$0xff]
          %v3211 = vld [vmem:[#allocation15 + $0x360] sm:$0xff]
          %v3212 = vld [vmem:[#allocation15 + $0x368] sm:$0xff]
          %v3213 = vld [vmem:[#allocation15 + $0x370] sm:$0xff]
          %v3214 = vld [vmem:[#allocation15 + $0x378] sm:$0xff]
          %v3215 = vld [vmem:[#allocation15 + $0x380] sm:$0xff]
          %v3216 = vld [vmem:[#allocation15 + $0x388] sm:$0xff]
          %v3217 = vld [vmem:[#allocation15 + $0x390] sm:$0xff]
          %v3218 = vld [vmem:[#allocation15 + $0x398] sm:$0xff]
          %v3219 = vld [vmem:[#allocation15 + $0x3a0] sm:$0xff]
          %v3220 = vld [vmem:[#allocation15 + $0x3a8] sm:$0xff]
          %v3221 = vld [vmem:[#allocation15 + $0x3b0] sm:$0xff]
          %v3222 = vld [vmem:[#allocation15 + $0x3b8] sm:$0xff]
          %v3223 = vld [vmem:[#allocation15 + $0x3c0] sm:$0xff]
          %v3224 = vld [vmem:[#allocation15 + $0x3c8] sm:$0xff]
          %v3225 = vld [vmem:[#allocation15 + $0x3d0] sm:$0xff]
          %v3226 = vld [vmem:[#allocation15 + $0x3d8] sm:$0xff]
          %v3227 = vld [vmem:[#allocation15 + $0x3e0] sm:$0xff]
          %v3228 = vld [vmem:[#allocation15 + $0x3e8] sm:$0xff]
          %v3229 = vld [vmem:[#allocation15 + $0x3f0] sm:$0xff]
          %v3230 = vld [vmem:[#allocation15 + $0x3f8] sm:$0xff]
          %v3231 = vpack.c.bf16 %v3095, %v3095
          %v3232 = vpack.c.bf16 %v3096, %v3096
          %v3233 = vpack.c.bf16 %v3097, %v3097
          %v3234 = vpack.c.bf16 %v3098, %v3098
          %v3235 = vld [vmem:[#allocation16] sm:$0xff]
          %v3236 = vld [vmem:[#allocation16 + $0x8] sm:$0xff]
          %v3237 = vld [vmem:[#allocation16 + $0x10] sm:$0xff]
          %v3238 = vld [vmem:[#allocation16 + $0x18] sm:$0xff]
          %v3239 = vld [vmem:[#allocation16 + $0x20] sm:$0xff]
          %v3240 = vld [vmem:[#allocation16 + $0x28] sm:$0xff]
          %v3241 = vld [vmem:[#allocation16 + $0x30] sm:$0xff]
          %v3242 = vld [vmem:[#allocation16 + $0x38] sm:$0xff]
          %v3243 = vld [vmem:[#allocation16 + $0x40] sm:$0xff]
          %v3244 = vld [vmem:[#allocation16 + $0x48] sm:$0xff]
          %v3245 = vld [vmem:[#allocation16 + $0x50] sm:$0xff]
          %v3246 = vld [vmem:[#allocation16 + $0x58] sm:$0xff]
          %v3247 = vld [vmem:[#allocation16 + $0x60] sm:$0xff]
          %v3248 = vld [vmem:[#allocation16 + $0x68] sm:$0xff]
          %v3249 = vld [vmem:[#allocation16 + $0x70] sm:$0xff]
          %v3250 = vld [vmem:[#allocation16 + $0x78] sm:$0xff]
          %v3251 = vld [vmem:[#allocation16 + $0x80] sm:$0xff]
          %v3252 = vld [vmem:[#allocation16 + $0x88] sm:$0xff]
          %v3253 = vld [vmem:[#allocation16 + $0x90] sm:$0xff]
          %v3254 = vld [vmem:[#allocation16 + $0x98] sm:$0xff]
          %v3255 = vld [vmem:[#allocation16 + $0xa0] sm:$0xff]
          %v3256 = vld [vmem:[#allocation16 + $0xa8] sm:$0xff]
          %v3257 = vld [vmem:[#allocation16 + $0xb0] sm:$0xff]
          %v3258 = vld [vmem:[#allocation16 + $0xb8] sm:$0xff]
          %v3259 = vld [vmem:[#allocation16 + $0xc0] sm:$0xff]
          %v3260 = vld [vmem:[#allocation16 + $0xc8] sm:$0xff]
          %v3261 = vld [vmem:[#allocation16 + $0xd0] sm:$0xff]
          %v3262 = vld [vmem:[#allocation16 + $0xd8] sm:$0xff]
          %v3263 = vld [vmem:[#allocation16 + $0xe0] sm:$0xff]
          %v3264 = vld [vmem:[#allocation16 + $0xe8] sm:$0xff]
          %v3265 = vld [vmem:[#allocation16 + $0xf0] sm:$0xff]
          %v3266 = vld [vmem:[#allocation16 + $0xf8] sm:$0xff]
          %v3267 = vld [vmem:[#allocation16 + $0x100] sm:$0xff]
          %v3268 = vld [vmem:[#allocation16 + $0x108] sm:$0xff]
          %v3269 = vld [vmem:[#allocation16 + $0x110] sm:$0xff]
          %v3270 = vld [vmem:[#allocation16 + $0x118] sm:$0xff]
          %v3271 = vld [vmem:[#allocation16 + $0x120] sm:$0xff]
          %v3272 = vld [vmem:[#allocation16 + $0x128] sm:$0xff]
          %v3273 = vld [vmem:[#allocation16 + $0x130] sm:$0xff]
          %v3274 = vld [vmem:[#allocation16 + $0x138] sm:$0xff]
          %v3275 = vld [vmem:[#allocation16 + $0x140] sm:$0xff]
          %v3276 = vld [vmem:[#allocation16 + $0x148] sm:$0xff]
          %v3277 = vld [vmem:[#allocation16 + $0x150] sm:$0xff]
          %v3278 = vld [vmem:[#allocation16 + $0x158] sm:$0xff]
          %v3279 = vld [vmem:[#allocation16 + $0x160] sm:$0xff]
          %v3280 = vld [vmem:[#allocation16 + $0x168] sm:$0xff]
          %v3281 = vld [vmem:[#allocation16 + $0x170] sm:$0xff]
          %v3282 = vld [vmem:[#allocation16 + $0x178] sm:$0xff]
          %v3283 = vld [vmem:[#allocation16 + $0x180] sm:$0xff]
          %v3284 = vld [vmem:[#allocation16 + $0x188] sm:$0xff]
          %v3285 = vld [vmem:[#allocation16 + $0x190] sm:$0xff]
          %v3286 = vld [vmem:[#allocation16 + $0x198] sm:$0xff]
          %v3287 = vld [vmem:[#allocation16 + $0x1a0] sm:$0xff]
          %v3288 = vld [vmem:[#allocation16 + $0x1a8] sm:$0xff]
          %v3289 = vld [vmem:[#allocation16 + $0x1b0] sm:$0xff]
          %v3290 = vld [vmem:[#allocation16 + $0x1b8] sm:$0xff]
          %v3291 = vld [vmem:[#allocation16 + $0x1c0] sm:$0xff]
          %v3292 = vld [vmem:[#allocation16 + $0x1c8] sm:$0xff]
          %v3293 = vld [vmem:[#allocation16 + $0x1d0] sm:$0xff]
          %v3294 = vld [vmem:[#allocation16 + $0x1d8] sm:$0xff]
          %v3295 = vld [vmem:[#allocation16 + $0x1e0] sm:$0xff]
          %v3296 = vld [vmem:[#allocation16 + $0x1e8] sm:$0xff]
          %v3297 = vld [vmem:[#allocation16 + $0x1f0] sm:$0xff]
          %v3298 = vld [vmem:[#allocation16 + $0x1f8] sm:$0xff]
          %v3299 = vld [vmem:[#allocation16 + $0x200] sm:$0xff]
          %v3300 = vld [vmem:[#allocation16 + $0x208] sm:$0xff]
          %v3301 = vld [vmem:[#allocation16 + $0x210] sm:$0xff]
          %v3302 = vld [vmem:[#allocation16 + $0x218] sm:$0xff]
          %v3303 = vld [vmem:[#allocation16 + $0x220] sm:$0xff]
          %v3304 = vld [vmem:[#allocation16 + $0x228] sm:$0xff]
          %v3305 = vld [vmem:[#allocation16 + $0x230] sm:$0xff]
          %v3306 = vld [vmem:[#allocation16 + $0x238] sm:$0xff]
          %v3307 = vld [vmem:[#allocation16 + $0x240] sm:$0xff]
          %v3308 = vld [vmem:[#allocation16 + $0x248] sm:$0xff]
          %v3309 = vld [vmem:[#allocation16 + $0x250] sm:$0xff]
          %v3310 = vld [vmem:[#allocation16 + $0x258] sm:$0xff]
          %v3311 = vld [vmem:[#allocation16 + $0x260] sm:$0xff]
          %v3312 = vld [vmem:[#allocation16 + $0x268] sm:$0xff]
          %v3313 = vld [vmem:[#allocation16 + $0x270] sm:$0xff]
          %v3314 = vld [vmem:[#allocation16 + $0x278] sm:$0xff]
          %v3315 = vld [vmem:[#allocation16 + $0x280] sm:$0xff]
          %v3316 = vld [vmem:[#allocation16 + $0x288] sm:$0xff]
          %v3317 = vld [vmem:[#allocation16 + $0x290] sm:$0xff]
          %v3318 = vld [vmem:[#allocation16 + $0x298] sm:$0xff]
          %v3319 = vld [vmem:[#allocation16 + $0x2a0] sm:$0xff]
          %v3320 = vld [vmem:[#allocation16 + $0x2a8] sm:$0xff]
          %v3321 = vld [vmem:[#allocation16 + $0x2b0] sm:$0xff]
          %v3322 = vld [vmem:[#allocation16 + $0x2b8] sm:$0xff]
          %v3323 = vld [vmem:[#allocation16 + $0x2c0] sm:$0xff]
          %v3324 = vld [vmem:[#allocation16 + $0x2c8] sm:$0xff]
          %v3325 = vld [vmem:[#allocation16 + $0x2d0] sm:$0xff]
          %v3326 = vld [vmem:[#allocation16 + $0x2d8] sm:$0xff]
          %v3327 = vld [vmem:[#allocation16 + $0x2e0] sm:$0xff]
          %v3328 = vld [vmem:[#allocation16 + $0x2e8] sm:$0xff]
          %v3329 = vld [vmem:[#allocation16 + $0x2f0] sm:$0xff]
          %v3330 = vld [vmem:[#allocation16 + $0x2f8] sm:$0xff]
          %v3331 = vld [vmem:[#allocation16 + $0x300] sm:$0xff]
          %v3332 = vld [vmem:[#allocation16 + $0x308] sm:$0xff]
          %v3333 = vld [vmem:[#allocation16 + $0x310] sm:$0xff]
          %v3334 = vld [vmem:[#allocation16 + $0x318] sm:$0xff]
          %v3335 = vld [vmem:[#allocation16 + $0x320] sm:$0xff]
          %v3336 = vld [vmem:[#allocation16 + $0x328] sm:$0xff]
          %v3337 = vld [vmem:[#allocation16 + $0x330] sm:$0xff]
          %v3338 = vld [vmem:[#allocation16 + $0x338] sm:$0xff]
          %v3339 = vld [vmem:[#allocation16 + $0x340] sm:$0xff]
          %v3340 = vld [vmem:[#allocation16 + $0x348] sm:$0xff]
          %v3341 = vld [vmem:[#allocation16 + $0x350] sm:$0xff]
          %v3342 = vld [vmem:[#allocation16 + $0x358] sm:$0xff]
          %v3343 = vld [vmem:[#allocation16 + $0x360] sm:$0xff]
          %v3344 = vld [vmem:[#allocation16 + $0x368] sm:$0xff]
          %v3345 = vld [vmem:[#allocation16 + $0x370] sm:$0xff]
          %v3346 = vld [vmem:[#allocation16 + $0x378] sm:$0xff]
          %v3347 = vld [vmem:[#allocation16 + $0x380] sm:$0xff]
          %v3348 = vld [vmem:[#allocation16 + $0x388] sm:$0xff]
          %v3349 = vld [vmem:[#allocation16 + $0x390] sm:$0xff]
          %v3350 = vld [vmem:[#allocation16 + $0x398] sm:$0xff]
          %v3351 = vld [vmem:[#allocation16 + $0x3a0] sm:$0xff]
          %v3352 = vld [vmem:[#allocation16 + $0x3a8] sm:$0xff]
          %v3353 = vld [vmem:[#allocation16 + $0x3b0] sm:$0xff]
          %v3354 = vld [vmem:[#allocation16 + $0x3b8] sm:$0xff]
          %v3355 = vld [vmem:[#allocation16 + $0x3c0] sm:$0xff]
          %v3356 = vld [vmem:[#allocation16 + $0x3c8] sm:$0xff]
          %v3357 = vld [vmem:[#allocation16 + $0x3d0] sm:$0xff]
          %v3358 = vld [vmem:[#allocation16 + $0x3d8] sm:$0xff]
          %v3359 = vld [vmem:[#allocation16 + $0x3e0] sm:$0xff]
          %v3360 = vld [vmem:[#allocation16 + $0x3e8] sm:$0xff]
          %v3361 = vld [vmem:[#allocation16 + $0x3f0] sm:$0xff]
          %v3362 = vld [vmem:[#allocation16 + $0x3f8] sm:$0xff]
          %v3491 = vunpack.c.l.b16 %v3235
          %v3492 = vunpack.c.h.b16 %v3235
          %v3493 = vunpack.c.l.b16 %v3236
          %v3494 = vunpack.c.h.b16 %v3236
          %v3495 = vunpack.c.l.b16 %v3237
          %v3496 = vunpack.c.h.b16 %v3237
          %v3497 = vunpack.c.l.b16 %v3238
          %v3498 = vunpack.c.h.b16 %v3238
          %v3499 = vunpack.c.l.b16 %v3239
          %v3500 = vunpack.c.h.b16 %v3239
          %v3501 = vunpack.c.l.b16 %v3240
          %v3502 = vunpack.c.h.b16 %v3240
          %v3503 = vunpack.c.l.b16 %v3241
          %v3504 = vunpack.c.h.b16 %v3241
          %v3505 = vunpack.c.l.b16 %v3242
          %v3506 = vunpack.c.h.b16 %v3242
          %v3507 = vunpack.c.l.b16 %v3243
          %v3508 = vunpack.c.h.b16 %v3243
          %v3509 = vunpack.c.l.b16 %v3244
          %v3510 = vunpack.c.h.b16 %v3244
          %v3511 = vunpack.c.l.b16 %v3245
          %v3512 = vunpack.c.h.b16 %v3245
          %v3513 = vunpack.c.l.b16 %v3246
          %v3514 = vunpack.c.h.b16 %v3246
          %v3515 = vunpack.c.l.b16 %v3247
          %v3516 = vunpack.c.h.b16 %v3247
          %v3517 = vunpack.c.l.b16 %v3248
          %v3518 = vunpack.c.h.b16 %v3248
          %v3519 = vunpack.c.l.b16 %v3249
          %v3520 = vunpack.c.h.b16 %v3249
          %v3521 = vunpack.c.l.b16 %v3250
          %v3522 = vunpack.c.h.b16 %v3250
          %v3523 = vunpack.c.l.b16 %v3251
          %v3524 = vunpack.c.h.b16 %v3251
          %v3525 = vunpack.c.l.b16 %v3252
          %v3526 = vunpack.c.h.b16 %v3252
          %v3527 = vunpack.c.l.b16 %v3253
          %v3528 = vunpack.c.h.b16 %v3253
          %v3529 = vunpack.c.l.b16 %v3254
          %v3530 = vunpack.c.h.b16 %v3254
          %v3531 = vunpack.c.l.b16 %v3255
          %v3532 = vunpack.c.h.b16 %v3255
          %v3533 = vunpack.c.l.b16 %v3256
          %v3534 = vunpack.c.h.b16 %v3256
          %v3535 = vunpack.c.l.b16 %v3257
          %v3536 = vunpack.c.h.b16 %v3257
          %v3537 = vunpack.c.l.b16 %v3258
          %v3538 = vunpack.c.h.b16 %v3258
          %v3539 = vunpack.c.l.b16 %v3259
          %v3540 = vunpack.c.h.b16 %v3259
          %v3541 = vunpack.c.l.b16 %v3260
          %v3542 = vunpack.c.h.b16 %v3260
          %v3543 = vunpack.c.l.b16 %v3261
          %v3544 = vunpack.c.h.b16 %v3261
          %v3545 = vunpack.c.l.b16 %v3262
          %v3546 = vunpack.c.h.b16 %v3262
          %v3547 = vunpack.c.l.b16 %v3263
          %v3548 = vunpack.c.h.b16 %v3263
          %v3549 = vunpack.c.l.b16 %v3264
          %v3550 = vunpack.c.h.b16 %v3264
          %v3551 = vunpack.c.l.b16 %v3265
          %v3552 = vunpack.c.h.b16 %v3265
          %v3553 = vunpack.c.l.b16 %v3266
          %v3554 = vunpack.c.h.b16 %v3266
          %v3555 = vunpack.c.l.b16 %v3267
          %v3556 = vunpack.c.h.b16 %v3267
          %v3557 = vunpack.c.l.b16 %v3268
          %v3558 = vunpack.c.h.b16 %v3268
          %v3559 = vunpack.c.l.b16 %v3269
          %v3560 = vunpack.c.h.b16 %v3269
          %v3561 = vunpack.c.l.b16 %v3270
          %v3562 = vunpack.c.h.b16 %v3270
          %v3563 = vunpack.c.l.b16 %v3271
          %v3564 = vunpack.c.h.b16 %v3271
          %v3565 = vunpack.c.l.b16 %v3272
          %v3566 = vunpack.c.h.b16 %v3272
          %v3567 = vunpack.c.l.b16 %v3273
          %v3568 = vunpack.c.h.b16 %v3273
          %v3569 = vunpack.c.l.b16 %v3274
          %v3570 = vunpack.c.h.b16 %v3274
          %v3571 = vunpack.c.l.b16 %v3275
          %v3572 = vunpack.c.h.b16 %v3275
          %v3573 = vunpack.c.l.b16 %v3276
          %v3574 = vunpack.c.h.b16 %v3276
          %v3575 = vunpack.c.l.b16 %v3277
          %v3576 = vunpack.c.h.b16 %v3277
          %v3577 = vunpack.c.l.b16 %v3278
          %v3578 = vunpack.c.h.b16 %v3278
          %v3579 = vunpack.c.l.b16 %v3279
          %v3580 = vunpack.c.h.b16 %v3279
          %v3581 = vunpack.c.l.b16 %v3280
          %v3582 = vunpack.c.h.b16 %v3280
          %v3583 = vunpack.c.l.b16 %v3281
          %v3584 = vunpack.c.h.b16 %v3281
          %v3585 = vunpack.c.l.b16 %v3282
          %v3586 = vunpack.c.h.b16 %v3282
          %v3587 = vunpack.c.l.b16 %v3283
          %v3588 = vunpack.c.h.b16 %v3283
          %v3589 = vunpack.c.l.b16 %v3284
          %v3590 = vunpack.c.h.b16 %v3284
          %v3591 = vunpack.c.l.b16 %v3285
          %v3592 = vunpack.c.h.b16 %v3285
          %v3593 = vunpack.c.l.b16 %v3286
          %v3594 = vunpack.c.h.b16 %v3286
          %v3595 = vunpack.c.l.b16 %v3287
          %v3596 = vunpack.c.h.b16 %v3287
          %v3597 = vunpack.c.l.b16 %v3288
          %v3598 = vunpack.c.h.b16 %v3288
          %v3599 = vunpack.c.l.b16 %v3289
          %v3600 = vunpack.c.h.b16 %v3289
          %v3601 = vunpack.c.l.b16 %v3290
          %v3602 = vunpack.c.h.b16 %v3290
          %v3603 = vunpack.c.l.b16 %v3291
          %v3604 = vunpack.c.h.b16 %v3291
          %v3605 = vunpack.c.l.b16 %v3292
          %v3606 = vunpack.c.h.b16 %v3292
          %v3607 = vunpack.c.l.b16 %v3293
          %v3608 = vunpack.c.h.b16 %v3293
          %v3609 = vunpack.c.l.b16 %v3294
          %v3610 = vunpack.c.h.b16 %v3294
          %v3611 = vunpack.c.l.b16 %v3295
          %v3612 = vunpack.c.h.b16 %v3295
          %v3613 = vunpack.c.l.b16 %v3296
          %v3614 = vunpack.c.h.b16 %v3296
          %v3615 = vunpack.c.l.b16 %v3297
          %v3616 = vunpack.c.h.b16 %v3297
          %v3617 = vunpack.c.l.b16 %v3298
          %v3618 = vunpack.c.h.b16 %v3298
          %v3619 = vunpack.c.l.b16 %v3299
          %v3620 = vunpack.c.h.b16 %v3299
          %v3621 = vunpack.c.l.b16 %v3300
          %v3622 = vunpack.c.h.b16 %v3300
          %v3623 = vunpack.c.l.b16 %v3301
          %v3624 = vunpack.c.h.b16 %v3301
          %v3625 = vunpack.c.l.b16 %v3302
          %v3626 = vunpack.c.h.b16 %v3302
          %v3627 = vunpack.c.l.b16 %v3303
          %v3628 = vunpack.c.h.b16 %v3303
          %v3629 = vunpack.c.l.b16 %v3304
          %v3630 = vunpack.c.h.b16 %v3304
          %v3631 = vunpack.c.l.b16 %v3305
          %v3632 = vunpack.c.h.b16 %v3305
          %v3633 = vunpack.c.l.b16 %v3306
          %v3634 = vunpack.c.h.b16 %v3306
          %v3635 = vunpack.c.l.b16 %v3307
          %v3636 = vunpack.c.h.b16 %v3307
          %v3637 = vunpack.c.l.b16 %v3308
          %v3638 = vunpack.c.h.b16 %v3308
          %v3639 = vunpack.c.l.b16 %v3309
          %v3640 = vunpack.c.h.b16 %v3309
          %v3641 = vunpack.c.l.b16 %v3310
          %v3642 = vunpack.c.h.b16 %v3310
          %v3643 = vunpack.c.l.b16 %v3311
          %v3644 = vunpack.c.h.b16 %v3311
          %v3645 = vunpack.c.l.b16 %v3312
          %v3646 = vunpack.c.h.b16 %v3312
          %v3647 = vunpack.c.l.b16 %v3313
          %v3648 = vunpack.c.h.b16 %v3313
          %v3649 = vunpack.c.l.b16 %v3314
          %v3650 = vunpack.c.h.b16 %v3314
          %v3651 = vunpack.c.l.b16 %v3315
          %v3652 = vunpack.c.h.b16 %v3315
          %v3653 = vunpack.c.l.b16 %v3316
          %v3654 = vunpack.c.h.b16 %v3316
          %v3655 = vunpack.c.l.b16 %v3317
          %v3656 = vunpack.c.h.b16 %v3317
          %v3657 = vunpack.c.l.b16 %v3318
          %v3658 = vunpack.c.h.b16 %v3318
          %v3659 = vunpack.c.l.b16 %v3319
          %v3660 = vunpack.c.h.b16 %v3319
          %v3661 = vunpack.c.l.b16 %v3320
          %v3662 = vunpack.c.h.b16 %v3320
          %v3663 = vunpack.c.l.b16 %v3321
          %v3664 = vunpack.c.h.b16 %v3321
          %v3665 = vunpack.c.l.b16 %v3322
          %v3666 = vunpack.c.h.b16 %v3322
          %v3667 = vunpack.c.l.b16 %v3323
          %v3668 = vunpack.c.h.b16 %v3323
          %v3669 = vunpack.c.l.b16 %v3324
          %v3670 = vunpack.c.h.b16 %v3324
          %v3671 = vunpack.c.l.b16 %v3325
          %v3672 = vunpack.c.h.b16 %v3325
          %v3673 = vunpack.c.l.b16 %v3326
          %v3674 = vunpack.c.h.b16 %v3326
          %v3675 = vunpack.c.l.b16 %v3327
          %v3676 = vunpack.c.h.b16 %v3327
          %v3677 = vunpack.c.l.b16 %v3328
          %v3678 = vunpack.c.h.b16 %v3328
          %v3679 = vunpack.c.l.b16 %v3329
          %v3680 = vunpack.c.h.b16 %v3329
          %v3681 = vunpack.c.l.b16 %v3330
          %v3682 = vunpack.c.h.b16 %v3330
          %v3683 = vunpack.c.l.b16 %v3331
          %v3684 = vunpack.c.h.b16 %v3331
          %v3685 = vunpack.c.l.b16 %v3332
          %v3686 = vunpack.c.h.b16 %v3332
          %v3687 = vunpack.c.l.b16 %v3333
          %v3688 = vunpack.c.h.b16 %v3333
          %v3689 = vunpack.c.l.b16 %v3334
          %v3690 = vunpack.c.h.b16 %v3334
          %v3691 = vunpack.c.l.b16 %v3335
          %v3692 = vunpack.c.h.b16 %v3335
          %v3693 = vunpack.c.l.b16 %v3336
          %v3694 = vunpack.c.h.b16 %v3336
          %v3695 = vunpack.c.l.b16 %v3337
          %v3696 = vunpack.c.h.b16 %v3337
          %v3697 = vunpack.c.l.b16 %v3338
          %v3698 = vunpack.c.h.b16 %v3338
          %v3699 = vunpack.c.l.b16 %v3339
          %v3700 = vunpack.c.h.b16 %v3339
          %v3701 = vunpack.c.l.b16 %v3340
          %v3702 = vunpack.c.h.b16 %v3340
          %v3703 = vunpack.c.l.b16 %v3341
          %v3704 = vunpack.c.h.b16 %v3341
          %v3705 = vunpack.c.l.b16 %v3342
          %v3706 = vunpack.c.h.b16 %v3342
          %v3707 = vunpack.c.l.b16 %v3343
          %v3708 = vunpack.c.h.b16 %v3343
          %v3709 = vunpack.c.l.b16 %v3344
          %v3710 = vunpack.c.h.b16 %v3344
          %v3711 = vunpack.c.l.b16 %v3345
          %v3712 = vunpack.c.h.b16 %v3345
          %v3713 = vunpack.c.l.b16 %v3346
          %v3714 = vunpack.c.h.b16 %v3346
          %v3715 = vunpack.c.l.b16 %v3347
          %v3716 = vunpack.c.h.b16 %v3347
          %v3717 = vunpack.c.l.b16 %v3348
          %v3718 = vunpack.c.h.b16 %v3348
          %v3719 = vunpack.c.l.b16 %v3349
          %v3720 = vunpack.c.h.b16 %v3349
          %v3721 = vunpack.c.l.b16 %v3350
          %v3722 = vunpack.c.h.b16 %v3350
          %v3723 = vunpack.c.l.b16 %v3351
          %v3724 = vunpack.c.h.b16 %v3351
          %v3725 = vunpack.c.l.b16 %v3352
          %v3726 = vunpack.c.h.b16 %v3352
          %v3727 = vunpack.c.l.b16 %v3353
          %v3728 = vunpack.c.h.b16 %v3353
          %v3729 = vunpack.c.l.b16 %v3354
          %v3730 = vunpack.c.h.b16 %v3354
          %v3731 = vunpack.c.l.b16 %v3355
          %v3732 = vunpack.c.h.b16 %v3355
          %v3733 = vunpack.c.l.b16 %v3356
          %v3734 = vunpack.c.h.b16 %v3356
          %v3735 = vunpack.c.l.b16 %v3357
          %v3736 = vunpack.c.h.b16 %v3357
          %v3737 = vunpack.c.l.b16 %v3358
          %v3738 = vunpack.c.h.b16 %v3358
          %v3739 = vunpack.c.l.b16 %v3359
          %v3740 = vunpack.c.h.b16 %v3359
          %v3741 = vunpack.c.l.b16 %v3360
          %v3742 = vunpack.c.h.b16 %v3360
          %v3743 = vunpack.c.l.b16 %v3361
          %v3744 = vunpack.c.h.b16 %v3361
          %v3745 = vunpack.c.l.b16 %v3362
          %v3746 = vunpack.c.h.b16 %v3362
          %v3747 = vpack.c.b16 %v3495, %v3491
          %v3748 = vpack.c.b16 %v3496, %v3492
          %v3749 = vpack.c.b16 %v3497, %v3493
          %v3750 = vpack.c.b16 %v3498, %v3494
          %v3751 = vpack.c.b16 %v3503, %v3499
          %v3752 = vpack.c.b16 %v3504, %v3500
          %v3753 = vpack.c.b16 %v3505, %v3501
          %v3754 = vpack.c.b16 %v3506, %v3502
          %v3755 = vpack.c.b16 %v3511, %v3507
          %v3756 = vpack.c.b16 %v3512, %v3508
          %v3757 = vpack.c.b16 %v3513, %v3509
          %v3758 = vpack.c.b16 %v3514, %v3510
          %v3759 = vpack.c.b16 %v3519, %v3515
          %v3760 = vpack.c.b16 %v3520, %v3516
          %v3761 = vpack.c.b16 %v3521, %v3517
          %v3762 = vpack.c.b16 %v3522, %v3518
          %v3763 = vpack.c.b16 %v3527, %v3523
          %v3764 = vpack.c.b16 %v3528, %v3524
          %v3765 = vpack.c.b16 %v3529, %v3525
          %v3766 = vpack.c.b16 %v3530, %v3526
          %v3767 = vpack.c.b16 %v3535, %v3531
          %v3768 = vpack.c.b16 %v3536, %v3532
          %v3769 = vpack.c.b16 %v3537, %v3533
          %v3770 = vpack.c.b16 %v3538, %v3534
          %v3771 = vpack.c.b16 %v3543, %v3539
          %v3772 = vpack.c.b16 %v3544, %v3540
          %v3773 = vpack.c.b16 %v3545, %v3541
          %v3774 = vpack.c.b16 %v3546, %v3542
          %v3775 = vpack.c.b16 %v3551, %v3547
          %v3776 = vpack.c.b16 %v3552, %v3548
          %v3777 = vpack.c.b16 %v3553, %v3549
          %v3778 = vpack.c.b16 %v3554, %v3550
          %v3779 = vpack.c.b16 %v3559, %v3555
          %v3780 = vpack.c.b16 %v3560, %v3556
          %v3781 = vpack.c.b16 %v3561, %v3557
          %v3782 = vpack.c.b16 %v3562, %v3558
          %v3783 = vpack.c.b16 %v3567, %v3563
          %v3784 = vpack.c.b16 %v3568, %v3564
          %v3785 = vpack.c.b16 %v3569, %v3565
          %v3786 = vpack.c.b16 %v3570, %v3566
          %v3787 = vpack.c.b16 %v3575, %v3571
          %v3788 = vpack.c.b16 %v3576, %v3572
          %v3789 = vpack.c.b16 %v3577, %v3573
          %v3790 = vpack.c.b16 %v3578, %v3574
          %v3791 = vpack.c.b16 %v3583, %v3579
          %v3792 = vpack.c.b16 %v3584, %v3580
          %v3793 = vpack.c.b16 %v3585, %v3581
          %v3794 = vpack.c.b16 %v3586, %v3582
          %v3795 = vpack.c.b16 %v3591, %v3587
          %v3796 = vpack.c.b16 %v3592, %v3588
          %v3797 = vpack.c.b16 %v3593, %v3589
          %v3798 = vpack.c.b16 %v3594, %v3590
          %v3799 = vpack.c.b16 %v3599, %v3595
          %v3800 = vpack.c.b16 %v3600, %v3596
          %v3801 = vpack.c.b16 %v3601, %v3597
          %v3802 = vpack.c.b16 %v3602, %v3598
          %v3803 = vpack.c.b16 %v3607, %v3603
          %v3804 = vpack.c.b16 %v3608, %v3604
          %v3805 = vpack.c.b16 %v3609, %v3605
          %v3806 = vpack.c.b16 %v3610, %v3606
          %v3807 = vpack.c.b16 %v3615, %v3611
          %v3808 = vpack.c.b16 %v3616, %v3612
          %v3809 = vpack.c.b16 %v3617, %v3613
          %v3810 = vpack.c.b16 %v3618, %v3614
          %v3811 = vpack.c.b16 %v3623, %v3619
          %v3812 = vpack.c.b16 %v3624, %v3620
          %v3813 = vpack.c.b16 %v3625, %v3621
          %v3814 = vpack.c.b16 %v3626, %v3622
          %v3815 = vpack.c.b16 %v3631, %v3627
          %v3816 = vpack.c.b16 %v3632, %v3628
          %v3817 = vpack.c.b16 %v3633, %v3629
          %v3818 = vpack.c.b16 %v3634, %v3630
          %v3819 = vpack.c.b16 %v3639, %v3635
          %v3820 = vpack.c.b16 %v3640, %v3636
          %v3821 = vpack.c.b16 %v3641, %v3637
          %v3822 = vpack.c.b16 %v3642, %v3638
          %v3823 = vpack.c.b16 %v3647, %v3643
          %v3824 = vpack.c.b16 %v3648, %v3644
          %v3825 = vpack.c.b16 %v3649, %v3645
          %v3826 = vpack.c.b16 %v3650, %v3646
          %v3827 = vpack.c.b16 %v3655, %v3651
          %v3828 = vpack.c.b16 %v3656, %v3652
          %v3829 = vpack.c.b16 %v3657, %v3653
          %v3830 = vpack.c.b16 %v3658, %v3654
          %v3831 = vpack.c.b16 %v3663, %v3659
          %v3832 = vpack.c.b16 %v3664, %v3660
          %v3833 = vpack.c.b16 %v3665, %v3661
          %v3834 = vpack.c.b16 %v3666, %v3662
          %v3835 = vpack.c.b16 %v3671, %v3667
          %v3836 = vpack.c.b16 %v3672, %v3668
          %v3837 = vpack.c.b16 %v3673, %v3669
          %v3838 = vpack.c.b16 %v3674, %v3670
          %v3839 = vpack.c.b16 %v3679, %v3675
          %v3840 = vpack.c.b16 %v3680, %v3676
          %v3841 = vpack.c.b16 %v3681, %v3677
          %v3842 = vpack.c.b16 %v3682, %v3678
          %v3843 = vpack.c.b16 %v3687, %v3683
          %v3844 = vpack.c.b16 %v3688, %v3684
          %v3845 = vpack.c.b16 %v3689, %v3685
          %v3846 = vpack.c.b16 %v3690, %v3686
          %v3847 = vpack.c.b16 %v3695, %v3691
          %v3848 = vpack.c.b16 %v3696, %v3692
          %v3849 = vpack.c.b16 %v3697, %v3693
          %v3850 = vpack.c.b16 %v3698, %v3694
          %v3851 = vpack.c.b16 %v3703, %v3699
          %v3852 = vpack.c.b16 %v3704, %v3700
          %v3853 = vpack.c.b16 %v3705, %v3701
          %v3854 = vpack.c.b16 %v3706, %v3702
          %v3855 = vpack.c.b16 %v3711, %v3707
          %v3856 = vpack.c.b16 %v3712, %v3708
          %v3857 = vpack.c.b16 %v3713, %v3709
          %v3858 = vpack.c.b16 %v3714, %v3710
          %v3859 = vpack.c.b16 %v3719, %v3715
          %v3860 = vpack.c.b16 %v3720, %v3716
          %v3861 = vpack.c.b16 %v3721, %v3717
          %v3862 = vpack.c.b16 %v3722, %v3718
          %v3863 = vpack.c.b16 %v3727, %v3723
          %v3864 = vpack.c.b16 %v3728, %v3724
          %v3865 = vpack.c.b16 %v3729, %v3725
          %v3866 = vpack.c.b16 %v3730, %v3726
          %v3867 = vpack.c.b16 %v3735, %v3731
          %v3868 = vpack.c.b16 %v3736, %v3732
          %v3869 = vpack.c.b16 %v3737, %v3733
          %v3870 = vpack.c.b16 %v3738, %v3734
          %v3871 = vpack.c.b16 %v3743, %v3739
          %v3872 = vpack.c.b16 %v3744, %v3740
          %v3873 = vpack.c.b16 %v3745, %v3741
          %v3874 = vpack.c.b16 %v3746, %v3742
          %4003 = vmatprep.subr.bf16.mxu0 %v3748
          %4004 = vmatpush1.bf16.msra.mxu0 %v3747
          %4005 = vmatprep.subr.bf16.mxu0 %v3752
          %4006 = vmatpush1.bf16.msra.mxu0 %v3751
          %4007 = vmatprep.subr.bf16.mxu0 %v3756
          %4008 = vmatpush1.bf16.msra.mxu0 %v3755
          %4009 = vmatprep.subr.bf16.mxu0 %v3760
          %4010 = vmatpush1.bf16.msra.mxu0 %v3759
          %4011 = vmatprep.subr.bf16.mxu0 %v3764
          %4012 = vmatpush1.bf16.msra.mxu0 %v3763
          %4013 = vmatprep.subr.bf16.mxu0 %v3768
          %4014 = vmatpush1.bf16.msra.mxu0 %v3767
          %4015 = vmatprep.subr.bf16.mxu0 %v3772
          %4016 = vmatpush1.bf16.msra.mxu0 %v3771
          %4017 = vmatprep.subr.bf16.mxu0 %v3776
          %4018 = vmatpush1.bf16.msra.mxu0 %v3775
          %4019 = vmatprep.subr.bf16.mxu0 %v3780
          %4020 = vmatpush1.bf16.msra.mxu0 %v3779
          %4021 = vmatprep.subr.bf16.mxu0 %v3784
          %4022 = vmatpush1.bf16.msra.mxu0 %v3783
          %4023 = vmatprep.subr.bf16.mxu0 %v3788
          %4024 = vmatpush1.bf16.msra.mxu0 %v3787
          %4025 = vmatprep.subr.bf16.mxu0 %v3792
          %4026 = vmatpush1.bf16.msra.mxu0 %v3791
          %4027 = vmatprep.subr.bf16.mxu0 %v3796
          %4028 = vmatpush1.bf16.msra.mxu0 %v3795
          %4029 = vmatprep.subr.bf16.mxu0 %v3800
          %4030 = vmatpush1.bf16.msra.mxu0 %v3799
          %4031 = vmatprep.subr.bf16.mxu0 %v3804
          %4032 = vmatpush1.bf16.msra.mxu0 %v3803
          %4033 = vmatprep.subr.bf16.mxu0 %v3808
          %4034 = vmatpush1.bf16.msra.mxu0 %v3807
          %4035 = vmatprep.mubr.bf16.mxu0 %v3232
          %4036 = vmatmul.mubr.bf16.gmra.mrb[0].mxu0 %v3231
          %v4037 = vpop.f32.mrb[0].mxu0
          %v4038 = vadd.f32 0.0, %v4037
          %v4039 = vpop.f32.mrb[0].mxu0
          %v4040 = vadd.f32 0.0, %v4039
          %v4041 = vpop.f32.mrb[0].mxu0
          %v4042 = vpop.f32.mrb[0].mxu0
          %4043 = vdwg.mxu0
          %4044 = vmatprep.subr.bf16.mxu0 %v3812
          %4045 = vmatpush1.bf16.msra.mxu0 %v3811
          %4046 = vmatprep.subr.bf16.mxu0 %v3816
          %4047 = vmatpush1.bf16.msra.mxu0 %v3815
          %4048 = vmatprep.subr.bf16.mxu0 %v3820
          %4049 = vmatpush1.bf16.msra.mxu0 %v3819
          %4050 = vmatprep.subr.bf16.mxu0 %v3824
          %4051 = vmatpush1.bf16.msra.mxu0 %v3823
          %4052 = vmatprep.subr.bf16.mxu0 %v3828
          %4053 = vmatpush1.bf16.msra.mxu0 %v3827
          %4054 = vmatprep.subr.bf16.mxu0 %v3832
          %4055 = vmatpush1.bf16.msra.mxu0 %v3831
          %4056 = vmatprep.subr.bf16.mxu0 %v3836
          %4057 = vmatpush1.bf16.msra.mxu0 %v3835
          %4058 = vmatprep.subr.bf16.mxu0 %v3840
          %4059 = vmatpush1.bf16.msra.mxu0 %v3839
          %4060 = vmatprep.subr.bf16.mxu0 %v3844
          %4061 = vmatpush1.bf16.msra.mxu0 %v3843
          %4062 = vmatprep.subr.bf16.mxu0 %v3848
          %4063 = vmatpush1.bf16.msra.mxu0 %v3847
          %4064 = vmatprep.subr.bf16.mxu0 %v3852
          %4065 = vmatpush1.bf16.msra.mxu0 %v3851
          %4066 = vmatprep.subr.bf16.mxu0 %v3856
          %4067 = vmatpush1.bf16.msra.mxu0 %v3855
          %4068 = vmatprep.subr.bf16.mxu0 %v3860
          %4069 = vmatpush1.bf16.msra.mxu0 %v3859
          %4070 = vmatprep.subr.bf16.mxu0 %v3864
          %4071 = vmatpush1.bf16.msra.mxu0 %v3863
          %4072 = vmatprep.subr.bf16.mxu0 %v3868
          %4073 = vmatpush1.bf16.msra.mxu0 %v3867
          %4074 = vmatprep.subr.bf16.mxu0 %v3872
          %4075 = vmatpush1.bf16.msra.mxu0 %v3871
          %4076 = vmatprep.mubr.bf16.mxu0 %v3234
          %4077 = vmatmul.mubr.bf16.gmra.mrb[0].mxu0 %v3233
          %v4078 = vpop.f32.mrb[0].mxu0
          %v4079 = vadd.f32 %v4038, %v4078
          %v4080 = vpop.f32.mrb[0].mxu0
          %v4081 = vadd.f32 %v4040, %v4080
          %v4082 = vpop.f32.mrb[0].mxu0
          %v4083 = vpop.f32.mrb[0].mxu0
          %4084 = vdwg.mxu0
          %4085 = vmatprep.subr.bf16.mxu0 %v3750
          %4086 = vmatpush1.bf16.msra.mxu0 %v3749
          %4087 = vmatprep.subr.bf16.mxu0 %v3754
          %4088 = vmatpush1.bf16.msra.mxu0 %v3753
          %4089 = vmatprep.subr.bf16.mxu0 %v3758
          %4090 = vmatpush1.bf16.msra.mxu0 %v3757
          %4091 = vmatprep.subr.bf16.mxu0 %v3762
          %4092 = vmatpush1.bf16.msra.mxu0 %v3761
          %4093 = vmatprep.subr.bf16.mxu0 %v3766
          %4094 = vmatpush1.bf16.msra.mxu0 %v3765
          %4095 = vmatprep.subr.bf16.mxu0 %v3770
          %4096 = vmatpush1.bf16.msra.mxu0 %v3769
          %4097 = vmatprep.subr.bf16.mxu0 %v3774
          %4098 = vmatpush1.bf16.msra.mxu0 %v3773
          %4099 = vmatprep.subr.bf16.mxu0 %v3778
          %4100 = vmatpush1.bf16.msra.mxu0 %v3777
          %4101 = vmatprep.subr.bf16.mxu0 %v3782
          %4102 = vmatpush1.bf16.msra.mxu0 %v3781
          %4103 = vmatprep.subr.bf16.mxu0 %v3786
          %4104 = vmatpush1.bf16.msra.mxu0 %v3785
          %4105 = vmatprep.subr.bf16.mxu0 %v3790
          %4106 = vmatpush1.bf16.msra.mxu0 %v3789
          %4107 = vmatprep.subr.bf16.mxu0 %v3794
          %4108 = vmatpush1.bf16.msra.mxu0 %v3793
          %4109 = vmatprep.subr.bf16.mxu0 %v3798
          %4110 = vmatpush1.bf16.msra.mxu0 %v3797
          %4111 = vmatprep.subr.bf16.mxu0 %v3802
          %4112 = vmatpush1.bf16.msra.mxu0 %v3801
          %4113 = vmatprep.subr.bf16.mxu0 %v3806
          %4114 = vmatpush1.bf16.msra.mxu0 %v3805
          %4115 = vmatprep.subr.bf16.mxu0 %v3810
          %4116 = vmatpush1.bf16.msra.mxu0 %v3809
          %4117 = vmatprep.mubr.bf16.mxu0 %v3232
          %4118 = vmatmul.mubr.bf16.gmra.mrb[0].mxu0 %v3231
          %v4119 = vpop.f32.mrb[0].mxu0
          %v4120 = vadd.f32 0.0, %v4119
          %v4121 = vpop.f32.mrb[0].mxu0
          %v4122 = vadd.f32 0.0, %v4121
          %v4123 = vpop.f32.mrb[0].mxu0
          %v4124 = vpop.f32.mrb[0].mxu0
          %4125 = vdwg.mxu0
          %4126 = vmatprep.subr.bf16.mxu0 %v3814
          %4127 = vmatpush1.bf16.msra.mxu0 %v3813
          %4128 = vmatprep.subr.bf16.mxu0 %v3818
          %4129 = vmatpush1.bf16.msra.mxu0 %v3817
          %4130 = vmatprep.subr.bf16.mxu0 %v3822
          %4131 = vmatpush1.bf16.msra.mxu0 %v3821
          %4132 = vmatprep.subr.bf16.mxu0 %v3826
          %4133 = vmatpush1.bf16.msra.mxu0 %v3825
          %4134 = vmatprep.subr.bf16.mxu0 %v3830
          %4135 = vmatpush1.bf16.msra.mxu0 %v3829
          %4136 = vmatprep.subr.bf16.mxu0 %v3834
          %4137 = vmatpush1.bf16.msra.mxu0 %v3833
          %4138 = vmatprep.subr.bf16.mxu0 %v3838
          %4139 = vmatpush1.bf16.msra.mxu0 %v3837
          %4140 = vmatprep.subr.bf16.mxu0 %v3842
          %4141 = vmatpush1.bf16.msra.mxu0 %v3841
          %4142 = vmatprep.subr.bf16.mxu0 %v3846
          %4143 = vmatpush1.bf16.msra.mxu0 %v3845
          %4144 = vmatprep.subr.bf16.mxu0 %v3850
          %4145 = vmatpush1.bf16.msra.mxu0 %v3849
          %4146 = vmatprep.subr.bf16.mxu0 %v3854
          %4147 = vmatpush1.bf16.msra.mxu0 %v3853
          %4148 = vmatprep.subr.bf16.mxu0 %v3858
          %4149 = vmatpush1.bf16.msra.mxu0 %v3857
          %4150 = vmatprep.subr.bf16.mxu0 %v3862
          %4151 = vmatpush1.bf16.msra.mxu0 %v3861
          %4152 = vmatprep.subr.bf16.mxu0 %v3866
          %4153 = vmatpush1.bf16.msra.mxu0 %v3865
          %4154 = vmatprep.subr.bf16.mxu0 %v3870
          %4155 = vmatpush1.bf16.msra.mxu0 %v3869
          %4156 = vmatprep.subr.bf16.mxu0 %v3874
          %4157 = vmatpush1.bf16.msra.mxu0 %v3873
          %4158 = vmatprep.mubr.bf16.mxu0 %v3234
          %4159 = vmatmul.mubr.bf16.gmra.mrb[0].mxu0 %v3233
          %v4160 = vpop.f32.mrb[0].mxu0
          %v4161 = vadd.f32 %v4120, %v4160
          %v4162 = vpop.f32.mrb[0].mxu0
          %v4163 = vadd.f32 %v4122, %v4162
          %v4164 = vpop.f32.mrb[0].mxu0
          %v4165 = vpop.f32.mrb[0].mxu0
          %4166 = vdwg.mxu0
          %v4295 = vunpack.c.l.b16 %v3103
          %v4296 = vunpack.c.h.b16 %v3103
          %v4297 = vunpack.c.l.b16 %v3104
          %v4298 = vunpack.c.h.b16 %v3104
          %v4299 = vunpack.c.l.b16 %v3105
          %v4300 = vunpack.c.h.b16 %v3105
          %v4301 = vunpack.c.l.b16 %v3106
          %v4302 = vunpack.c.h.b16 %v3106
          %v4303 = vunpack.c.l.b16 %v3107
          %v4304 = vunpack.c.h.b16 %v3107
          %v4305 = vunpack.c.l.b16 %v3108
          %v4306 = vunpack.c.h.b16 %v3108
          %v4307 = vunpack.c.l.b16 %v3109
          %v4308 = vunpack.c.h.b16 %v3109
          %v4309 = vunpack.c.l.b16 %v3110
          %v4310 = vunpack.c.h.b16 %v3110
          %v4311 = vunpack.c.l.b16 %v3111
          %v4312 = vunpack.c.h.b16 %v3111
          %v4313 = vunpack.c.l.b16 %v3112
          %v4314 = vunpack.c.h.b16 %v3112
          %v4315 = vunpack.c.l.b16 %v3113
          %v4316 = vunpack.c.h.b16 %v3113
          %v4317 = vunpack.c.l.b16 %v3114
          %v4318 = vunpack.c.h.b16 %v3114
          %v4319 = vunpack.c.l.b16 %v3115
          %v4320 = vunpack.c.h.b16 %v3115
          %v4321 = vunpack.c.l.b16 %v3116
          %v4322 = vunpack.c.h.b16 %v3116
          %v4323 = vunpack.c.l.b16 %v3117
          %v4324 = vunpack.c.h.b16 %v3117
          %v4325 = vunpack.c.l.b16 %v3118
          %v4326 = vunpack.c.h.b16 %v3118
          %v4327 = vunpack.c.l.b16 %v3119
          %v4328 = vunpack.c.h.b16 %v3119
          %v4329 = vunpack.c.l.b16 %v3120
          %v4330 = vunpack.c.h.b16 %v3120
          %v4331 = vunpack.c.l.b16 %v3121
          %v4332 = vunpack.c.h.b16 %v3121
          %v4333 = vunpack.c.l.b16 %v3122
          %v4334 = vunpack.c.h.b16 %v3122
          %v4335 = vunpack.c.l.b16 %v3123
          %v4336 = vunpack.c.h.b16 %v3123
          %v4337 = vunpack.c.l.b16 %v3124
          %v4338 = vunpack.c.h.b16 %v3124
          %v4339 = vunpack.c.l.b16 %v3125
          %v4340 = vunpack.c.h.b16 %v3125
          %v4341 = vunpack.c.l.b16 %v3126
          %v4342 = vunpack.c.h.b16 %v3126
          %v4343 = vunpack.c.l.b16 %v3127
          %v4344 = vunpack.c.h.b16 %v3127
          %v4345 = vunpack.c.l.b16 %v3128
          %v4346 = vunpack.c.h.b16 %v3128
          %v4347 = vunpack.c.l.b16 %v3129
          %v4348 = vunpack.c.h.b16 %v3129
          %v4349 = vunpack.c.l.b16 %v3130
          %v4350 = vunpack.c.h.b16 %v3130
          %v4351 = vunpack.c.l.b16 %v3131
          %v4352 = vunpack.c.h.b16 %v3131
          %v4353 = vunpack.c.l.b16 %v3132
          %v4354 = vunpack.c.h.b16 %v3132
          %v4355 = vunpack.c.l.b16 %v3133
          %v4356 = vunpack.c.h.b16 %v3133
          %v4357 = vunpack.c.l.b16 %v3134
          %v4358 = vunpack.c.h.b16 %v3134
          %v4359 = vunpack.c.l.b16 %v3135
          %v4360 = vunpack.c.h.b16 %v3135
          %v4361 = vunpack.c.l.b16 %v3136
          %v4362 = vunpack.c.h.b16 %v3136
          %v4363 = vunpack.c.l.b16 %v3137
          %v4364 = vunpack.c.h.b16 %v3137
          %v4365 = vunpack.c.l.b16 %v3138
          %v4366 = vunpack.c.h.b16 %v3138
          %v4367 = vunpack.c.l.b16 %v3139
          %v4368 = vunpack.c.h.b16 %v3139
          %v4369 = vunpack.c.l.b16 %v3140
          %v4370 = vunpack.c.h.b16 %v3140
          %v4371 = vunpack.c.l.b16 %v3141
          %v4372 = vunpack.c.h.b16 %v3141
          %v4373 = vunpack.c.l.b16 %v3142
          %v4374 = vunpack.c.h.b16 %v3142
          %v4375 = vunpack.c.l.b16 %v3143
          %v4376 = vunpack.c.h.b16 %v3143
          %v4377 = vunpack.c.l.b16 %v3144
          %v4378 = vunpack.c.h.b16 %v3144
          %v4379 = vunpack.c.l.b16 %v3145
          %v4380 = vunpack.c.h.b16 %v3145
          %v4381 = vunpack.c.l.b16 %v3146
          %v4382 = vunpack.c.h.b16 %v3146
          %v4383 = vunpack.c.l.b16 %v3147
          %v4384 = vunpack.c.h.b16 %v3147
          %v4385 = vunpack.c.l.b16 %v3148
          %v4386 = vunpack.c.h.b16 %v3148
          %v4387 = vunpack.c.l.b16 %v3149
          %v4388 = vunpack.c.h.b16 %v3149
          %v4389 = vunpack.c.l.b16 %v3150
          %v4390 = vunpack.c.h.b16 %v3150
          %v4391 = vunpack.c.l.b16 %v3151
          %v4392 = vunpack.c.h.b16 %v3151
          %v4393 = vunpack.c.l.b16 %v3152
          %v4394 = vunpack.c.h.b16 %v3152
          %v4395 = vunpack.c.l.b16 %v3153
          %v4396 = vunpack.c.h.b16 %v3153
          %v4397 = vunpack.c.l.b16 %v3154
          %v4398 = vunpack.c.h.b16 %v3154
          %v4399 = vunpack.c.l.b16 %v3155
          %v4400 = vunpack.c.h.b16 %v3155
          %v4401 = vunpack.c.l.b16 %v3156
          %v4402 = vunpack.c.h.b16 %v3156
          %v4403 = vunpack.c.l.b16 %v3157
          %v4404 = vunpack.c.h.b16 %v3157
          %v4405 = vunpack.c.l.b16 %v3158
          %v4406 = vunpack.c.h.b16 %v3158
          %v4407 = vunpack.c.l.b16 %v3159
          %v4408 = vunpack.c.h.b16 %v3159
          %v4409 = vunpack.c.l.b16 %v3160
          %v4410 = vunpack.c.h.b16 %v3160
          %v4411 = vunpack.c.l.b16 %v3161
          %v4412 = vunpack.c.h.b16 %v3161
          %v4413 = vunpack.c.l.b16 %v3162
          %v4414 = vunpack.c.h.b16 %v3162
          %v4415 = vunpack.c.l.b16 %v3163
          %v4416 = vunpack.c.h.b16 %v3163
          %v4417 = vunpack.c.l.b16 %v3164
          %v4418 = vunpack.c.h.b16 %v3164
          %v4419 = vunpack.c.l.b16 %v3165
          %v4420 = vunpack.c.h.b16 %v3165
          %v4421 = vunpack.c.l.b16 %v3166
          %v4422 = vunpack.c.h.b16 %v3166
          %v4423 = vunpack.c.l.b16 %v3167
          %v4424 = vunpack.c.h.b16 %v3167
          %v4425 = vunpack.c.l.b16 %v3168
          %v4426 = vunpack.c.h.b16 %v3168
          %v4427 = vunpack.c.l.b16 %v3169
          %v4428 = vunpack.c.h.b16 %v3169
          %v4429 = vunpack.c.l.b16 %v3170
          %v4430 = vunpack.c.h.b16 %v3170
          %v4431 = vunpack.c.l.b16 %v3171
          %v4432 = vunpack.c.h.b16 %v3171
          %v4433 = vunpack.c.l.b16 %v3172
          %v4434 = vunpack.c.h.b16 %v3172
          %v4435 = vunpack.c.l.b16 %v3173
          %v4436 = vunpack.c.h.b16 %v3173
          %v4437 = vunpack.c.l.b16 %v3174
          %v4438 = vunpack.c.h.b16 %v3174
          %v4439 = vunpack.c.l.b16 %v3175
          %v4440 = vunpack.c.h.b16 %v3175
          %v4441 = vunpack.c.l.b16 %v3176
          %v4442 = vunpack.c.h.b16 %v3176
          %v4443 = vunpack.c.l.b16 %v3177
          %v4444 = vunpack.c.h.b16 %v3177
          %v4445 = vunpack.c.l.b16 %v3178
          %v4446 = vunpack.c.h.b16 %v3178
          %v4447 = vunpack.c.l.b16 %v3179
          %v4448 = vunpack.c.h.b16 %v3179
          %v4449 = vunpack.c.l.b16 %v3180
          %v4450 = vunpack.c.h.b16 %v3180
          %v4451 = vunpack.c.l.b16 %v3181
          %v4452 = vunpack.c.h.b16 %v3181
          %v4453 = vunpack.c.l.b16 %v3182
          %v4454 = vunpack.c.h.b16 %v3182
          %v4455 = vunpack.c.l.b16 %v3183
          %v4456 = vunpack.c.h.b16 %v3183
          %v4457 = vunpack.c.l.b16 %v3184
          %v4458 = vunpack.c.h.b16 %v3184
          %v4459 = vunpack.c.l.b16 %v3185
          %v4460 = vunpack.c.h.b16 %v3185
          %v4461 = vunpack.c.l.b16 %v3186
          %v4462 = vunpack.c.h.b16 %v3186
          %v4463 = vunpack.c.l.b16 %v3187
          %v4464 = vunpack.c.h.b16 %v3187
          %v4465 = vunpack.c.l.b16 %v3188
          %v4466 = vunpack.c.h.b16 %v3188
          %v4467 = vunpack.c.l.b16 %v3189
          %v4468 = vunpack.c.h.b16 %v3189
          %v4469 = vunpack.c.l.b16 %v3190
          %v4470 = vunpack.c.h.b16 %v3190
          %v4471 = vunpack.c.l.b16 %v3191
          %v4472 = vunpack.c.h.b16 %v3191
          %v4473 = vunpack.c.l.b16 %v3192
          %v4474 = vunpack.c.h.b16 %v3192
          %v4475 = vunpack.c.l.b16 %v3193
          %v4476 = vunpack.c.h.b16 %v3193
          %v4477 = vunpack.c.l.b16 %v3194
          %v4478 = vunpack.c.h.b16 %v3194
          %v4479 = vunpack.c.l.b16 %v3195
          %v4480 = vunpack.c.h.b16 %v3195
          %v4481 = vunpack.c.l.b16 %v3196
          %v4482 = vunpack.c.h.b16 %v3196
          %v4483 = vunpack.c.l.b16 %v3197
          %v4484 = vunpack.c.h.b16 %v3197
          %v4485 = vunpack.c.l.b16 %v3198
          %v4486 = vunpack.c.h.b16 %v3198
          %v4487 = vunpack.c.l.b16 %v3199
          %v4488 = vunpack.c.h.b16 %v3199
          %v4489 = vunpack.c.l.b16 %v3200
          %v4490 = vunpack.c.h.b16 %v3200
          %v4491 = vunpack.c.l.b16 %v3201
          %v4492 = vunpack.c.h.b16 %v3201
          %v4493 = vunpack.c.l.b16 %v3202
          %v4494 = vunpack.c.h.b16 %v3202
          %v4495 = vunpack.c.l.b16 %v3203
          %v4496 = vunpack.c.h.b16 %v3203
          %v4497 = vunpack.c.l.b16 %v3204
          %v4498 = vunpack.c.h.b16 %v3204
          %v4499 = vunpack.c.l.b16 %v3205
          %v4500 = vunpack.c.h.b16 %v3205
          %v4501 = vunpack.c.l.b16 %v3206
          %v4502 = vunpack.c.h.b16 %v3206
          %v4503 = vunpack.c.l.b16 %v3207
          %v4504 = vunpack.c.h.b16 %v3207
          %v4505 = vunpack.c.l.b16 %v3208
          %v4506 = vunpack.c.h.b16 %v3208
          %v4507 = vunpack.c.l.b16 %v3209
          %v4508 = vunpack.c.h.b16 %v3209
          %v4509 = vunpack.c.l.b16 %v3210
          %v4510 = vunpack.c.h.b16 %v3210
          %v4511 = vunpack.c.l.b16 %v3211
          %v4512 = vunpack.c.h.b16 %v3211
          %v4513 = vunpack.c.l.b16 %v3212
          %v4514 = vunpack.c.h.b16 %v3212
          %v4515 = vunpack.c.l.b16 %v3213
          %v4516 = vunpack.c.h.b16 %v3213
          %v4517 = vunpack.c.l.b16 %v3214
          %v4518 = vunpack.c.h.b16 %v3214
          %v4519 = vunpack.c.l.b16 %v3215
          %v4520 = vunpack.c.h.b16 %v3215
          %v4521 = vunpack.c.l.b16 %v3216
          %v4522 = vunpack.c.h.b16 %v3216
          %v4523 = vunpack.c.l.b16 %v3217
          %v4524 = vunpack.c.h.b16 %v3217
          %v4525 = vunpack.c.l.b16 %v3218
          %v4526 = vunpack.c.h.b16 %v3218
          %v4527 = vunpack.c.l.b16 %v3219
          %v4528 = vunpack.c.h.b16 %v3219
          %v4529 = vunpack.c.l.b16 %v3220
          %v4530 = vunpack.c.h.b16 %v3220
          %v4531 = vunpack.c.l.b16 %v3221
          %v4532 = vunpack.c.h.b16 %v3221
          %v4533 = vunpack.c.l.b16 %v3222
          %v4534 = vunpack.c.h.b16 %v3222
          %v4535 = vunpack.c.l.b16 %v3223
          %v4536 = vunpack.c.h.b16 %v3223
          %v4537 = vunpack.c.l.b16 %v3224
          %v4538 = vunpack.c.h.b16 %v3224
          %v4539 = vunpack.c.l.b16 %v3225
          %v4540 = vunpack.c.h.b16 %v3225
          %v4541 = vunpack.c.l.b16 %v3226
          %v4542 = vunpack.c.h.b16 %v3226
          %v4543 = vunpack.c.l.b16 %v3227
          %v4544 = vunpack.c.h.b16 %v3227
          %v4545 = vunpack.c.l.b16 %v3228
          %v4546 = vunpack.c.h.b16 %v3228
          %v4547 = vunpack.c.l.b16 %v3229
          %v4548 = vunpack.c.h.b16 %v3229
          %v4549 = vunpack.c.l.b16 %v3230
          %v4550 = vunpack.c.h.b16 %v3230
          %v4551 = vpack.c.b16 %v4299, %v4295
          %v4552 = vpack.c.b16 %v4300, %v4296
          %v4553 = vpack.c.b16 %v4301, %v4297
          %v4554 = vpack.c.b16 %v4302, %v4298
          %v4555 = vpack.c.b16 %v4307, %v4303
          %v4556 = vpack.c.b16 %v4308, %v4304
          %v4557 = vpack.c.b16 %v4309, %v4305
          %v4558 = vpack.c.b16 %v4310, %v4306
          %v4559 = vpack.c.b16 %v4315, %v4311
          %v4560 = vpack.c.b16 %v4316, %v4312
          %v4561 = vpack.c.b16 %v4317, %v4313
          %v4562 = vpack.c.b16 %v4318, %v4314
          %v4563 = vpack.c.b16 %v4323, %v4319
          %v4564 = vpack.c.b16 %v4324, %v4320
          %v4565 = vpack.c.b16 %v4325, %v4321
          %v4566 = vpack.c.b16 %v4326, %v4322
          %v4567 = vpack.c.b16 %v4331, %v4327
          %v4568 = vpack.c.b16 %v4332, %v4328
          %v4569 = vpack.c.b16 %v4333, %v4329
          %v4570 = vpack.c.b16 %v4334, %v4330
          %v4571 = vpack.c.b16 %v4339, %v4335
          %v4572 = vpack.c.b16 %v4340, %v4336
          %v4573 = vpack.c.b16 %v4341, %v4337
          %v4574 = vpack.c.b16 %v4342, %v4338
          %v4575 = vpack.c.b16 %v4347, %v4343
          %v4576 = vpack.c.b16 %v4348, %v4344
          %v4577 = vpack.c.b16 %v4349, %v4345
          %v4578 = vpack.c.b16 %v4350, %v4346
          %v4579 = vpack.c.b16 %v4355, %v4351
          %v4580 = vpack.c.b16 %v4356, %v4352
          %v4581 = vpack.c.b16 %v4357, %v4353
          %v4582 = vpack.c.b16 %v4358, %v4354
          %v4583 = vpack.c.b16 %v4363, %v4359
          %v4584 = vpack.c.b16 %v4364, %v4360
          %v4585 = vpack.c.b16 %v4365, %v4361
          %v4586 = vpack.c.b16 %v4366, %v4362
          %v4587 = vpack.c.b16 %v4371, %v4367
          %v4588 = vpack.c.b16 %v4372, %v4368
          %v4589 = vpack.c.b16 %v4373, %v4369
          %v4590 = vpack.c.b16 %v4374, %v4370
          %v4591 = vpack.c.b16 %v4379, %v4375
          %v4592 = vpack.c.b16 %v4380, %v4376
          %v4593 = vpack.c.b16 %v4381, %v4377
          %v4594 = vpack.c.b16 %v4382, %v4378
          %v4595 = vpack.c.b16 %v4387, %v4383
          %v4596 = vpack.c.b16 %v4388, %v4384
          %v4597 = vpack.c.b16 %v4389, %v4385
          %v4598 = vpack.c.b16 %v4390, %v4386
          %v4599 = vpack.c.b16 %v4395, %v4391
          %v4600 = vpack.c.b16 %v4396, %v4392
          %v4601 = vpack.c.b16 %v4397, %v4393
          %v4602 = vpack.c.b16 %v4398, %v4394
          %v4603 = vpack.c.b16 %v4403, %v4399
          %v4604 = vpack.c.b16 %v4404, %v4400
          %v4605 = vpack.c.b16 %v4405, %v4401
          %v4606 = vpack.c.b16 %v4406, %v4402
          %v4607 = vpack.c.b16 %v4411, %v4407
          %v4608 = vpack.c.b16 %v4412, %v4408
          %v4609 = vpack.c.b16 %v4413, %v4409
          %v4610 = vpack.c.b16 %v4414, %v4410
          %v4611 = vpack.c.b16 %v4419, %v4415
          %v4612 = vpack.c.b16 %v4420, %v4416
          %v4613 = vpack.c.b16 %v4421, %v4417
          %v4614 = vpack.c.b16 %v4422, %v4418
          %v4615 = vpack.c.b16 %v4427, %v4423
          %v4616 = vpack.c.b16 %v4428, %v4424
          %v4617 = vpack.c.b16 %v4429, %v4425
          %v4618 = vpack.c.b16 %v4430, %v4426
          %v4619 = vpack.c.b16 %v4435, %v4431
          %v4620 = vpack.c.b16 %v4436, %v4432
          %v4621 = vpack.c.b16 %v4437, %v4433
          %v4622 = vpack.c.b16 %v4438, %v4434
          %v4623 = vpack.c.b16 %v4443, %v4439
          %v4624 = vpack.c.b16 %v4444, %v4440
          %v4625 = vpack.c.b16 %v4445, %v4441
          %v4626 = vpack.c.b16 %v4446, %v4442
          %v4627 = vpack.c.b16 %v4451, %v4447
          %v4628 = vpack.c.b16 %v4452, %v4448
          %v4629 = vpack.c.b16 %v4453, %v4449
          %v4630 = vpack.c.b16 %v4454, %v4450
          %v4631 = vpack.c.b16 %v4459, %v4455
          %v4632 = vpack.c.b16 %v4460, %v4456
          %v4633 = vpack.c.b16 %v4461, %v4457
          %v4634 = vpack.c.b16 %v4462, %v4458
          %v4635 = vpack.c.b16 %v4467, %v4463
          %v4636 = vpack.c.b16 %v4468, %v4464
          %v4637 = vpack.c.b16 %v4469, %v4465
          %v4638 = vpack.c.b16 %v4470, %v4466
          %v4639 = vpack.c.b16 %v4475, %v4471
          %v4640 = vpack.c.b16 %v4476, %v4472
          %v4641 = vpack.c.b16 %v4477, %v4473
          %v4642 = vpack.c.b16 %v4478, %v4474
          %v4643 = vpack.c.b16 %v4483, %v4479
          %v4644 = vpack.c.b16 %v4484, %v4480
          %v4645 = vpack.c.b16 %v4485, %v4481
          %v4646 = vpack.c.b16 %v4486, %v4482
          %v4647 = vpack.c.b16 %v4491, %v4487
          %v4648 = vpack.c.b16 %v4492, %v4488
          %v4649 = vpack.c.b16 %v4493, %v4489
          %v4650 = vpack.c.b16 %v4494, %v4490
          %v4651 = vpack.c.b16 %v4499, %v4495
          %v4652 = vpack.c.b16 %v4500, %v4496
          %v4653 = vpack.c.b16 %v4501, %v4497
          %v4654 = vpack.c.b16 %v4502, %v4498
          %v4655 = vpack.c.b16 %v4507, %v4503
          %v4656 = vpack.c.b16 %v4508, %v4504
          %v4657 = vpack.c.b16 %v4509, %v4505
          %v4658 = vpack.c.b16 %v4510, %v4506
          %v4659 = vpack.c.b16 %v4515, %v4511
          %v4660 = vpack.c.b16 %v4516, %v4512
          %v4661 = vpack.c.b16 %v4517, %v4513
          %v4662 = vpack.c.b16 %v4518, %v4514
          %v4663 = vpack.c.b16 %v4523, %v4519
          %v4664 = vpack.c.b16 %v4524, %v4520
          %v4665 = vpack.c.b16 %v4525, %v4521
          %v4666 = vpack.c.b16 %v4526, %v4522
          %v4667 = vpack.c.b16 %v4531, %v4527
          %v4668 = vpack.c.b16 %v4532, %v4528
          %v4669 = vpack.c.b16 %v4533, %v4529
          %v4670 = vpack.c.b16 %v4534, %v4530
          %v4671 = vpack.c.b16 %v4539, %v4535
          %v4672 = vpack.c.b16 %v4540, %v4536
          %v4673 = vpack.c.b16 %v4541, %v4537
          %v4674 = vpack.c.b16 %v4542, %v4538
          %v4675 = vpack.c.b16 %v4547, %v4543
          %v4676 = vpack.c.b16 %v4548, %v4544
          %v4677 = vpack.c.b16 %v4549, %v4545
          %v4678 = vpack.c.b16 %v4550, %v4546
          %4807 = vmatprep.subr.bf16.mxu0 %v4552
          %4808 = vmatpush1.bf16.msra.mxu0 %v4551
          %4809 = vmatprep.subr.bf16.mxu0 %v4556
          %4810 = vmatpush1.bf16.msra.mxu0 %v4555
          %4811 = vmatprep.subr.bf16.mxu0 %v4560
          %4812 = vmatpush1.bf16.msra.mxu0 %v4559
          %4813 = vmatprep.subr.bf16.mxu0 %v4564
          %4814 = vmatpush1.bf16.msra.mxu0 %v4563
          %4815 = vmatprep.subr.bf16.mxu0 %v4568
          %4816 = vmatpush1.bf16.msra.mxu0 %v4567
          %4817 = vmatprep.subr.bf16.mxu0 %v4572
          %4818 = vmatpush1.bf16.msra.mxu0 %v4571
          %4819 = vmatprep.subr.bf16.mxu0 %v4576
          %4820 = vmatpush1.bf16.msra.mxu0 %v4575
          %4821 = vmatprep.subr.bf16.mxu0 %v4580
          %4822 = vmatpush1.bf16.msra.mxu0 %v4579
          %4823 = vmatprep.subr.bf16.mxu0 %v4584
          %4824 = vmatpush1.bf16.msra.mxu0 %v4583
          %4825 = vmatprep.subr.bf16.mxu0 %v4588
          %4826 = vmatpush1.bf16.msra.mxu0 %v4587
          %4827 = vmatprep.subr.bf16.mxu0 %v4592
          %4828 = vmatpush1.bf16.msra.mxu0 %v4591
          %4829 = vmatprep.subr.bf16.mxu0 %v4596
          %4830 = vmatpush1.bf16.msra.mxu0 %v4595
          %4831 = vmatprep.subr.bf16.mxu0 %v4600
          %4832 = vmatpush1.bf16.msra.mxu0 %v4599
          %4833 = vmatprep.subr.bf16.mxu0 %v4604
          %4834 = vmatpush1.bf16.msra.mxu0 %v4603
          %4835 = vmatprep.subr.bf16.mxu0 %v4608
          %4836 = vmatpush1.bf16.msra.mxu0 %v4607
          %4837 = vmatprep.subr.bf16.mxu0 %v4612
          %4838 = vmatpush1.bf16.msra.mxu0 %v4611
          %4839 = vmatprep.mubr.bf16.mxu0 %v3100
          %4840 = vmatmul.mubr.bf16.gmra.mrb[0].mxu0 %v3099
          %v4841 = vpop.f32.mrb[0].mxu0
          %v4842 = vadd.f32 %v4079, %v4841
          %v4843 = vpop.f32.mrb[0].mxu0
          %v4844 = vadd.f32 %v4081, %v4843
          %v4845 = vpop.f32.mrb[0].mxu0
          %v4846 = vpop.f32.mrb[0].mxu0
          %4847 = vdwg.mxu0
          %4848 = vmatprep.subr.bf16.mxu0 %v4616
          %4849 = vmatpush1.bf16.msra.mxu0 %v4615
          %4850 = vmatprep.subr.bf16.mxu0 %v4620
          %4851 = vmatpush1.bf16.msra.mxu0 %v4619
          %4852 = vmatprep.subr.bf16.mxu0 %v4624
          %4853 = vmatpush1.bf16.msra.mxu0 %v4623
          %4854 = vmatprep.subr.bf16.mxu0 %v4628
          %4855 = vmatpush1.bf16.msra.mxu0 %v4627
          %4856 = vmatprep.subr.bf16.mxu0 %v4632
          %4857 = vmatpush1.bf16.msra.mxu0 %v4631
          %4858 = vmatprep.subr.bf16.mxu0 %v4636
          %4859 = vmatpush1.bf16.msra.mxu0 %v4635
          %4860 = vmatprep.subr.bf16.mxu0 %v4640
          %4861 = vmatpush1.bf16.msra.mxu0 %v4639
          %4862 = vmatprep.subr.bf16.mxu0 %v4644
          %4863 = vmatpush1.bf16.msra.mxu0 %v4643
          %4864 = vmatprep.subr.bf16.mxu0 %v4648
          %4865 = vmatpush1.bf16.msra.mxu0 %v4647
          %4866 = vmatprep.subr.bf16.mxu0 %v4652
          %4867 = vmatpush1.bf16.msra.mxu0 %v4651
          %4868 = vmatprep.subr.bf16.mxu0 %v4656
          %4869 = vmatpush1.bf16.msra.mxu0 %v4655
          %4870 = vmatprep.subr.bf16.mxu0 %v4660
          %4871 = vmatpush1.bf16.msra.mxu0 %v4659
          %4872 = vmatprep.subr.bf16.mxu0 %v4664
          %4873 = vmatpush1.bf16.msra.mxu0 %v4663
          %4874 = vmatprep.subr.bf16.mxu0 %v4668
          %4875 = vmatpush1.bf16.msra.mxu0 %v4667
          %4876 = vmatprep.subr.bf16.mxu0 %v4672
          %4877 = vmatpush1.bf16.msra.mxu0 %v4671
          %4878 = vmatprep.subr.bf16.mxu0 %v4676
          %4879 = vmatpush1.bf16.msra.mxu0 %v4675
          %4880 = vmatprep.mubr.bf16.mxu0 %v3102
          %4881 = vmatmul.mubr.bf16.gmra.mrb[0].mxu0 %v3101
          %v4882 = vpop.f32.mrb[0].mxu0
          %v4883 = vadd.f32 %v4842, %v4882
          %v4884 = vpop.f32.mrb[0].mxu0
          %v4885 = vadd.f32 %v4844, %v4884
          %v4886 = vpop.f32.mrb[0].mxu0
          %v4887 = vpop.f32.mrb[0].mxu0
          %4888 = vdwg.mxu0
          %4889 = vmatprep.subr.bf16.mxu0 %v4554
          %4890 = vmatpush1.bf16.msra.mxu0 %v4553
          %4891 = vmatprep.subr.bf16.mxu0 %v4558
          %4892 = vmatpush1.bf16.msra.mxu0 %v4557
          %4893 = vmatprep.subr.bf16.mxu0 %v4562
          %4894 = vmatpush1.bf16.msra.mxu0 %v4561
          %4895 = vmatprep.subr.bf16.mxu0 %v4566
          %4896 = vmatpush1.bf16.msra.mxu0 %v4565
          %4897 = vmatprep.subr.bf16.mxu0 %v4570
          %4898 = vmatpush1.bf16.msra.mxu0 %v4569
          %4899 = vmatprep.subr.bf16.mxu0 %v4574
          %4900 = vmatpush1.bf16.msra.mxu0 %v4573
          %4901 = vmatprep.subr.bf16.mxu0 %v4578
          %4902 = vmatpush1.bf16.msra.mxu0 %v4577
          %4903 = vmatprep.subr.bf16.mxu0 %v4582
          %4904 = vmatpush1.bf16.msra.mxu0 %v4581
          %4905 = vmatprep.subr.bf16.mxu0 %v4586
          %4906 = vmatpush1.bf16.msra.mxu0 %v4585
          %4907 = vmatprep.subr.bf16.mxu0 %v4590
          %4908 = vmatpush1.bf16.msra.mxu0 %v4589
          %4909 = vmatprep.subr.bf16.mxu0 %v4594
          %4910 = vmatpush1.bf16.msra.mxu0 %v4593
          %4911 = vmatprep.subr.bf16.mxu0 %v4598
          %4912 = vmatpush1.bf16.msra.mxu0 %v4597
          %4913 = vmatprep.subr.bf16.mxu0 %v4602
          %4914 = vmatpush1.bf16.msra.mxu0 %v4601
          %4915 = vmatprep.subr.bf16.mxu0 %v4606
          %4916 = vmatpush1.bf16.msra.mxu0 %v4605
          %4917 = vmatprep.subr.bf16.mxu0 %v4610
          %4918 = vmatpush1.bf16.msra.mxu0 %v4609
          %4919 = vmatprep.subr.bf16.mxu0 %v4614
          %4920 = vmatpush1.bf16.msra.mxu0 %v4613
          %4921 = vmatprep.mubr.bf16.mxu0 %v3100
          %4922 = vmatmul.mubr.bf16.gmra.mrb[0].mxu0 %v3099
          %v4923 = vpop.f32.mrb[0].mxu0
          %v4924 = vadd.f32 %v4161, %v4923
          %v4925 = vpop.f32.mrb[0].mxu0
          %v4926 = vadd.f32 %v4163, %v4925
          %v4927 = vpop.f32.mrb[0].mxu0
          %v4928 = vpop.f32.mrb[0].mxu0
          %4929 = vdwg.mxu0
          %4930 = vmatprep.subr.bf16.mxu0 %v4618
          %4931 = vmatpush1.bf16.msra.mxu0 %v4617
          %4932 = vmatprep.subr.bf16.mxu0 %v4622
          %4933 = vmatpush1.bf16.msra.mxu0 %v4621
          %4934 = vmatprep.subr.bf16.mxu0 %v4626
          %4935 = vmatpush1.bf16.msra.mxu0 %v4625
          %4936 = vmatprep.subr.bf16.mxu0 %v4630
          %4937 = vmatpush1.bf16.msra.mxu0 %v4629
          %4938 = vmatprep.subr.bf16.mxu0 %v4634
          %4939 = vmatpush1.bf16.msra.mxu0 %v4633
          %4940 = vmatprep.subr.bf16.mxu0 %v4638
          %4941 = vmatpush1.bf16.msra.mxu0 %v4637
          %4942 = vmatprep.subr.bf16.mxu0 %v4642
          %4943 = vmatpush1.bf16.msra.mxu0 %v4641
          %4944 = vmatprep.subr.bf16.mxu0 %v4646
          %4945 = vmatpush1.bf16.msra.mxu0 %v4645
          %4946 = vmatprep.subr.bf16.mxu0 %v4650
          %4947 = vmatpush1.bf16.msra.mxu0 %v4649
          %4948 = vmatprep.subr.bf16.mxu0 %v4654
          %4949 = vmatpush1.bf16.msra.mxu0 %v4653
          %4950 = vmatprep.subr.bf16.mxu0 %v4658
          %4951 = vmatpush1.bf16.msra.mxu0 %v4657
          %4952 = vmatprep.subr.bf16.mxu0 %v4662
          %4953 = vmatpush1.bf16.msra.mxu0 %v4661
          %4954 = vmatprep.subr.bf16.mxu0 %v4666
          %4955 = vmatpush1.bf16.msra.mxu0 %v4665
          %4956 = vmatprep.subr.bf16.mxu0 %v4670
          %4957 = vmatpush1.bf16.msra.mxu0 %v4669
          %4958 = vmatprep.subr.bf16.mxu0 %v4674
          %4959 = vmatpush1.bf16.msra.mxu0 %v4673
          %4960 = vmatprep.subr.bf16.mxu0 %v4678
          %4961 = vmatpush1.bf16.msra.mxu0 %v4677
          %4962 = vmatprep.mubr.bf16.mxu0 %v3102
          %4963 = vmatmul.mubr.bf16.gmra.mrb[0].mxu0 %v3101
          %v4964 = vpop.f32.mrb[0].mxu0
          %v4965 = vadd.f32 %v4924, %v4964
          %v4966 = vpop.f32.mrb[0].mxu0
          %v4967 = vadd.f32 %v4926, %v4966
          %v4968 = vpop.f32.mrb[0].mxu0
          %v4969 = vpop.f32.mrb[0].mxu0
          %4970 = vdwg.mxu0
          %v4971 = vld [vmem:[#allocation18] sm:$0xf]
          %v4973 = vlaneseq
          %v4974 = vshrl.u32 %v4973, 7
          %v4975 = vsub.s32 0, %v4974
          %v4976 = vrot.slane %v4971, %v4975
          %v4977 = vlaneseq
          %v4978 = vshrl.u32 %v4977, 7
          %v4979 = vsub.s32 1, %v4978
          %v4980 = vrot.slane %v4971, %v4979
          %v4981 = vlaneseq
          %v4982 = vshrl.u32 %v4981, 7
          %v4983 = vsub.s32 2, %v4982
          %v4984 = vrot.slane %v4971, %v4983
          %v4985 = vlaneseq
          %v4986 = vshrl.u32 %v4985, 7
          %v4987 = vsub.s32 3, %v4986
          %v4988 = vrot.slane %v4971, %v4987
          %v4993 = vadd.f32 %v4883, %v4976
          %v4994 = vadd.f32 %v4885, %v4980
          %v4995 = vadd.f32 %v4965, %v4984
          %v4996 = vadd.f32 %v4967, %v4988
          %v4997 = vmax.f32 %v4993, 0.0
          %v4998 = vmax.f32 %v4994, 0.0
          %v4999 = vmax.f32 %v4995, 0.0
          %v5000 = vmax.f32 %v4996, 0.0
          %v5001 = vpack.c.bf16 %v4997, %v4997
          %v5002 = vpack.c.bf16 %v4998, %v4998
          %v5003 = vpack.c.bf16 %v4999, %v4999
          %v5004 = vpack.c.bf16 %v5000, %v5000
          %v5005 = vld [vmem:[%s9] sm:$0xf]
          %v5006 = vld [vmem:[%s9 + $0x4] sm:$0xf]
          %v5007 = vld [vmem:[%s9 + $0x8] sm:$0xf]
          %v5008 = vld [vmem:[%s9 + $0xc] sm:$0xf]
          %v5009 = vld [vmem:[%s9 + $0x10] sm:$0xf]
          %v5010 = vld [vmem:[%s9 + $0x14] sm:$0xf]
          %v5011 = vld [vmem:[%s9 + $0x18] sm:$0xf]
          %v5012 = vld [vmem:[%s9 + $0x1c] sm:$0xf]
          %v5013 = vld [vmem:[%s9 + $0x20] sm:$0xf]
          %v5014 = vld [vmem:[%s9 + $0x24] sm:$0xf]
          %v5015 = vld [vmem:[%s9 + $0x28] sm:$0xf]
          %v5016 = vld [vmem:[%s9 + $0x2c] sm:$0xf]
          %v5017 = vld [vmem:[%s9 + $0x30] sm:$0xf]
          %v5018 = vld [vmem:[%s9 + $0x34] sm:$0xf]
          %v5019 = vld [vmem:[%s9 + $0x38] sm:$0xf]
          %v5020 = vld [vmem:[%s9 + $0x3c] sm:$0xf]
          %v5021 = vld [vmem:[%s9 + $0x40] sm:$0xf]
          %v5022 = vld [vmem:[%s9 + $0x44] sm:$0xf]
          %v5023 = vld [vmem:[%s9 + $0x48] sm:$0xf]
          %v5024 = vld [vmem:[%s9 + $0x4c] sm:$0xf]
          %v5025 = vld [vmem:[%s9 + $0x50] sm:$0xf]
          %v5026 = vld [vmem:[%s9 + $0x54] sm:$0xf]
          %v5027 = vld [vmem:[%s9 + $0x58] sm:$0xf]
          %v5028 = vld [vmem:[%s9 + $0x5c] sm:$0xf]
          %v5029 = vld [vmem:[%s9 + $0x60] sm:$0xf]
          %v5030 = vld [vmem:[%s9 + $0x64] sm:$0xf]
          %v5031 = vld [vmem:[%s9 + $0x68] sm:$0xf]
          %v5032 = vld [vmem:[%s9 + $0x6c] sm:$0xf]
          %v5033 = vld [vmem:[%s9 + $0x70] sm:$0xf]
          %v5034 = vld [vmem:[%s9 + $0x74] sm:$0xf]
          %v5035 = vld [vmem:[%s9 + $0x78] sm:$0xf]
          %v5036 = vld [vmem:[%s9 + $0x7c] sm:$0xf]
          %v5037 = vld [vmem:[%s9 + $0x80] sm:$0xf]
          %v5038 = vld [vmem:[%s9 + $0x84] sm:$0xf]
          %v5039 = vld [vmem:[%s9 + $0x88] sm:$0xf]
          %v5040 = vld [vmem:[%s9 + $0x8c] sm:$0xf]
          %v5041 = vld [vmem:[%s9 + $0x90] sm:$0xf]
          %v5042 = vld [vmem:[%s9 + $0x94] sm:$0xf]
          %v5043 = vld [vmem:[%s9 + $0x98] sm:$0xf]
          %v5044 = vld [vmem:[%s9 + $0x9c] sm:$0xf]
          %v5045 = vld [vmem:[%s9 + $0xa0] sm:$0xf]
          %v5046 = vld [vmem:[%s9 + $0xa4] sm:$0xf]
          %v5047 = vld [vmem:[%s9 + $0xa8] sm:$0xf]
          %v5048 = vld [vmem:[%s9 + $0xac] sm:$0xf]
          %v5049 = vld [vmem:[%s9 + $0xb0] sm:$0xf]
          %v5050 = vld [vmem:[%s9 + $0xb4] sm:$0xf]
          %v5051 = vld [vmem:[%s9 + $0xb8] sm:$0xf]
          %v5052 = vld [vmem:[%s9 + $0xbc] sm:$0xf]
          %v5053 = vld [vmem:[%s9 + $0xc0] sm:$0xf]
          %v5054 = vld [vmem:[%s9 + $0xc4] sm:$0xf]
          %v5055 = vld [vmem:[%s9 + $0xc8] sm:$0xf]
          %v5056 = vld [vmem:[%s9 + $0xcc] sm:$0xf]
          %v5057 = vld [vmem:[%s9 + $0xd0] sm:$0xf]
          %v5058 = vld [vmem:[%s9 + $0xd4] sm:$0xf]
          %v5059 = vld [vmem:[%s9 + $0xd8] sm:$0xf]
          %v5060 = vld [vmem:[%s9 + $0xdc] sm:$0xf]
          %v5061 = vld [vmem:[%s9 + $0xe0] sm:$0xf]
          %v5062 = vld [vmem:[%s9 + $0xe4] sm:$0xf]
          %v5063 = vld [vmem:[%s9 + $0xe8] sm:$0xf]
          %v5064 = vld [vmem:[%s9 + $0xec] sm:$0xf]
          %v5065 = vld [vmem:[%s9 + $0xf0] sm:$0xf]
          %v5066 = vld [vmem:[%s9 + $0xf4] sm:$0xf]
          %v5067 = vld [vmem:[%s9 + $0xf8] sm:$0xf]
          %v5068 = vld [vmem:[%s9 + $0xfc] sm:$0xf]
          %v5069 = vld [vmem:[#allocation19] sm:$0x1]
          %v5071 = vlaneseq
          %v5072 = vshrl.u32 %v5071, 7
          %v5073 = vsub.s32 0, %v5072
          %v5074 = vrot.slane %v5069, %v5073
          %v5140 = vunpack.c.l.b16 %v5005
          %v5141 = vunpack.c.l.b16 %v5006
          %v5142 = vunpack.c.l.b16 %v5007
          %v5143 = vunpack.c.l.b16 %v5008
          %v5144 = vunpack.c.l.b16 %v5009
          %v5145 = vunpack.c.l.b16 %v5010
          %v5146 = vunpack.c.l.b16 %v5011
          %v5147 = vunpack.c.l.b16 %v5012
          %v5148 = vunpack.c.l.b16 %v5013
          %v5149 = vunpack.c.l.b16 %v5014
          %v5150 = vunpack.c.l.b16 %v5015
          %v5151 = vunpack.c.l.b16 %v5016
          %v5152 = vunpack.c.l.b16 %v5017
          %v5153 = vunpack.c.l.b16 %v5018
          %v5154 = vunpack.c.l.b16 %v5019
          %v5155 = vunpack.c.l.b16 %v5020
          %v5156 = vunpack.c.l.b16 %v5021
          %v5157 = vunpack.c.l.b16 %v5022
          %v5158 = vunpack.c.l.b16 %v5023
          %v5159 = vunpack.c.l.b16 %v5024
          %v5160 = vunpack.c.l.b16 %v5025
          %v5161 = vunpack.c.l.b16 %v5026
          %v5162 = vunpack.c.l.b16 %v5027
          %v5163 = vunpack.c.l.b16 %v5028
          %v5164 = vunpack.c.l.b16 %v5029
          %v5165 = vunpack.c.l.b16 %v5030
          %v5166 = vunpack.c.l.b16 %v5031
          %v5167 = vunpack.c.l.b16 %v5032
          %v5168 = vunpack.c.l.b16 %v5033
          %v5169 = vunpack.c.l.b16 %v5034
          %v5170 = vunpack.c.l.b16 %v5035
          %v5171 = vunpack.c.l.b16 %v5036
          %v5172 = vunpack.c.l.b16 %v5037
          %v5173 = vunpack.c.l.b16 %v5038
          %v5174 = vunpack.c.l.b16 %v5039
          %v5175 = vunpack.c.l.b16 %v5040
          %v5176 = vunpack.c.l.b16 %v5041
          %v5177 = vunpack.c.l.b16 %v5042
          %v5178 = vunpack.c.l.b16 %v5043
          %v5179 = vunpack.c.l.b16 %v5044
          %v5180 = vunpack.c.l.b16 %v5045
          %v5181 = vunpack.c.l.b16 %v5046
          %v5182 = vunpack.c.l.b16 %v5047
          %v5183 = vunpack.c.l.b16 %v5048
          %v5184 = vunpack.c.l.b16 %v5049
          %v5185 = vunpack.c.l.b16 %v5050
          %v5186 = vunpack.c.l.b16 %v5051
          %v5187 = vunpack.c.l.b16 %v5052
          %v5188 = vunpack.c.l.b16 %v5053
          %v5189 = vunpack.c.l.b16 %v5054
          %v5190 = vunpack.c.l.b16 %v5055
          %v5191 = vunpack.c.l.b16 %v5056
          %v5192 = vunpack.c.l.b16 %v5057
          %v5193 = vunpack.c.l.b16 %v5058
          %v5194 = vunpack.c.l.b16 %v5059
          %v5195 = vunpack.c.l.b16 %v5060
          %v5196 = vunpack.c.l.b16 %v5061
          %v5197 = vunpack.c.l.b16 %v5062
          %v5198 = vunpack.c.l.b16 %v5063
          %v5199 = vunpack.c.l.b16 %v5064
          %v5200 = vunpack.c.l.b16 %v5065
          %v5201 = vunpack.c.l.b16 %v5066
          %v5202 = vunpack.c.l.b16 %v5067
          %v5203 = vunpack.c.l.b16 %v5068
          %v5204 = vpack.c.b16 %v5141, %v5140
          %v5205 = vpack.c.b16 %v5143, %v5142
          %v5206 = vpack.c.b16 %v5145, %v5144
          %v5207 = vpack.c.b16 %v5147, %v5146
          %v5208 = vpack.c.b16 %v5149, %v5148
          %v5209 = vpack.c.b16 %v5151, %v5150
          %v5210 = vpack.c.b16 %v5153, %v5152
          %v5211 = vpack.c.b16 %v5155, %v5154
          %v5212 = vpack.c.b16 %v5157, %v5156
          %v5213 = vpack.c.b16 %v5159, %v5158
          %v5214 = vpack.c.b16 %v5161, %v5160
          %v5215 = vpack.c.b16 %v5163, %v5162
          %v5216 = vpack.c.b16 %v5165, %v5164
          %v5217 = vpack.c.b16 %v5167, %v5166
          %v5218 = vpack.c.b16 %v5169, %v5168
          %v5219 = vpack.c.b16 %v5171, %v5170
          %v5220 = vpack.c.b16 %v5173, %v5172
          %v5221 = vpack.c.b16 %v5175, %v5174
          %v5222 = vpack.c.b16 %v5177, %v5176
          %v5223 = vpack.c.b16 %v5179, %v5178
          %v5224 = vpack.c.b16 %v5181, %v5180
          %v5225 = vpack.c.b16 %v5183, %v5182
          %v5226 = vpack.c.b16 %v5185, %v5184
          %v5227 = vpack.c.b16 %v5187, %v5186
          %v5228 = vpack.c.b16 %v5189, %v5188
          %v5229 = vpack.c.b16 %v5191, %v5190
          %v5230 = vpack.c.b16 %v5193, %v5192
          %v5231 = vpack.c.b16 %v5195, %v5194
          %v5232 = vpack.c.b16 %v5197, %v5196
          %v5233 = vpack.c.b16 %v5199, %v5198
          %v5234 = vpack.c.b16 %v5201, %v5200
          %v5235 = vpack.c.b16 %v5203, %v5202
          %5268 = vmatprep.subr.bf16.mxu0 0
          %5269 = vmatpush1.bf16.msra.mxu0 %v5204
          %5270 = vmatprep.subr.bf16.mxu0 0
          %5271 = vmatpush1.bf16.msra.mxu0 %v5205
          %5272 = vmatprep.subr.bf16.mxu0 0
          %5273 = vmatpush1.bf16.msra.mxu0 %v5206
          %5274 = vmatprep.subr.bf16.mxu0 0
          %5275 = vmatpush1.bf16.msra.mxu0 %v5207
          %5276 = vmatprep.subr.bf16.mxu0 0
          %5277 = vmatpush1.bf16.msra.mxu0 %v5208
          %5278 = vmatprep.subr.bf16.mxu0 0
          %5279 = vmatpush1.bf16.msra.mxu0 %v5209
          %5280 = vmatprep.subr.bf16.mxu0 0
          %5281 = vmatpush1.bf16.msra.mxu0 %v5210
          %5282 = vmatprep.subr.bf16.mxu0 0
          %5283 = vmatpush1.bf16.msra.mxu0 %v5211
          %5284 = vmatprep.subr.bf16.mxu0 0
          %5285 = vmatpush1.bf16.msra.mxu0 %v5212
          %5286 = vmatprep.subr.bf16.mxu0 0
          %5287 = vmatpush1.bf16.msra.mxu0 %v5213
          %5288 = vmatprep.subr.bf16.mxu0 0
          %5289 = vmatpush1.bf16.msra.mxu0 %v5214
          %5290 = vmatprep.subr.bf16.mxu0 0
          %5291 = vmatpush1.bf16.msra.mxu0 %v5215
          %5292 = vmatprep.subr.bf16.mxu0 0
          %5293 = vmatpush1.bf16.msra.mxu0 %v5216
          %5294 = vmatprep.subr.bf16.mxu0 0
          %5295 = vmatpush1.bf16.msra.mxu0 %v5217
          %5296 = vmatprep.subr.bf16.mxu0 0
          %5297 = vmatpush1.bf16.msra.mxu0 %v5218
          %5298 = vmatprep.subr.bf16.mxu0 0
          %5299 = vmatpush1.bf16.msra.mxu0 %v5219
          %5300 = vmatprep.mubr.bf16.mxu0 %v5002
          %5301 = vmatmul.mubr.bf16.gmra.mrb[0].mxu0 %v5001
          %v5302 = vpop.f32.mrb[0].mxu0
          %v5303 = vadd.f32 %v5074, %v5302
          %v5304 = vpop.f32.mrb[0].mxu0
          %v5305 = vpop.f32.mrb[0].mxu0
          %v5306 = vpop.f32.mrb[0].mxu0
          %5307 = vdwg.mxu0
          %5308 = vmatprep.subr.bf16.mxu0 0
          %5309 = vmatpush1.bf16.msra.mxu0 %v5220
          %5310 = vmatprep.subr.bf16.mxu0 0
          %5311 = vmatpush1.bf16.msra.mxu0 %v5221
          %5312 = vmatprep.subr.bf16.mxu0 0
          %5313 = vmatpush1.bf16.msra.mxu0 %v5222
          %5314 = vmatprep.subr.bf16.mxu0 0
          %5315 = vmatpush1.bf16.msra.mxu0 %v5223
          %5316 = vmatprep.subr.bf16.mxu0 0
          %5317 = vmatpush1.bf16.msra.mxu0 %v5224
          %5318 = vmatprep.subr.bf16.mxu0 0
          %5319 = vmatpush1.bf16.msra.mxu0 %v5225
          %5320 = vmatprep.subr.bf16.mxu0 0
          %5321 = vmatpush1.bf16.msra.mxu0 %v5226
          %5322 = vmatprep.subr.bf16.mxu0 0
          %5323 = vmatpush1.bf16.msra.mxu0 %v5227
          %5324 = vmatprep.subr.bf16.mxu0 0
          %5325 = vmatpush1.bf16.msra.mxu0 %v5228
          %5326 = vmatprep.subr.bf16.mxu0 0
          %5327 = vmatpush1.bf16.msra.mxu0 %v5229
          %5328 = vmatprep.subr.bf16.mxu0 0
          %5329 = vmatpush1.bf16.msra.mxu0 %v5230
          %5330 = vmatprep.subr.bf16.mxu0 0
          %5331 = vmatpush1.bf16.msra.mxu0 %v5231
          %5332 = vmatprep.subr.bf16.mxu0 0
          %5333 = vmatpush1.bf16.msra.mxu0 %v5232
          %5334 = vmatprep.subr.bf16.mxu0 0
          %5335 = vmatpush1.bf16.msra.mxu0 %v5233
          %5336 = vmatprep.subr.bf16.mxu0 0
          %5337 = vmatpush1.bf16.msra.mxu0 %v5234
          %5338 = vmatprep.subr.bf16.mxu0 0
          %5339 = vmatpush1.bf16.msra.mxu0 %v5235
          %5340 = vmatprep.mubr.bf16.mxu0 %v5004
          %5341 = vmatmul.mubr.bf16.gmra.mrb[0].mxu0 %v5003
          %v5342 = vpop.f32.mrb[0].mxu0
          %v5343 = vadd.f32 %v5303, %v5342
          %v5344 = vpop.f32.mrb[0].mxu0
          %v5345 = vpop.f32.mrb[0].mxu0
          %v5346 = vpop.f32.mrb[0].mxu0
          %5347 = vdwg.mxu0
          %vm5348 = vcmask 39936
          %v5349 = vsel %vm5348, %v5343, -inf
          %5350 = vmax.xlane.f32.xlu0 %v5349
          %v5351 = vpop.xlane.xlu0 %5350
          %v5352 = vsub.f32 %v5343, %v5351
          %v5353 = vmul.f32 %v5352, 1.442695
          %v5354 = vpow.pop %v5353
          %v5355 = vsel %vm5348, %v5354, 0.0
          %5356 = vadd.xlane.f32.xlu0 %v5355
          %v5357 = vpop.xlane.xlu0 %5356
          %v5358 = vrcp.pop %v5357
          %v5359 = vmul.f32 %v5354, %v5358
          %5360 = vst.msk [vmem:[#allocation21] sm:$0xff] %vm5348, %v5359
          %v5361 = vlaneseq
          %v5362 = vand.u32 %v5361, 127
          %vm5363 = vcmp.eq.f32.partialorder %v5343, %v5351
          %v5364 = vsel %vm5363, %v5362, 5
          %v5365 = vsel %vm5348, %v5364, 2147483647
          %v5366 = vand.u32 %v5365, 65535
          %v5367 = vshra.s32 %v5365, 16
          %v5368 = vcvt.s32.f32 %v5366
          %v5369 = vcvt.s32.f32 %v5367
          %5370 = vmin.xlane.f32.xlu0 %v5369
          %v5371 = vpop.xlane.xlu0 %5370
          %vm5372 = vcmp.eq.f32.partialorder %v5369, %v5371
          %v5373 = vsel %vm5372, %v5368, inf
          %5374 = vmin.xlane.f32.xlu0 %v5373
          %v5375 = vpop.xlane.xlu0 %5374
          %v5376 = vcvt.f32.s32 %v5375
          %v5377 = vcvt.f32.s32 %v5371
          %v5378 = vshll.u32 %v5377, 16
          %v5379 = vadd.s32 %v5378, %v5376
          %vm5380 = vcmask 7168
          %5381 = vst.msk [vmem:[%s657] sm:$0xff] %vm5380, %v5379
        $region112: #{tpu_custom_call.1} parent=63 // pred_fallthru
          _
        %p5382 = scmp.lt.s32.totalorder %s41, 0
        %s5383 = scalar_select %p5382, %s41, 0
        %s5384 = smul.addr %s5383, 8
        %s5385 = scalar_lea.vmem %s12, %s5384
        // Predicated region
        $region113: #{tpu_custom_call.1} parent=63 // pred_check
          %p5386 = pneg %p322
        $region114: #{tpu_custom_call.1} parent=63 // pred_check_branch
          %5388 = sbr.rel (%p5386) target = $region116
        $region115: #{tpu_custom_call.1} parent=63 // pred_region
          %s5390 = ssub.s32 128, 128
          %5391 = vsyncadd [#allocation6], %s5390
          %s5392 = smul.addr %s41, 128
          %s5393 = scalar_lea.hbm %s11, %s5392
          %s5395 = sshll.u32 [#allocation21], 4
          %s5396 = int_to_ptr.vmem [resolvable:$true] %s5395
          %5398 = dma.vmem_to_hbm [thread:$0]  %s5396, 128, %s5393, [#allocation6]
        $region116: #{tpu_custom_call.1} parent=63 // pred_fallthru
          _
        // Predicated region
        $region117: #{tpu_custom_call.1} parent=63 // pred_check
          %p5399 = pneg %p348
        $region118: #{tpu_custom_call.1} parent=63 // pred_check_branch
          %5401 = sbr.rel (%p5399) target = $region120
        $region119: #{tpu_custom_call.1} parent=63 // pred_region
          _
        $region120: #{tpu_custom_call.1} parent=63 // pred_fallthru
          _
        // Predicated region
        $region121: #{tpu_custom_call.1} parent=63 // pred_check
          %p5402 = pneg %p322
        $region122: #{tpu_custom_call.1} parent=63 // pred_check_branch
          %5404 = sbr.rel (%p5402) target = $region124
        $region123: #{tpu_custom_call.1} parent=63 // pred_region
          %5405 = dma.done [#allocation6], 128
        $region124: #{tpu_custom_call.1} parent=63 // pred_fallthru
          _
        // Predicated region
        $region125: #{tpu_custom_call.1} parent=63 // pred_check
          %p5406 = pneg %p348
        $region126: #{tpu_custom_call.1} parent=63 // pred_check_branch
          %5408 = sbr.rel (%p5406) target = $region128
        $region127: #{tpu_custom_call.1} parent=63 // pred_region
          %p5409 = scmp.lt.s32.totalorder %s41, 0
          %s5410 = scalar_select %p5409, %s41, 0
          %s5411 = smul.addr %s5410, 8
          %s5412 = scalar_lea.vmem %s12, %s5411
        $region128: #{tpu_custom_call.1} parent=63 // pred_fallthru
          _
      $region64: #{tpu_custom_call.1} parent=5 // pred_fallthru
        _
      %p5413 = scmp.le.s32.totalorder 2, %s32
      // Predicated region
      $region129: #{tpu_custom_call.1} parent=5 // pred_check
        %p5414 = pneg %p5413
      $region130: #{tpu_custom_call.1} parent=5 // pred_check_branch
        %5416 = sbr.rel (%p5414) target = $region132
      $region131: #{tpu_custom_call.1} parent=5 // pred_region
        %s5417 = ssub.s32 %s32, 2
      $region132: #{tpu_custom_call.1} parent=5 // pred_fallthru
        _
    $region6: #{tpu_custom_call.1} parent=1 // loop_footer
      %s36 = sadd.s32 1, %s32
    $region7: #{tpu_custom_call.1} parent=1 // loop_footer_branch
      %31 = sbr.rel target = $region3
    $region8: #{tpu_custom_call.1} parent=1 // loop_exit
      _
    %5418 = vsyncpa [#allocation5], 1
    %s5419 = scalar_lea.sflag [#allocation5], 1
    %5420 = vsyncpa %s5419, 1
    %5421 = vsyncpa [#allocation8], 1
    %s5422 = scalar_lea.sflag [#allocation8], 1
    %5423 = vsyncpa %s5422, 1
    %5424 = vsyncpa [#allocation11], 1
    %s5425 = scalar_lea.sflag [#allocation11], 1
    %5426 = vsyncpa %s5425, 1
    %5427 = vsyncpa [#allocation14], 1
    %5428 = vsyncpa [#allocation17], 1
    %5429 = vsyncpa [#allocation20], 1
    %5430 = vsyncpa [#allocation6], 1
    %s5431 = scalar_lea.sflag [#allocation6], 1
    %5432 = vsyncpa %s5431, 1

</llo_original>
